<compile_context>
chip_gen: v5e
topology: v5e:2x2
jax: 0.10.0
libtpu: 0.0.40
codegen_flags: <defaults>
</compile_context>

<pallas_src>
import jax
import jax.numpy as jnp
from jax.experimental import pallas as pl
from jax.experimental.pallas import tpu as pltpu

LN_EPS = 1e-5  # PyTorch nn.LayerNorm default eps


def _round_up(x, m):
    return (x + m - 1) // m * m


# ----------------------------------------------------------------------------
# Deterministic parameter init mirroring the PyTorch module
# (orthogonal_ weights, zero biases, LayerNorm weight=1 / bias=0).
# Weights are kept in torch layout [out_features, in_features].
# ----------------------------------------------------------------------------
def orthogonal(key, out_dim, in_dim, gain):
    rows, cols = out_dim, in_dim
    flat = jax.random.normal(key, (rows, cols), dtype=jnp.float32)
    if rows < cols:
        flat = flat.T
    q, r = jnp.linalg.qr(flat)
    d = jnp.diagonal(r)
    d = jnp.where(d == 0, 1.0, jnp.sign(d))
    q = q * d[None, :]
    if rows < cols:
        q = q.T
    return (gain * q).astype(jnp.float32)


def make_params(state_dim, action_dim, hidden_dim, key):
    in_dim = state_dim + action_dim
    h, h2, h4 = hidden_dim, hidden_dim // 2, hidden_dim // 4
    layer_dims = [(in_dim, h), (h, h), (h, h), (h, h2), (h2, h4), (h4, 1)]
    names = ["1", "2", "3", "4", "5", "o"]
    gains = [1.414] * 5 + [1.0]
    keys = jax.random.split(key, 6)
    p = {"ln0_g": jnp.ones((in_dim,), jnp.float32),
         "ln0_b": jnp.zeros((in_dim,), jnp.float32)}
    for (din, dout), n, g, k in zip(layer_dims, names, gains, keys):
        p["w" + n] = orthogonal(k, dout, din, g)
        p["b" + n] = jnp.zeros((dout,), jnp.float32)
        if n != "o":
            p["ln" + n + "_g"] = jnp.ones((dout,), jnp.float32)
            p["ln" + n + "_b"] = jnp.zeros((dout,), jnp.float32)
    return p


# ----------------------------------------------------------------------------
# One-time parameter packing (run ONCE per parameter set, not per forward).
#   w_slab [W_ROWS, W_COLS]: weight blocks (torch [out,in] layout) stacked on
#     rows, each block row-offset padded to a multiple of 8, columns from 0.
#     Layer-1 weights are stored pre-split into a state part and an action
#     part, with the input_norm gamma already folded in.
#   v_slab [V_ROWS, 128]: every 1-D parameter (biases, LayerNorm gamma/beta,
#     the precomputed row-sum of w1') stored as one COLUMN so a [dim,1] slice
#     broadcasts over the lane (batch) axis.
# ----------------------------------------------------------------------------
def pack_params(params, state_dim, action_dim, hidden_dim):
    sd, ad = state_dim, action_dim
    in_dim = sd + ad
    h, h2, h4 = hidden_dim, hidden_dim // 2, hidden_dim // 4
    f32 = jnp.float32
    hp = jax.lax.Precision.HIGHEST

    w1 = params["w1"].astype(f32)
    g0 = params["ln0_g"].astype(f32)
    b0 = params["ln0_b"].astype(f32)
    # Fold input_norm affine into fc1 (exact):  w1' = w1 * g0,  b1' = b1 + w1 @ b0
    w1p = w1 * g0[None, :]
    b1p = params["b1"].astype(f32) + jnp.dot(w1, b0, precision=hp)
    w1s, w1a = w1p[:, :sd], w1p[:, sd:]
    w1_rowsum = jnp.sum(w1p, axis=1)  # = w1' @ ones(in_dim), used for the mean term

    blocks = [w1s, w1a,
              params["w2"].astype(f32), params["w3"].astype(f32),
              params["w4"].astype(f32), params["w5"].astype(f32),
              params["wo"].astype(f32)]
    w_row_off, off = [], 0
    for blk in blocks:
        w_row_off.append(off)
        off += _round_up(blk.shape[0], 8)
    w_rows = _round_up(off, 8)
    w_cols = _round_up(max(blk.shape[1] for blk in blocks), 128)
    w_slab = jnp.zeros((w_rows, w_cols), f32)
    for blk, r0 in zip(blocks, w_row_off):
        w_slab = w_slab.at[r0:r0 + blk.shape[0], :blk.shape[1]].set(blk)

    vecs = {"b1": b1p, "b2": params["b2"], "b3": params["b3"],
            "b4": params["b4"], "b5": params["b5"], "bo": params["bo"],
            "w1_rowsum": w1_rowsum}
    for n in ["1", "2", "3", "4", "5"]:
        vecs["ln" + n + "_g"] = params["ln" + n + "_g"]
        vecs["ln" + n + "_b"] = params["ln" + n + "_b"]
    v_rows = _round_up(max(v.shape[0] for v in vecs.values()), 8)
    v_cols = _round_up(len(vecs), 128)
    v_slab = jnp.zeros((v_rows, v_cols), f32)
    v_col = {}
    for j, (name, vec) in enumerate(vecs.items()):
        v_slab = v_slab.at[:vec.shape[0], j].set(vec.astype(f32))
        v_col[name] = j

    layout = dict(state_dim=sd, action_dim=ad, in_dim=in_dim, hidden=h,
                  w_row_off=w_row_off, v_col=v_col)
    return w_slab, v_slab, layout


# ----------------------------------------------------------------------------
# Kernel (closure over the static packing layout).
#   w_ref, v_ref : resident parameter slabs (constant index_map)
#   s_ref  [tb, state_dim],  a_ref [tb, action_dim]  (natural layout)
#   out_ref [1, tb]  (lane-dense critic values)
# Activations are feature-major [features, tb] inside the kernel so the batch
# stays on the 128-lane axis throughout.
# ----------------------------------------------------------------------------
def _make_kernel(layout, matmul_dtype):
    sd = layout["state_dim"]
    ad = layout["action_dim"]
    in_dim = layout["in_dim"]
    h = layout["hidden"]
    h2, h4 = h // 2, h // 4
    w_row_off = layout["w_row_off"]
    v_col = layout["v_col"]
    f32 = jnp.float32
    matmul_dtype = jnp.dtype(matmul_dtype)
    prec = (jax.lax.Precision.HIGHEST if matmul_dtype == jnp.dtype(jnp.float32)
            else jax.lax.Precision.DEFAULT)

    def mm(a, b, trans_b=False):
        dn = (((1,), (1 if trans_b else 0,)), ((), ()))
        return jax.lax.dot_general(a.astype(matmul_dtype), b.astype(matmul_dtype),
                                   dimension_numbers=dn,
                                   preferred_element_type=f32,
                                   precision=prec)

    def kernel(w_ref, v_ref, s_ref, a_ref, out_ref):
        def col(name, dim):                       # [dim, 1] column parameter
            j = v_col[name]
            return v_ref[0:dim, j:j + 1]

        def wblk(idx, dout, din):                 # [dout, din] weight block
            r0 = w_row_off[idx]
            return w_ref[r0:r0 + dout, 0:din]

        s = s_ref[...].astype(f32)                # [tb, sd]
        a = a_ref[...].astype(f32)                # [tb, ad]

        # ---- input_norm statistics on the MXU (ones-row dots -> [1, tb]) ----
        ones_s = jnp.ones((1, sd), f32)
        ones_a = jnp.ones((1, ad), f32)
        ssum = mm(ones_s, s, trans_b=True) + mm(ones_a, a, trans_b=True)
        sqsum = mm(ones_s, s * s, trans_b=True) + mm(ones_a, a * a, trans_b=True)
        mu = ssum * (1.0 / in_dim)                # [1, tb]
        var = sqsum * (1.0 / in_dim) - mu * mu
        r = jax.lax.rsqrt(var + LN_EPS)           # [1, tb]

        # ---- fc1 with input_norm affine folded into (w1', b1') ----
        #   h1 = (w1' x^T - (w1' 1) mu) * r + b1'
        z = (mm(wblk(0, h, sd), s, trans_b=True) +
             mm(wblk(1, h, ad), a, trans_b=True))            # [h, tb]
        x = (z - col("w1_rowsum", h) * mu) * r + col("b1", h)

        def ln_relu(x, dout, name):
            # LayerNorm over the feature (sublane) axis, reduces on the MXU.
            ones_row = jnp.ones((1, dout), f32)
            mu = mm(ones_row, x) * (1.0 / dout)               # [1, tb]
            xc = x - mu
            var = mm(ones_row, xc * xc) * (1.0 / dout)        # [1, tb]
            xh = xc * jax.lax.rsqrt(var + LN_EPS)
            y = xh * col(name + "_g", dout) + col(name + "_b", dout)
            return jnp.maximum(y, 0.0)
            # dropout(p=0.1) == identity in eval mode.

        x = ln_relu(x, h, "ln1")
        for name, blk, din, dout in (("2", 2, h, h), ("3", 3, h, h),
                                     ("4", 4, h, h2), ("5", 5, h2, h4)):
            x = mm(wblk(blk, dout, din), x) + col("b" + name, dout)
            x = ln_relu(x, dout, "ln" + name)

        out = mm(wblk(6, 1, h4), x) + col("bo", 1)            # [1, tb]
        out_ref[...] = out.astype(out_ref.dtype)

    return kernel


# ----------------------------------------------------------------------------
# Public builder: packs the parameters ONCE and returns a jitted forward.
# ----------------------------------------------------------------------------
def make_critic_fn(params, state_dim, action_dim, *,
                   max_batch_tile=256, matmul_dtype=jnp.float32):
    hidden_dim = params["w1"].shape[0]
    assert hidden_dim % 4 == 0
    # tb must be a multiple of 128 (lane-dense batch tiling).
    mbt = max(128, _round_up(int(max_batch_tile), 128))

    w_slab, v_slab, layout = pack_params(params, state_dim, action_dim, hidden_dim)
    kernel = _make_kernel(layout, matmul_dtype)

    @jax.jit
    def _forward(w_slab, v_slab, state, action):
        B = state.shape[0]
        # Tile selection: >=2 grid steps once the padded batch reaches 256 so
        # both v7x TensorCores get work (no effect on single-TC v5e/v6e).
        b_ceil = _round_up(max(B, 1), 128)
        half = (b_ceil // 2) // 128 * 128
        tb = min(mbt, max(128, half))
        b_pad = _round_up(b_ceil, tb)

        state = state.astype(jnp.float32)
        action = action.astype(jnp.float32)
        if b_pad != B:
            state = jnp.pad(state, ((0, b_pad - B), (0, 0)))
            action = jnp.pad(action, ((0, b_pad - B), (0, 0)))

        out = pl.pallas_call(
            kernel,
            out_shape=jax.ShapeDtypeStruct((1, b_pad), jnp.float32),
            grid_spec=pltpu.PrefetchScalarGridSpec(
                num_scalar_prefetch=0,
                grid=(b_pad // tb,),
                in_specs=[
                    pl.BlockSpec(w_slab.shape, lambda i: (0, 0)),   # resident weights
                    pl.BlockSpec(v_slab.shape, lambda i: (0, 0)),   # resident LN/bias
                    pl.BlockSpec((tb, state_dim), lambda i: (i, 0)),
                    pl.BlockSpec((tb, action_dim), lambda i: (i, 0)),
                ],
                out_specs=pl.BlockSpec((1, tb), lambda i: (0, i)),  # lane-dense out
            ),
            compiler_params=pltpu.CompilerParams(
                dimension_semantics=("parallel",),
            ),
        )(w_slab, v_slab, state, action)
        return out[0, :B].reshape(B, 1)

    def forward(state, action):
        return _forward(w_slab, v_slab, state, action)

    return forward


# ----------------------------------------------------------------------------
# Pure-JAX reference (torch-layout weights) for the correctness check.
# ----------------------------------------------------------------------------
def reference(state, action, p):
    hp = jax.lax.Precision.HIGHEST

    def ln(x, g, b):
        mu = jnp.mean(x, axis=-1, keepdims=True)
        var = jnp.mean((x - mu) ** 2, axis=-1, keepdims=True)
        return (x - mu) / jnp.sqrt(var + LN_EPS) * g + b

    x = jnp.concatenate([state, action], axis=1).astype(jnp.float32)
    x = ln(x, p["ln0_g"], p["ln0_b"])
    for n in ["1", "2", "3", "4", "5"]:
        x = jnp.dot(x, p["w" + n].T, precision=hp) + p["b" + n]
        x = jnp.maximum(ln(x, p["ln" + n + "_g"], p["ln" + n + "_b"]), 0.0)
    return jnp.dot(x, p["wo"].T, precision=hp) + p["bo"]


if __name__ == "__main__":
    state_dim, action_dim, hidden_dim = 10, 6, 32
    batch = 16

    key = jax.random.PRNGKey(0)
    k_state, k_action, k_params = jax.random.split(key, 3)

    state = jax.random.normal(k_state, (batch, state_dim), dtype=jnp.float32)
    action = jax.random.normal(k_action, (batch, action_dim), dtype=jnp.float32)
    params = make_params(state_dim, action_dim, hidden_dim, k_params)

    ref = reference(state, action, params)

    # f32 MXU path (exact; also the right choice on v5e).
    critic = make_critic_fn(params, state_dim, action_dim)
    out = jax.block_until_ready(critic(state, action))
    assert out.shape == (batch, 1), out.shape
    assert jnp.allclose(out, ref, atol=1e-3, rtol=1e-3), (out, ref)

    # bf16 MXU-operand path (v6e/v7x optimization); loose tolerance.
    critic_bf16 = make_critic_fn(params, state_dim, action_dim,
                                 matmul_dtype=jnp.bfloat16)
    out_bf16 = jax.block_until_ready(critic_bf16(state, action))
    assert out_bf16.shape == (batch, 1), out_bf16.shape
    assert bool(jnp.all(jnp.isfinite(out_bf16)))
    assert jnp.allclose(out_bf16, ref, atol=2e-1, rtol=2e-1), (out_bf16, ref)

    print("KERNEL_OK")
</pallas_src>

<mosaic_0001>
module attributes {stable_mosaic.version = 11 : i64} {
  func.func @kernel(%arg0: i32, %arg1: memref<160x128xf32, #tpu.memory_space<vmem>>, %arg2: memref<32x128xf32, #tpu.memory_space<vmem>>, %arg3: memref<128x10xf32, #tpu.memory_space<vmem>>, %arg4: memref<128x6xf32, #tpu.memory_space<vmem>>, %arg5: memref<1x128xf32, #tpu.memory_space<vmem>>) attributes {dimension_semantics = [#tpu.dimension_semantics<parallel>], iteration_bounds = array<i64: 1>, scalar_prefetch = 0 : i64, scratch_operands = 0 : i64, tpu.core_type = #tpu.core_type<tc>, window_params = [{pipeline_mode = #tpu.pipeline_mode<synchronous>, transform_indices = @transform_0, window_bounds = array<i64: 160, 128>}, {pipeline_mode = #tpu.pipeline_mode<synchronous>, transform_indices = @transform_1, window_bounds = array<i64: 32, 128>}, {transform_indices = @transform_2, window_bounds = array<i64: 128, 10>}, {transform_indices = @transform_3, window_bounds = array<i64: 128, 6>}, {transform_indices = @transform_4, window_bounds = array<i64: 1, 128>}]} {
    %c0 = arith.constant 0 : index
    %c0_0 = arith.constant 0 : index
    %0 = vector.load %arg3[%c0, %c0_0] : memref<128x10xf32, #tpu.memory_space<vmem>>, vector<128x10xf32>
    %c0_1 = arith.constant 0 : index
    %c0_2 = arith.constant 0 : index
    %1 = vector.load %arg4[%c0_1, %c0_2] : memref<128x6xf32, #tpu.memory_space<vmem>>, vector<128x6xf32>
    %cst = arith.constant 1.000000e+00 : f32
    %2 = vector.broadcast %cst : f32 to vector<1x10xf32>
    %cst_3 = arith.constant 1.000000e+00 : f32
    %3 = vector.broadcast %cst_3 : f32 to vector<1x6xf32>
    %cst_4 = arith.constant dense<0.000000e+00> : vector<1x128xf32>
    %4 = tpu.matmul %2, %0, %cst_4 {dimension_numbers = #tpu.dot_dimension_numbers<[1], [1], [0], [0], [0, 0, 1, 0], [], []>, precision = #tpu.contract_precision<fp32>} : vector<1x10xf32>, vector<128x10xf32>, vector<1x128xf32> -> vector<1x128xf32>
    %cst_5 = arith.constant dense<0.000000e+00> : vector<1x128xf32>
    %5 = tpu.matmul %3, %1, %cst_5 {dimension_numbers = #tpu.dot_dimension_numbers<[1], [1], [0], [0], [0, 0, 1, 0], [], []>, precision = #tpu.contract_precision<fp32>} : vector<1x6xf32>, vector<128x6xf32>, vector<1x128xf32> -> vector<1x128xf32>
    %6 = arith.addf %4, %5 : vector<1x128xf32>
    %7 = arith.mulf %0, %0 : vector<128x10xf32>
    %cst_6 = arith.constant dense<0.000000e+00> : vector<1x128xf32>
    %8 = tpu.matmul %2, %7, %cst_6 {dimension_numbers = #tpu.dot_dimension_numbers<[1], [1], [0], [0], [0, 0, 1, 0], [], []>, precision = #tpu.contract_precision<fp32>} : vector<1x10xf32>, vector<128x10xf32>, vector<1x128xf32> -> vector<1x128xf32>
    %9 = arith.mulf %1, %1 : vector<128x6xf32>
    %cst_7 = arith.constant dense<0.000000e+00> : vector<1x128xf32>
    %10 = tpu.matmul %3, %9, %cst_7 {dimension_numbers = #tpu.dot_dimension_numbers<[1], [1], [0], [0], [0, 0, 1, 0], [], []>, precision = #tpu.contract_precision<fp32>} : vector<1x6xf32>, vector<128x6xf32>, vector<1x128xf32> -> vector<1x128xf32>
    %11 = arith.addf %8, %10 : vector<1x128xf32>
    %cst_8 = arith.constant 6.250000e-02 : f32
    %12 = vector.broadcast %cst_8 : f32 to vector<1x128xf32>
    %13 = arith.mulf %6, %12 : vector<1x128xf32>
    %cst_9 = arith.constant 6.250000e-02 : f32
    %14 = vector.broadcast %cst_9 : f32 to vector<1x128xf32>
    %15 = arith.mulf %11, %14 : vector<1x128xf32>
    %16 = arith.mulf %13, %13 : vector<1x128xf32>
    %17 = arith.subf %15, %16 : vector<1x128xf32>
    %cst_10 = arith.constant 9.99999974E-6 : f32
    %18 = vector.broadcast %cst_10 : f32 to vector<1x128xf32>
    %19 = arith.addf %17, %18 : vector<1x128xf32>
    %20 = math.rsqrt %19 : vector<1x128xf32>
    %c0_11 = arith.constant 0 : index
    %c0_12 = arith.constant 0 : index
    %21 = vector.load %arg1[%c0_11, %c0_12] : memref<160x128xf32, #tpu.memory_space<vmem>>, vector<32x10xf32>
    %cst_13 = arith.constant dense<0.000000e+00> : vector<32x128xf32>
    %22 = tpu.matmul %21, %0, %cst_13 {dimension_numbers = #tpu.dot_dimension_numbers<[1], [1], [0], [0], [0, 0, 1, 0], [], []>, precision = #tpu.contract_precision<fp32>} : vector<32x10xf32>, vector<128x10xf32>, vector<32x128xf32> -> vector<32x128xf32>
    %c32 = arith.constant 32 : index
    %c0_14 = arith.constant 0 : index
    %23 = vector.load %arg1[%c32, %c0_14] : memref<160x128xf32, #tpu.memory_space<vmem>>, vector<32x6xf32>
    %cst_15 = arith.constant dense<0.000000e+00> : vector<32x128xf32>
    %24 = tpu.matmul %23, %1, %cst_15 {dimension_numbers = #tpu.dot_dimension_numbers<[1], [1], [0], [0], [0, 0, 1, 0], [], []>, precision = #tpu.contract_precision<fp32>} : vector<32x6xf32>, vector<128x6xf32>, vector<32x128xf32> -> vector<32x128xf32>
    %25 = arith.addf %22, %24 : vector<32x128xf32>
    %c0_16 = arith.constant 0 : index
    %c6 = arith.constant 6 : index
    %26 = vector.load %arg2[%c0_16, %c6] : memref<32x128xf32, #tpu.memory_space<vmem>>, vector<32x1xf32>
    %27 = vector.broadcast %26 : vector<32x1xf32> to vector<32x128xf32>
    %28 = vector.broadcast %13 : vector<1x128xf32> to vector<32x128xf32>
    %29 = arith.mulf %27, %28 : vector<32x128xf32>
    %30 = arith.subf %25, %29 : vector<32x128xf32>
    %31 = vector.broadcast %20 : vector<1x128xf32> to vector<32x128xf32>
    %32 = arith.mulf %30, %31 : vector<32x128xf32>
    %c0_17 = arith.constant 0 : index
    %c0_18 = arith.constant 0 : index
    %33 = vector.load %arg2[%c0_17, %c0_18] : memref<32x128xf32, #tpu.memory_space<vmem>>, vector<32x1xf32>
    %34 = vector.broadcast %33 : vector<32x1xf32> to vector<32x128xf32>
    %35 = arith.addf %32, %34 : vector<32x128xf32>
    %cst_19 = arith.constant 1.000000e+00 : f32
    %36 = vector.broadcast %cst_19 : f32 to vector<1x32xf32>
    %cst_20 = arith.constant dense<0.000000e+00> : vector<1x128xf32>
    %37 = tpu.matmul %36, %35, %cst_20 {dimension_numbers = #tpu.dot_dimension_numbers<[1], [0], [0], [1], [0, 0, 1, 1], [], []>, precision = #tpu.contract_precision<fp32>} : vector<1x32xf32>, vector<32x128xf32>, vector<1x128xf32> -> vector<1x128xf32>
    %cst_21 = arith.constant 3.125000e-02 : f32
    %38 = vector.broadcast %cst_21 : f32 to vector<1x128xf32>
    %39 = arith.mulf %37, %38 : vector<1x128xf32>
    %40 = vector.broadcast %39 : vector<1x128xf32> to vector<32x128xf32>
    %41 = arith.subf %35, %40 : vector<32x128xf32>
    %42 = arith.mulf %41, %41 : vector<32x128xf32>
    %cst_22 = arith.constant dense<0.000000e+00> : vector<1x128xf32>
    %43 = tpu.matmul %36, %42, %cst_22 {dimension_numbers = #tpu.dot_dimension_numbers<[1], [0], [0], [1], [0, 0, 1, 1], [], []>, precision = #tpu.contract_precision<fp32>} : vector<1x32xf32>, vector<32x128xf32>, vector<1x128xf32> -> vector<1x128xf32>
    %cst_23 = arith.constant 3.125000e-02 : f32
    %44 = vector.broadcast %cst_23 : f32 to vector<1x128xf32>
    %45 = arith.mulf %43, %44 : vector<1x128xf32>
    %cst_24 = arith.constant 9.99999974E-6 : f32
    %46 = vector.broadcast %cst_24 : f32 to vector<1x128xf32>
    %47 = arith.addf %45, %46 : vector<1x128xf32>
    %48 = math.rsqrt %47 : vector<1x128xf32>
    %49 = vector.broadcast %48 : vector<1x128xf32> to vector<32x128xf32>
    %50 = arith.mulf %41, %49 : vector<32x128xf32>
    %c0_25 = arith.constant 0 : index
    %c7 = arith.constant 7 : index
    %51 = vector.load %arg2[%c0_25, %c7] : memref<32x128xf32, #tpu.memory_space<vmem>>, vector<32x1xf32>
    %52 = vector.broadcast %51 : vector<32x1xf32> to vector<32x128xf32>
    %53 = arith.mulf %50, %52 : vector<32x128xf32>
    %c0_26 = arith.constant 0 : index
    %c8 = arith.constant 8 : index
    %54 = vector.load %arg2[%c0_26, %c8] : memref<32x128xf32, #tpu.memory_space<vmem>>, vector<32x1xf32>
    %55 = vector.broadcast %54 : vector<32x1xf32> to vector<32x128xf32>
    %56 = arith.addf %53, %55 : vector<32x128xf32>
    %cst_27 = arith.constant 0.000000e+00 : f32
    %57 = vector.broadcast %cst_27 : f32 to vector<32x128xf32>
    %58 = arith.maximumf %56, %57 : vector<32x128xf32>
    %c64 = arith.constant 64 : index
    %c0_28 = arith.constant 0 : index
    %59 = vector.load %arg1[%c64, %c0_28] : memref<160x128xf32, #tpu.memory_space<vmem>>, vector<32x32xf32>
    %cst_29 = arith.constant dense<0.000000e+00> : vector<32x128xf32>
    %60 = tpu.matmul %59, %58, %cst_29 {dimension_numbers = #tpu.dot_dimension_numbers<[1], [0], [0], [1], [0, 0, 1, 1], [], []>, precision = #tpu.contract_precision<fp32>} : vector<32x32xf32>, vector<32x128xf32>, vector<32x128xf32> -> vector<32x128xf32>
    %c0_30 = arith.constant 0 : index
    %c1 = arith.constant 1 : index
    %61 = vector.load %arg2[%c0_30, %c1] : memref<32x128xf32, #tpu.memory_space<vmem>>, vector<32x1xf32>
    %62 = vector.broadcast %61 : vector<32x1xf32> to vector<32x128xf32>
    %63 = arith.addf %60, %62 : vector<32x128xf32>
    %cst_31 = arith.constant 1.000000e+00 : f32
    %64 = vector.broadcast %cst_31 : f32 to vector<1x32xf32>
    %cst_32 = arith.constant dense<0.000000e+00> : vector<1x128xf32>
    %65 = tpu.matmul %64, %63, %cst_32 {dimension_numbers = #tpu.dot_dimension_numbers<[1], [0], [0], [1], [0, 0, 1, 1], [], []>, precision = #tpu.contract_precision<fp32>} : vector<1x32xf32>, vector<32x128xf32>, vector<1x128xf32> -> vector<1x128xf32>
    %cst_33 = arith.constant 3.125000e-02 : f32
    %66 = vector.broadcast %cst_33 : f32 to vector<1x128xf32>
    %67 = arith.mulf %65, %66 : vector<1x128xf32>
    %68 = vector.broadcast %67 : vector<1x128xf32> to vector<32x128xf32>
    %69 = arith.subf %63, %68 : vector<32x128xf32>
    %70 = arith.mulf %69, %69 : vector<32x128xf32>
    %cst_34 = arith.constant dense<0.000000e+00> : vector<1x128xf32>
    %71 = tpu.matmul %64, %70, %cst_34 {dimension_numbers = #tpu.dot_dimension_numbers<[1], [0], [0], [1], [0, 0, 1, 1], [], []>, precision = #tpu.contract_precision<fp32>} : vector<1x32xf32>, vector<32x128xf32>, vector<1x128xf32> -> vector<1x128xf32>
    %cst_35 = arith.constant 3.125000e-02 : f32
    %72 = vector.broadcast %cst_35 : f32 to vector<1x128xf32>
    %73 = arith.mulf %71, %72 : vector<1x128xf32>
    %cst_36 = arith.constant 9.99999974E-6 : f32
    %74 = vector.broadcast %cst_36 : f32 to vector<1x128xf32>
    %75 = arith.addf %73, %74 : vector<1x128xf32>
    %76 = math.rsqrt %75 : vector<1x128xf32>
    %77 = vector.broadcast %76 : vector<1x128xf32> to vector<32x128xf32>
    %78 = arith.mulf %69, %77 : vector<32x128xf32>
    %c0_37 = arith.constant 0 : index
    %c9 = arith.constant 9 : index
    %79 = vector.load %arg2[%c0_37, %c9] : memref<32x128xf32, #tpu.memory_space<vmem>>, vector<32x1xf32>
    %80 = vector.broadcast %79 : vector<32x1xf32> to vector<32x128xf32>
    %81 = arith.mulf %78, %80 : vector<32x128xf32>
    %c0_38 = arith.constant 0 : index
    %c10 = arith.constant 10 : index
    %82 = vector.load %arg2[%c0_38, %c10] : memref<32x128xf32, #tpu.memory_space<vmem>>, vector<32x1xf32>
    %83 = vector.broadcast %82 : vector<32x1xf32> to vector<32x128xf32>
    %84 = arith.addf %81, %83 : vector<32x128xf32>
    %cst_39 = arith.constant 0.000000e+00 : f32
    %85 = vector.broadcast %cst_39 : f32 to vector<32x128xf32>
    %86 = arith.maximumf %84, %85 : vector<32x128xf32>
    %c96 = arith.constant 96 : index
    %c0_40 = arith.constant 0 : index
    %87 = vector.load %arg1[%c96, %c0_40] : memref<160x128xf32, #tpu.memory_space<vmem>>, vector<32x32xf32>
    %cst_41 = arith.constant dense<0.000000e+00> : vector<32x128xf32>
    %88 = tpu.matmul %87, %86, %cst_41 {dimension_numbers = #tpu.dot_dimension_numbers<[1], [0], [0], [1], [0, 0, 1, 1], [], []>, precision = #tpu.contract_precision<fp32>} : vector<32x32xf32>, vector<32x128xf32>, vector<32x128xf32> -> vector<32x128xf32>
    %c0_42 = arith.constant 0 : index
    %c2 = arith.constant 2 : index
    %89 = vector.load %arg2[%c0_42, %c2] : memref<32x128xf32, #tpu.memory_space<vmem>>, vector<32x1xf32>
    %90 = vector.broadcast %89 : vector<32x1xf32> to vector<32x128xf32>
    %91 = arith.addf %88, %90 : vector<32x128xf32>
    %cst_43 = arith.constant 1.000000e+00 : f32
    %92 = vector.broadcast %cst_43 : f32 to vector<1x32xf32>
    %cst_44 = arith.constant dense<0.000000e+00> : vector<1x128xf32>
    %93 = tpu.matmul %92, %91, %cst_44 {dimension_numbers = #tpu.dot_dimension_numbers<[1], [0], [0], [1], [0, 0, 1, 1], [], []>, precision = #tpu.contract_precision<fp32>} : vector<1x32xf32>, vector<32x128xf32>, vector<1x128xf32> -> vector<1x128xf32>
    %cst_45 = arith.constant 3.125000e-02 : f32
    %94 = vector.broadcast %cst_45 : f32 to vector<1x128xf32>
    %95 = arith.mulf %93, %94 : vector<1x128xf32>
    %96 = vector.broadcast %95 : vector<1x128xf32> to vector<32x128xf32>
    %97 = arith.subf %91, %96 : vector<32x128xf32>
    %98 = arith.mulf %97, %97 : vector<32x128xf32>
    %cst_46 = arith.constant dense<0.000000e+00> : vector<1x128xf32>
    %99 = tpu.matmul %92, %98, %cst_46 {dimension_numbers = #tpu.dot_dimension_numbers<[1], [0], [0], [1], [0, 0, 1, 1], [], []>, precision = #tpu.contract_precision<fp32>} : vector<1x32xf32>, vector<32x128xf32>, vector<1x128xf32> -> vector<1x128xf32>
    %cst_47 = arith.constant 3.125000e-02 : f32
    %100 = vector.broadcast %cst_47 : f32 to vector<1x128xf32>
    %101 = arith.mulf %99, %100 : vector<1x128xf32>
    %cst_48 = arith.constant 9.99999974E-6 : f32
    %102 = vector.broadcast %cst_48 : f32 to vector<1x128xf32>
    %103 = arith.addf %101, %102 : vector<1x128xf32>
    %104 = math.rsqrt %103 : vector<1x128xf32>
    %105 = vector.broadcast %104 : vector<1x128xf32> to vector<32x128xf32>
    %106 = arith.mulf %97, %105 : vector<32x128xf32>
    %c0_49 = arith.constant 0 : index
    %c11 = arith.constant 11 : index
    %107 = vector.load %arg2[%c0_49, %c11] : memref<32x128xf32, #tpu.memory_space<vmem>>, vector<32x1xf32>
    %108 = vector.broadcast %107 : vector<32x1xf32> to vector<32x128xf32>
    %109 = arith.mulf %106, %108 : vector<32x128xf32>
    %c0_50 = arith.constant 0 : index
    %c12 = arith.constant 12 : index
    %110 = vector.load %arg2[%c0_50, %c12] : memref<32x128xf32, #tpu.memory_space<vmem>>, vector<32x1xf32>
    %111 = vector.broadcast %110 : vector<32x1xf32> to vector<32x128xf32>
    %112 = arith.addf %109, %111 : vector<32x128xf32>
    %cst_51 = arith.constant 0.000000e+00 : f32
    %113 = vector.broadcast %cst_51 : f32 to vector<32x128xf32>
    %114 = arith.maximumf %112, %113 : vector<32x128xf32>
    %c128 = arith.constant 128 : index
    %c0_52 = arith.constant 0 : index
    %115 = vector.load %arg1[%c128, %c0_52] : memref<160x128xf32, #tpu.memory_space<vmem>>, vector<16x32xf32>
    %cst_53 = arith.constant dense<0.000000e+00> : vector<16x128xf32>
    %116 = tpu.matmul %115, %114, %cst_53 {dimension_numbers = #tpu.dot_dimension_numbers<[1], [0], [0], [1], [0, 0, 1, 1], [], []>, precision = #tpu.contract_precision<fp32>} : vector<16x32xf32>, vector<32x128xf32>, vector<16x128xf32> -> vector<16x128xf32>
    %c0_54 = arith.constant 0 : index
    %c3 = arith.constant 3 : index
    %117 = vector.load %arg2[%c0_54, %c3] : memref<32x128xf32, #tpu.memory_space<vmem>>, vector<16x1xf32>
    %118 = vector.broadcast %117 : vector<16x1xf32> to vector<16x128xf32>
    %119 = arith.addf %116, %118 : vector<16x128xf32>
    %cst_55 = arith.constant 1.000000e+00 : f32
    %120 = vector.broadcast %cst_55 : f32 to vector<1x16xf32>
    %cst_56 = arith.constant dense<0.000000e+00> : vector<1x128xf32>
    %121 = tpu.matmul %120, %119, %cst_56 {dimension_numbers = #tpu.dot_dimension_numbers<[1], [0], [0], [1], [0, 0, 1, 1], [], []>, precision = #tpu.contract_precision<fp32>} : vector<1x16xf32>, vector<16x128xf32>, vector<1x128xf32> -> vector<1x128xf32>
    %cst_57 = arith.constant 6.250000e-02 : f32
    %122 = vector.broadcast %cst_57 : f32 to vector<1x128xf32>
    %123 = arith.mulf %121, %122 : vector<1x128xf32>
    %124 = vector.broadcast %123 : vector<1x128xf32> to vector<16x128xf32>
    %125 = arith.subf %119, %124 : vector<16x128xf32>
    %126 = arith.mulf %125, %125 : vector<16x128xf32>
    %cst_58 = arith.constant dense<0.000000e+00> : vector<1x128xf32>
    %127 = tpu.matmul %120, %126, %cst_58 {dimension_numbers = #tpu.dot_dimension_numbers<[1], [0], [0], [1], [0, 0, 1, 1], [], []>, precision = #tpu.contract_precision<fp32>} : vector<1x16xf32>, vector<16x128xf32>, vector<1x128xf32> -> vector<1x128xf32>
    %cst_59 = arith.constant 6.250000e-02 : f32
    %128 = vector.broadcast %cst_59 : f32 to vector<1x128xf32>
    %129 = arith.mulf %127, %128 : vector<1x128xf32>
    %cst_60 = arith.constant 9.99999974E-6 : f32
    %130 = vector.broadcast %cst_60 : f32 to vector<1x128xf32>
    %131 = arith.addf %129, %130 : vector<1x128xf32>
    %132 = math.rsqrt %131 : vector<1x128xf32>
    %133 = vector.broadcast %132 : vector<1x128xf32> to vector<16x128xf32>
    %134 = arith.mulf %125, %133 : vector<16x128xf32>
    %c0_61 = arith.constant 0 : index
    %c13 = arith.constant 13 : index
    %135 = vector.load %arg2[%c0_61, %c13] : memref<32x128xf32, #tpu.memory_space<vmem>>, vector<16x1xf32>
    %136 = vector.broadcast %135 : vector<16x1xf32> to vector<16x128xf32>
    %137 = arith.mulf %134, %136 : vector<16x128xf32>
    %c0_62 = arith.constant 0 : index
    %c14 = arith.constant 14 : index
    %138 = vector.load %arg2[%c0_62, %c14] : memref<32x128xf32, #tpu.memory_space<vmem>>, vector<16x1xf32>
    %139 = vector.broadcast %138 : vector<16x1xf32> to vector<16x128xf32>
    %140 = arith.addf %137, %139 : vector<16x128xf32>
    %cst_63 = arith.constant 0.000000e+00 : f32
    %141 = vector.broadcast %cst_63 : f32 to vector<16x128xf32>
    %142 = arith.maximumf %140, %141 : vector<16x128xf32>
    %c144 = arith.constant 144 : index
    %c0_64 = arith.constant 0 : index
    %143 = vector.load %arg1[%c144, %c0_64] : memref<160x128xf32, #tpu.memory_space<vmem>>, vector<8x16xf32>
    %cst_65 = arith.constant dense<0.000000e+00> : vector<8x128xf32>
    %144 = tpu.matmul %143, %142, %cst_65 {dimension_numbers = #tpu.dot_dimension_numbers<[1], [0], [0], [1], [0, 0, 1, 1], [], []>, precision = #tpu.contract_precision<fp32>} : vector<8x16xf32>, vector<16x128xf32>, vector<8x128xf32> -> vector<8x128xf32>
    %c0_66 = arith.constant 0 : index
    %c4 = arith.constant 4 : index
    %145 = vector.load %arg2[%c0_66, %c4] : memref<32x128xf32, #tpu.memory_space<vmem>>, vector<8x1xf32>
    %146 = vector.broadcast %145 : vector<8x1xf32> to vector<8x128xf32>
    %147 = arith.addf %144, %146 : vector<8x128xf32>
    %cst_67 = arith.constant 1.000000e+00 : f32
    %148 = vector.broadcast %cst_67 : f32 to vector<1x8xf32>
    %cst_68 = arith.constant dense<0.000000e+00> : vector<1x128xf32>
    %149 = tpu.matmul %148, %147, %cst_68 {dimension_numbers = #tpu.dot_dimension_numbers<[1], [0], [0], [1], [0, 0, 1, 1], [], []>, precision = #tpu.contract_precision<fp32>} : vector<1x8xf32>, vector<8x128xf32>, vector<1x128xf32> -> vector<1x128xf32>
    %cst_69 = arith.constant 1.250000e-01 : f32
    %150 = vector.broadcast %cst_69 : f32 to vector<1x128xf32>
    %151 = arith.mulf %149, %150 : vector<1x128xf32>
    %152 = vector.broadcast %151 : vector<1x128xf32> to vector<8x128xf32>
    %153 = arith.subf %147, %152 : vector<8x128xf32>
    %154 = arith.mulf %153, %153 : vector<8x128xf32>
    %cst_70 = arith.constant dense<0.000000e+00> : vector<1x128xf32>
    %155 = tpu.matmul %148, %154, %cst_70 {dimension_numbers = #tpu.dot_dimension_numbers<[1], [0], [0], [1], [0, 0, 1, 1], [], []>, precision = #tpu.contract_precision<fp32>} : vector<1x8xf32>, vector<8x128xf32>, vector<1x128xf32> -> vector<1x128xf32>
    %cst_71 = arith.constant 1.250000e-01 : f32
    %156 = vector.broadcast %cst_71 : f32 to vector<1x128xf32>
    %157 = arith.mulf %155, %156 : vector<1x128xf32>
    %cst_72 = arith.constant 9.99999974E-6 : f32
    %158 = vector.broadcast %cst_72 : f32 to vector<1x128xf32>
    %159 = arith.addf %157, %158 : vector<1x128xf32>
    %160 = math.rsqrt %159 : vector<1x128xf32>
    %161 = vector.broadcast %160 : vector<1x128xf32> to vector<8x128xf32>
    %162 = arith.mulf %153, %161 : vector<8x128xf32>
    %c0_73 = arith.constant 0 : index
    %c15 = arith.constant 15 : index
    %163 = vector.load %arg2[%c0_73, %c15] : memref<32x128xf32, #tpu.memory_space<vmem>>, vector<8x1xf32>
    %164 = vector.broadcast %163 : vector<8x1xf32> to vector<8x128xf32>
    %165 = arith.mulf %162, %164 : vector<8x128xf32>
    %c0_74 = arith.constant 0 : index
    %c16 = arith.constant 16 : index
    %166 = vector.load %arg2[%c0_74, %c16] : memref<32x128xf32, #tpu.memory_space<vmem>>, vector<8x1xf32>
    %167 = vector.broadcast %166 : vector<8x1xf32> to vector<8x128xf32>
    %168 = arith.addf %165, %167 : vector<8x128xf32>
    %cst_75 = arith.constant 0.000000e+00 : f32
    %169 = vector.broadcast %cst_75 : f32 to vector<8x128xf32>
    %170 = arith.maximumf %168, %169 : vector<8x128xf32>
    %c152 = arith.constant 152 : index
    %c0_76 = arith.constant 0 : index
    %171 = vector.load %arg1[%c152, %c0_76] : memref<160x128xf32, #tpu.memory_space<vmem>>, vector<1x8xf32>
    %cst_77 = arith.constant dense<0.000000e+00> : vector<1x128xf32>
    %172 = tpu.matmul %171, %170, %cst_77 {dimension_numbers = #tpu.dot_dimension_numbers<[1], [0], [0], [1], [0, 0, 1, 1], [], []>, precision = #tpu.contract_precision<fp32>} : vector<1x8xf32>, vector<8x128xf32>, vector<1x128xf32> -> vector<1x128xf32>
    %c0_78 = arith.constant 0 : index
    %c5 = arith.constant 5 : index
    %173 = vector.load %arg2[%c0_78, %c5] : memref<32x128xf32, #tpu.memory_space<vmem>>, vector<1x1xf32>
    %174 = vector.broadcast %173 : vector<1x1xf32> to vector<1x128xf32>
    %175 = arith.addf %172, %174 : vector<1x128xf32>
    %c0_79 = arith.constant 0 : index
    %c0_80 = arith.constant 0 : index
    %176 = vector.load %arg5[%c0_79, %c0_80] : memref<1x128xf32, #tpu.memory_space<vmem>>, vector<1x128xf32>
    tpu.vector_store %arg5[%c0_79, %c0_80], %175 {strides = array<i32>} : memref<1x128xf32, #tpu.memory_space<vmem>>, vector<1x128xf32>,
    return
  }
  func.func @transform_0(%arg0: i32) -> (i32, i32) {
    %c0_i32 = arith.constant 0 : i32
    %c0_i32_0 = arith.constant 0 : i32
    %c0_i32_1 = arith.constant 0 : i32
    return %c0_i32, %c0_i32_0 : i32, i32
  }
  func.func @transform_1(%arg0: i32) -> (i32, i32) {
    %c0_i32 = arith.constant 0 : i32
    %c0_i32_0 = arith.constant 0 : i32
    %c0_i32_1 = arith.constant 0 : i32
    return %c0_i32, %c0_i32_0 : i32, i32
  }
  func.func @transform_2(%arg0: i32) -> (i32, i32) {
    %c0_i32 = arith.constant 0 : i32
    %c0_i32_0 = arith.constant 0 : i32
    return %arg0, %c0_i32 : i32, i32
  }
  func.func @transform_3(%arg0: i32) -> (i32, i32) {
    %c0_i32 = arith.constant 0 : i32
    %c0_i32_0 = arith.constant 0 : i32
    return %arg0, %c0_i32 : i32, i32
  }
  func.func @transform_4(%arg0: i32) -> (i32, i32) {
    %c0_i32 = arith.constant 0 : i32
    %c0_i32_0 = arith.constant 0 : i32
    return %c0_i32, %arg0 : i32, i32
  }
}

</mosaic_0001>

<llo_original>
// kernel: _forward.1
$region0: #{_forward.1}
  #allocation0 [shape = 'u32[]', space=smem, size = 0x4, offset = 0x4, fixed_abs, tag = 'smem constant byte address 0x4 - core index']
  #allocation1 [shape = 'u32[72,128]{1,0:T(1,128)}', space=vmem, size = 0x9000, scoped, tag = 'internal scratch']
  %s0 = inlined_call_operand.vmem [shape: f32[160,128], index: 0, kind: input, shape index: {}]
  %s1 = inlined_call_operand.vmem [shape: f32[32,128], index: 1, kind: input, shape index: {}]
  %s2 = inlined_call_operand.vmem [shape: f32[128,10], index: 2, kind: input, shape index: {}]
  %s3 = inlined_call_operand.vmem [shape: f32[128,6], index: 3, kind: input, shape index: {}]
  %s4 = inlined_call_operand.vmem [shape: f32[1,128], index: 4, kind: output, shape index: {}]
  %s5 = sld [smem:[#allocation0]]
  $region26: #{_forward.1} parent=0
    _
  %s7 = ssub.s32 1, %s5
  %s8 = scalar_select 0, %s7, %s5
  // Predicated region
  $region2: #{_forward.1} parent=0 // pred_check
    _
  $region3: #{_forward.1} parent=0 // pred_check_branch
    %10 = sbr.rel (0) target = $region5
  $region4: #{_forward.1} parent=0 // pred_region
    _
  $region5: #{_forward.1} parent=0 // pred_fallthru
    _
  // Predicated region
  $region6: #{_forward.1} parent=0 // pred_check
    _
  $region7: #{_forward.1} parent=0 // pred_check_branch
    %12 = sbr.rel (0) target = $region9
  $region8: #{_forward.1} parent=0 // pred_region
    _
  $region9: #{_forward.1} parent=0 // pred_fallthru
    _
  // Predicated region
  $region10: #{_forward.1} parent=0 // pred_check
    _
  $region11: #{_forward.1} parent=0 // pred_check_branch
    %14 = sbr.rel (0) target = $region13
  $region12: #{_forward.1} parent=0 // pred_region
    _
  $region13: #{_forward.1} parent=0 // pred_fallthru
    _
  // Predicated region
  $region14: #{_forward.1} parent=0 // pred_check
    _
  $region15: #{_forward.1} parent=0 // pred_check_branch
    %16 = sbr.rel (0) target = $region17
  $region16: #{_forward.1} parent=0 // pred_region
    _
  $region17: #{_forward.1} parent=0 // pred_fallthru
    _
  %v17 = vld [vmem:[%s2] sm:$0xff]
  %v18 = vld [vmem:[%s2 + $0x8] sm:$0xff]
  %v19 = vld [vmem:[%s2 + $0x10] sm:$0xff]
  %v20 = vld [vmem:[%s2 + $0x18] sm:$0xff]
  %v21 = vld [vmem:[%s2 + $0x20] sm:$0xff]
  %v22 = vld [vmem:[%s2 + $0x28] sm:$0xff]
  %v23 = vld [vmem:[%s2 + $0x30] sm:$0xff]
  %v24 = vld [vmem:[%s2 + $0x38] sm:$0xff]
  %v25 = vld [vmem:[%s2 + $0x40] sm:$0xff]
  %v26 = vld [vmem:[%s2 + $0x48] sm:$0xff]
  %v27 = vld [vmem:[%s2 + $0x50] sm:$0xff]
  %v28 = vld [vmem:[%s2 + $0x58] sm:$0xff]
  %v29 = vld [vmem:[%s2 + $0x60] sm:$0xff]
  %v30 = vld [vmem:[%s2 + $0x68] sm:$0xff]
  %v31 = vld [vmem:[%s2 + $0x70] sm:$0xff]
  %v32 = vld [vmem:[%s2 + $0x78] sm:$0xff]
  %v33 = vld [vmem:[%s3] sm:$0xff]
  %v34 = vld [vmem:[%s3 + $0x8] sm:$0xff]
  %v35 = vld [vmem:[%s3 + $0x10] sm:$0xff]
  %v36 = vld [vmem:[%s3 + $0x18] sm:$0xff]
  %v37 = vld [vmem:[%s3 + $0x20] sm:$0xff]
  %v38 = vld [vmem:[%s3 + $0x28] sm:$0xff]
  %v39 = vld [vmem:[%s3 + $0x30] sm:$0xff]
  %v40 = vld [vmem:[%s3 + $0x38] sm:$0xff]
  %v41 = vld [vmem:[%s3 + $0x40] sm:$0xff]
  %v42 = vld [vmem:[%s3 + $0x48] sm:$0xff]
  %v43 = vld [vmem:[%s3 + $0x50] sm:$0xff]
  %v44 = vld [vmem:[%s3 + $0x58] sm:$0xff]
  %v45 = vld [vmem:[%s3 + $0x60] sm:$0xff]
  %v46 = vld [vmem:[%s3 + $0x68] sm:$0xff]
  %v47 = vld [vmem:[%s3 + $0x70] sm:$0xff]
  %v48 = vld [vmem:[%s3 + $0x78] sm:$0xff]
  %vm49 = vcmask 48128
  %v51 = vsel %vm49, 1.0, 0
  %v54 = vsel %vm49, %v33, 0
  %v57 = vsel %vm49, %v34, 0
  %v60 = vsel %vm49, %v35, 0
  %v63 = vsel %vm49, %v36, 0
  %v66 = vsel %vm49, %v37, 0
  %v69 = vsel %vm49, %v38, 0
  %v72 = vsel %vm49, %v39, 0
  %v75 = vsel %vm49, %v40, 0
  %v78 = vsel %vm49, %v41, 0
  %v81 = vsel %vm49, %v42, 0
  %v84 = vsel %vm49, %v43, 0
  %v87 = vsel %vm49, %v44, 0
  %v90 = vsel %vm49, %v45, 0
  %v93 = vsel %vm49, %v46, 0
  %v96 = vsel %vm49, %v47, 0
  %v99 = vsel %vm49, %v48, 0
  %v101 = vand.u32 %v99, 4294901760
  %102 = vmatpush.xpose.msra.mxu0 %v101
  %v103 = vand.u32 %v96, 4294901760
  %104 = vmatpush.xpose.msra.mxu0 %v103
  %v105 = vand.u32 %v93, 4294901760
  %106 = vmatpush.xpose.msra.mxu0 %v105
  %v107 = vand.u32 %v90, 4294901760
  %108 = vmatpush.xpose.msra.mxu0 %v107
  %v109 = vand.u32 %v87, 4294901760
  %110 = vmatpush.xpose.msra.mxu0 %v109
  %v111 = vand.u32 %v84, 4294901760
  %112 = vmatpush.xpose.msra.mxu0 %v111
  %v113 = vand.u32 %v81, 4294901760
  %114 = vmatpush.xpose.msra.mxu0 %v113
  %v115 = vand.u32 %v78, 4294901760
  %116 = vmatpush.xpose.msra.mxu0 %v115
  %v117 = vand.u32 %v75, 4294901760
  %118 = vmatpush.xpose.msra.mxu0 %v117
  %v119 = vand.u32 %v72, 4294901760
  %120 = vmatpush.xpose.msra.mxu0 %v119
  %v121 = vand.u32 %v69, 4294901760
  %122 = vmatpush.xpose.msra.mxu0 %v121
  %v123 = vand.u32 %v66, 4294901760
  %124 = vmatpush.xpose.msra.mxu0 %v123
  %v125 = vand.u32 %v63, 4294901760
  %126 = vmatpush.xpose.msra.mxu0 %v125
  %v127 = vand.u32 %v60, 4294901760
  %128 = vmatpush.xpose.msra.mxu0 %v127
  %v129 = vand.u32 %v57, 4294901760
  %130 = vmatpush.xpose.msra.mxu0 %v129
  %v131 = vand.u32 %v54, 4294901760
  %132 = vmatpush.xpose.msra.mxu0 %v131
  %v133 = vand.u32 %v51, 4294901760
  %v134 = vsub.f32 %v51, %v133
  %v135 = vand.u32 %v134, 4294901760
  %v136 = vsub.f32 %v134, %v135
  %v137 = vand.u32 %v136, 4294901760
  %138 = vmatmul.f32.gmra.mxu0 %v137
  %v139 = vpop.f32.mrf.mxu0
  %v140 = vadd.f32 0.0, %v139
  %141 = vdwg.mxu0
  %v142 = vand.u32 %v99, 4294901760
  %v143 = vsub.f32 %v99, %v142
  %v144 = vand.u32 %v143, 4294901760
  %v145 = vsub.f32 %v143, %v144
  %v146 = vand.u32 %v145, 4294901760
  %147 = vmatpush.xpose.msra.mxu0 %v146
  %v148 = vand.u32 %v96, 4294901760
  %v149 = vsub.f32 %v96, %v148
  %v150 = vand.u32 %v149, 4294901760
  %v151 = vsub.f32 %v149, %v150
  %v152 = vand.u32 %v151, 4294901760
  %153 = vmatpush.xpose.msra.mxu0 %v152
  %v154 = vand.u32 %v93, 4294901760
  %v155 = vsub.f32 %v93, %v154
  %v156 = vand.u32 %v155, 4294901760
  %v157 = vsub.f32 %v155, %v156
  %v158 = vand.u32 %v157, 4294901760
  %159 = vmatpush.xpose.msra.mxu0 %v158
  %v160 = vand.u32 %v90, 4294901760
  %v161 = vsub.f32 %v90, %v160
  %v162 = vand.u32 %v161, 4294901760
  %v163 = vsub.f32 %v161, %v162
  %v164 = vand.u32 %v163, 4294901760
  %165 = vmatpush.xpose.msra.mxu0 %v164
  %v166 = vand.u32 %v87, 4294901760
  %v167 = vsub.f32 %v87, %v166
  %v168 = vand.u32 %v167, 4294901760
  %v169 = vsub.f32 %v167, %v168
  %v170 = vand.u32 %v169, 4294901760
  %171 = vmatpush.xpose.msra.mxu0 %v170
  %v172 = vand.u32 %v84, 4294901760
  %v173 = vsub.f32 %v84, %v172
  %v174 = vand.u32 %v173, 4294901760
  %v175 = vsub.f32 %v173, %v174
  %v176 = vand.u32 %v175, 4294901760
  %177 = vmatpush.xpose.msra.mxu0 %v176
  %v178 = vand.u32 %v81, 4294901760
  %v179 = vsub.f32 %v81, %v178
  %v180 = vand.u32 %v179, 4294901760
  %v181 = vsub.f32 %v179, %v180
  %v182 = vand.u32 %v181, 4294901760
  %183 = vmatpush.xpose.msra.mxu0 %v182
  %v184 = vand.u32 %v78, 4294901760
  %v185 = vsub.f32 %v78, %v184
  %v186 = vand.u32 %v185, 4294901760
  %v187 = vsub.f32 %v185, %v186
  %v188 = vand.u32 %v187, 4294901760
  %189 = vmatpush.xpose.msra.mxu0 %v188
  %v190 = vand.u32 %v75, 4294901760
  %v191 = vsub.f32 %v75, %v190
  %v192 = vand.u32 %v191, 4294901760
  %v193 = vsub.f32 %v191, %v192
  %v194 = vand.u32 %v193, 4294901760
  %195 = vmatpush.xpose.msra.mxu0 %v194
  %v196 = vand.u32 %v72, 4294901760
  %v197 = vsub.f32 %v72, %v196
  %v198 = vand.u32 %v197, 4294901760
  %v199 = vsub.f32 %v197, %v198
  %v200 = vand.u32 %v199, 4294901760
  %201 = vmatpush.xpose.msra.mxu0 %v200
  %v202 = vand.u32 %v69, 4294901760
  %v203 = vsub.f32 %v69, %v202
  %v204 = vand.u32 %v203, 4294901760
  %v205 = vsub.f32 %v203, %v204
  %v206 = vand.u32 %v205, 4294901760
  %207 = vmatpush.xpose.msra.mxu0 %v206
  %v208 = vand.u32 %v66, 4294901760
  %v209 = vsub.f32 %v66, %v208
  %v210 = vand.u32 %v209, 4294901760
  %v211 = vsub.f32 %v209, %v210
  %v212 = vand.u32 %v211, 4294901760
  %213 = vmatpush.xpose.msra.mxu0 %v212
  %v214 = vand.u32 %v63, 4294901760
  %v215 = vsub.f32 %v63, %v214
  %v216 = vand.u32 %v215, 4294901760
  %v217 = vsub.f32 %v215, %v216
  %v218 = vand.u32 %v217, 4294901760
  %219 = vmatpush.xpose.msra.mxu0 %v218
  %v220 = vand.u32 %v60, 4294901760
  %v221 = vsub.f32 %v60, %v220
  %v222 = vand.u32 %v221, 4294901760
  %v223 = vsub.f32 %v221, %v222
  %v224 = vand.u32 %v223, 4294901760
  %225 = vmatpush.xpose.msra.mxu0 %v224
  %v226 = vand.u32 %v57, 4294901760
  %v227 = vsub.f32 %v57, %v226
  %v228 = vand.u32 %v227, 4294901760
  %v229 = vsub.f32 %v227, %v228
  %v230 = vand.u32 %v229, 4294901760
  %231 = vmatpush.xpose.msra.mxu0 %v230
  %v232 = vand.u32 %v54, 4294901760
  %v233 = vsub.f32 %v54, %v232
  %v234 = vand.u32 %v233, 4294901760
  %v235 = vsub.f32 %v233, %v234
  %v236 = vand.u32 %v235, 4294901760
  %237 = vmatpush.xpose.msra.mxu0 %v236
  %v238 = vand.u32 %v51, 4294901760
  %239 = vmatmul.f32.gmra.mxu0 %v238
  %v240 = vpop.f32.mrf.mxu0
  %v241 = vadd.f32 %v140, %v240
  %242 = vdwg.mxu0
  %v243 = vand.u32 %v99, 4294901760
  %v244 = vsub.f32 %v99, %v243
  %245 = vmatpush.xpose.msra.mxu0 %v244
  %v246 = vand.u32 %v96, 4294901760
  %v247 = vsub.f32 %v96, %v246
  %248 = vmatpush.xpose.msra.mxu0 %v247
  %v249 = vand.u32 %v93, 4294901760
  %v250 = vsub.f32 %v93, %v249
  %251 = vmatpush.xpose.msra.mxu0 %v250
  %v252 = vand.u32 %v90, 4294901760
  %v253 = vsub.f32 %v90, %v252
  %254 = vmatpush.xpose.msra.mxu0 %v253
  %v255 = vand.u32 %v87, 4294901760
  %v256 = vsub.f32 %v87, %v255
  %257 = vmatpush.xpose.msra.mxu0 %v256
  %v258 = vand.u32 %v84, 4294901760
  %v259 = vsub.f32 %v84, %v258
  %260 = vmatpush.xpose.msra.mxu0 %v259
  %v261 = vand.u32 %v81, 4294901760
  %v262 = vsub.f32 %v81, %v261
  %263 = vmatpush.xpose.msra.mxu0 %v262
  %v264 = vand.u32 %v78, 4294901760
  %v265 = vsub.f32 %v78, %v264
  %266 = vmatpush.xpose.msra.mxu0 %v265
  %v267 = vand.u32 %v75, 4294901760
  %v268 = vsub.f32 %v75, %v267
  %269 = vmatpush.xpose.msra.mxu0 %v268
  %v270 = vand.u32 %v72, 4294901760
  %v271 = vsub.f32 %v72, %v270
  %272 = vmatpush.xpose.msra.mxu0 %v271
  %v273 = vand.u32 %v69, 4294901760
  %v274 = vsub.f32 %v69, %v273
  %275 = vmatpush.xpose.msra.mxu0 %v274
  %v276 = vand.u32 %v66, 4294901760
  %v277 = vsub.f32 %v66, %v276
  %278 = vmatpush.xpose.msra.mxu0 %v277
  %v279 = vand.u32 %v63, 4294901760
  %v280 = vsub.f32 %v63, %v279
  %281 = vmatpush.xpose.msra.mxu0 %v280
  %v282 = vand.u32 %v60, 4294901760
  %v283 = vsub.f32 %v60, %v282
  %284 = vmatpush.xpose.msra.mxu0 %v283
  %v285 = vand.u32 %v57, 4294901760
  %v286 = vsub.f32 %v57, %v285
  %287 = vmatpush.xpose.msra.mxu0 %v286
  %v288 = vand.u32 %v54, 4294901760
  %v289 = vsub.f32 %v54, %v288
  %290 = vmatpush.xpose.msra.mxu0 %v289
  %v291 = vand.u32 %v51, 4294901760
  %v292 = vsub.f32 %v51, %v291
  %293 = vmatmul.f32.gmra.mxu0 %v292
  %v294 = vpop.f32.mrf.mxu0
  %v295 = vadd.f32 %v241, %v294
  %296 = vdwg.mxu0
  %v297 = vand.u32 %v99, 4294901760
  %298 = vmatpush.xpose.msra.mxu0 %v297
  %v299 = vand.u32 %v96, 4294901760
  %300 = vmatpush.xpose.msra.mxu0 %v299
  %v301 = vand.u32 %v93, 4294901760
  %302 = vmatpush.xpose.msra.mxu0 %v301
  %v303 = vand.u32 %v90, 4294901760
  %304 = vmatpush.xpose.msra.mxu0 %v303
  %v305 = vand.u32 %v87, 4294901760
  %306 = vmatpush.xpose.msra.mxu0 %v305
  %v307 = vand.u32 %v84, 4294901760
  %308 = vmatpush.xpose.msra.mxu0 %v307
  %v309 = vand.u32 %v81, 4294901760
  %310 = vmatpush.xpose.msra.mxu0 %v309
  %v311 = vand.u32 %v78, 4294901760
  %312 = vmatpush.xpose.msra.mxu0 %v311
  %v313 = vand.u32 %v75, 4294901760
  %314 = vmatpush.xpose.msra.mxu0 %v313
  %v315 = vand.u32 %v72, 4294901760
  %316 = vmatpush.xpose.msra.mxu0 %v315
  %v317 = vand.u32 %v69, 4294901760
  %318 = vmatpush.xpose.msra.mxu0 %v317
  %v319 = vand.u32 %v66, 4294901760
  %320 = vmatpush.xpose.msra.mxu0 %v319
  %v321 = vand.u32 %v63, 4294901760
  %322 = vmatpush.xpose.msra.mxu0 %v321
  %v323 = vand.u32 %v60, 4294901760
  %324 = vmatpush.xpose.msra.mxu0 %v323
  %v325 = vand.u32 %v57, 4294901760
  %326 = vmatpush.xpose.msra.mxu0 %v325
  %v327 = vand.u32 %v54, 4294901760
  %328 = vmatpush.xpose.msra.mxu0 %v327
  %v329 = vand.u32 %v51, 4294901760
  %v330 = vsub.f32 %v51, %v329
  %v331 = vand.u32 %v330, 4294901760
  %332 = vmatmul.f32.gmra.mxu0 %v331
  %v333 = vpop.f32.mrf.mxu0
  %v334 = vadd.f32 %v295, %v333
  %335 = vdwg.mxu0
  %v336 = vand.u32 %v99, 4294901760
  %v337 = vsub.f32 %v99, %v336
  %v338 = vand.u32 %v337, 4294901760
  %339 = vmatpush.xpose.msra.mxu0 %v338
  %v340 = vand.u32 %v96, 4294901760
  %v341 = vsub.f32 %v96, %v340
  %v342 = vand.u32 %v341, 4294901760
  %343 = vmatpush.xpose.msra.mxu0 %v342
  %v344 = vand.u32 %v93, 4294901760
  %v345 = vsub.f32 %v93, %v344
  %v346 = vand.u32 %v345, 4294901760
  %347 = vmatpush.xpose.msra.mxu0 %v346
  %v348 = vand.u32 %v90, 4294901760
  %v349 = vsub.f32 %v90, %v348
  %v350 = vand.u32 %v349, 4294901760
  %351 = vmatpush.xpose.msra.mxu0 %v350
  %v352 = vand.u32 %v87, 4294901760
  %v353 = vsub.f32 %v87, %v352
  %v354 = vand.u32 %v353, 4294901760
  %355 = vmatpush.xpose.msra.mxu0 %v354
  %v356 = vand.u32 %v84, 4294901760
  %v357 = vsub.f32 %v84, %v356
  %v358 = vand.u32 %v357, 4294901760
  %359 = vmatpush.xpose.msra.mxu0 %v358
  %v360 = vand.u32 %v81, 4294901760
  %v361 = vsub.f32 %v81, %v360
  %v362 = vand.u32 %v361, 4294901760
  %363 = vmatpush.xpose.msra.mxu0 %v362
  %v364 = vand.u32 %v78, 4294901760
  %v365 = vsub.f32 %v78, %v364
  %v366 = vand.u32 %v365, 4294901760
  %367 = vmatpush.xpose.msra.mxu0 %v366
  %v368 = vand.u32 %v75, 4294901760
  %v369 = vsub.f32 %v75, %v368
  %v370 = vand.u32 %v369, 4294901760
  %371 = vmatpush.xpose.msra.mxu0 %v370
  %v372 = vand.u32 %v72, 4294901760
  %v373 = vsub.f32 %v72, %v372
  %v374 = vand.u32 %v373, 4294901760
  %375 = vmatpush.xpose.msra.mxu0 %v374
  %v376 = vand.u32 %v69, 4294901760
  %v377 = vsub.f32 %v69, %v376
  %v378 = vand.u32 %v377, 4294901760
  %379 = vmatpush.xpose.msra.mxu0 %v378
  %v380 = vand.u32 %v66, 4294901760
  %v381 = vsub.f32 %v66, %v380
  %v382 = vand.u32 %v381, 4294901760
  %383 = vmatpush.xpose.msra.mxu0 %v382
  %v384 = vand.u32 %v63, 4294901760
  %v385 = vsub.f32 %v63, %v384
  %v386 = vand.u32 %v385, 4294901760
  %387 = vmatpush.xpose.msra.mxu0 %v386
  %v388 = vand.u32 %v60, 4294901760
  %v389 = vsub.f32 %v60, %v388
  %v390 = vand.u32 %v389, 4294901760
  %391 = vmatpush.xpose.msra.mxu0 %v390
  %v392 = vand.u32 %v57, 4294901760
  %v393 = vsub.f32 %v57, %v392
  %v394 = vand.u32 %v393, 4294901760
  %395 = vmatpush.xpose.msra.mxu0 %v394
  %v396 = vand.u32 %v54, 4294901760
  %v397 = vsub.f32 %v54, %v396
  %v398 = vand.u32 %v397, 4294901760
  %399 = vmatpush.xpose.msra.mxu0 %v398
  %v400 = vand.u32 %v51, 4294901760
  %401 = vmatmul.f32.gmra.mxu0 %v400
  %v402 = vpop.f32.mrf.mxu0
  %v403 = vadd.f32 %v334, %v402
  %404 = vdwg.mxu0
  %v405 = vand.u32 %v99, 4294901760
  %406 = vmatpush.xpose.msra.mxu0 %v405
  %v407 = vand.u32 %v96, 4294901760
  %408 = vmatpush.xpose.msra.mxu0 %v407
  %v409 = vand.u32 %v93, 4294901760
  %410 = vmatpush.xpose.msra.mxu0 %v409
  %v411 = vand.u32 %v90, 4294901760
  %412 = vmatpush.xpose.msra.mxu0 %v411
  %v413 = vand.u32 %v87, 4294901760
  %414 = vmatpush.xpose.msra.mxu0 %v413
  %v415 = vand.u32 %v84, 4294901760
  %416 = vmatpush.xpose.msra.mxu0 %v415
  %v417 = vand.u32 %v81, 4294901760
  %418 = vmatpush.xpose.msra.mxu0 %v417
  %v419 = vand.u32 %v78, 4294901760
  %420 = vmatpush.xpose.msra.mxu0 %v419
  %v421 = vand.u32 %v75, 4294901760
  %422 = vmatpush.xpose.msra.mxu0 %v421
  %v423 = vand.u32 %v72, 4294901760
  %424 = vmatpush.xpose.msra.mxu0 %v423
  %v425 = vand.u32 %v69, 4294901760
  %426 = vmatpush.xpose.msra.mxu0 %v425
  %v427 = vand.u32 %v66, 4294901760
  %428 = vmatpush.xpose.msra.mxu0 %v427
  %v429 = vand.u32 %v63, 4294901760
  %430 = vmatpush.xpose.msra.mxu0 %v429
  %v431 = vand.u32 %v60, 4294901760
  %432 = vmatpush.xpose.msra.mxu0 %v431
  %v433 = vand.u32 %v57, 4294901760
  %434 = vmatpush.xpose.msra.mxu0 %v433
  %v435 = vand.u32 %v54, 4294901760
  %436 = vmatpush.xpose.msra.mxu0 %v435
  %v437 = vand.u32 %v51, 4294901760
  %438 = vmatmul.f32.gmra.mxu0 %v437
  %v439 = vpop.f32.mrf.mxu0
  %v440 = vadd.f32 %v403, %v439
  %441 = vdwg.mxu0
  %vm442 = vcmask 80896
  %v443 = vsel %vm442, 1.0, 0
  %v446 = vsel %vm442, %v17, 0
  %v449 = vsel %vm442, %v18, 0
  %v452 = vsel %vm442, %v19, 0
  %v455 = vsel %vm442, %v20, 0
  %v458 = vsel %vm442, %v21, 0
  %v461 = vsel %vm442, %v22, 0
  %v464 = vsel %vm442, %v23, 0
  %v467 = vsel %vm442, %v24, 0
  %v470 = vsel %vm442, %v25, 0
  %v473 = vsel %vm442, %v26, 0
  %v476 = vsel %vm442, %v27, 0
  %v479 = vsel %vm442, %v28, 0
  %v482 = vsel %vm442, %v29, 0
  %v485 = vsel %vm442, %v30, 0
  %v488 = vsel %vm442, %v31, 0
  %v491 = vsel %vm442, %v32, 0
  %v493 = vand.u32 %v491, 4294901760
  %494 = vmatpush.xpose.msra.mxu0 %v493
  %v495 = vand.u32 %v488, 4294901760
  %496 = vmatpush.xpose.msra.mxu0 %v495
  %v497 = vand.u32 %v485, 4294901760
  %498 = vmatpush.xpose.msra.mxu0 %v497
  %v499 = vand.u32 %v482, 4294901760
  %500 = vmatpush.xpose.msra.mxu0 %v499
  %v501 = vand.u32 %v479, 4294901760
  %502 = vmatpush.xpose.msra.mxu0 %v501
  %v503 = vand.u32 %v476, 4294901760
  %504 = vmatpush.xpose.msra.mxu0 %v503
  %v505 = vand.u32 %v473, 4294901760
  %506 = vmatpush.xpose.msra.mxu0 %v505
  %v507 = vand.u32 %v470, 4294901760
  %508 = vmatpush.xpose.msra.mxu0 %v507
  %v509 = vand.u32 %v467, 4294901760
  %510 = vmatpush.xpose.msra.mxu0 %v509
  %v511 = vand.u32 %v464, 4294901760
  %512 = vmatpush.xpose.msra.mxu0 %v511
  %v513 = vand.u32 %v461, 4294901760
  %514 = vmatpush.xpose.msra.mxu0 %v513
  %v515 = vand.u32 %v458, 4294901760
  %516 = vmatpush.xpose.msra.mxu0 %v515
  %v517 = vand.u32 %v455, 4294901760
  %518 = vmatpush.xpose.msra.mxu0 %v517
  %v519 = vand.u32 %v452, 4294901760
  %520 = vmatpush.xpose.msra.mxu0 %v519
  %v521 = vand.u32 %v449, 4294901760
  %522 = vmatpush.xpose.msra.mxu0 %v521
  %v523 = vand.u32 %v446, 4294901760
  %524 = vmatpush.xpose.msra.mxu0 %v523
  %v525 = vand.u32 %v443, 4294901760
  %v526 = vsub.f32 %v443, %v525
  %v527 = vand.u32 %v526, 4294901760
  %v528 = vsub.f32 %v526, %v527
  %v529 = vand.u32 %v528, 4294901760
  %530 = vmatmul.f32.gmra.mxu0 %v529
  %v531 = vpop.f32.mrf.mxu0
  %v532 = vadd.f32 %v440, %v531
  %533 = vdwg.mxu0
  %v534 = vand.u32 %v491, 4294901760
  %v535 = vsub.f32 %v491, %v534
  %v536 = vand.u32 %v535, 4294901760
  %v537 = vsub.f32 %v535, %v536
  %v538 = vand.u32 %v537, 4294901760
  %539 = vmatpush.xpose.msra.mxu0 %v538
  %v540 = vand.u32 %v488, 4294901760
  %v541 = vsub.f32 %v488, %v540
  %v542 = vand.u32 %v541, 4294901760
  %v543 = vsub.f32 %v541, %v542
  %v544 = vand.u32 %v543, 4294901760
  %545 = vmatpush.xpose.msra.mxu0 %v544
  %v546 = vand.u32 %v485, 4294901760
  %v547 = vsub.f32 %v485, %v546
  %v548 = vand.u32 %v547, 4294901760
  %v549 = vsub.f32 %v547, %v548
  %v550 = vand.u32 %v549, 4294901760
  %551 = vmatpush.xpose.msra.mxu0 %v550
  %v552 = vand.u32 %v482, 4294901760
  %v553 = vsub.f32 %v482, %v552
  %v554 = vand.u32 %v553, 4294901760
  %v555 = vsub.f32 %v553, %v554
  %v556 = vand.u32 %v555, 4294901760
  %557 = vmatpush.xpose.msra.mxu0 %v556
  %v558 = vand.u32 %v479, 4294901760
  %v559 = vsub.f32 %v479, %v558
  %v560 = vand.u32 %v559, 4294901760
  %v561 = vsub.f32 %v559, %v560
  %v562 = vand.u32 %v561, 4294901760
  %563 = vmatpush.xpose.msra.mxu0 %v562
  %v564 = vand.u32 %v476, 4294901760
  %v565 = vsub.f32 %v476, %v564
  %v566 = vand.u32 %v565, 4294901760
  %v567 = vsub.f32 %v565, %v566
  %v568 = vand.u32 %v567, 4294901760
  %569 = vmatpush.xpose.msra.mxu0 %v568
  %v570 = vand.u32 %v473, 4294901760
  %v571 = vsub.f32 %v473, %v570
  %v572 = vand.u32 %v571, 4294901760
  %v573 = vsub.f32 %v571, %v572
  %v574 = vand.u32 %v573, 4294901760
  %575 = vmatpush.xpose.msra.mxu0 %v574
  %v576 = vand.u32 %v470, 4294901760
  %v577 = vsub.f32 %v470, %v576
  %v578 = vand.u32 %v577, 4294901760
  %v579 = vsub.f32 %v577, %v578
  %v580 = vand.u32 %v579, 4294901760
  %581 = vmatpush.xpose.msra.mxu0 %v580
  %v582 = vand.u32 %v467, 4294901760
  %v583 = vsub.f32 %v467, %v582
  %v584 = vand.u32 %v583, 4294901760
  %v585 = vsub.f32 %v583, %v584
  %v586 = vand.u32 %v585, 4294901760
  %587 = vmatpush.xpose.msra.mxu0 %v586
  %v588 = vand.u32 %v464, 4294901760
  %v589 = vsub.f32 %v464, %v588
  %v590 = vand.u32 %v589, 4294901760
  %v591 = vsub.f32 %v589, %v590
  %v592 = vand.u32 %v591, 4294901760
  %593 = vmatpush.xpose.msra.mxu0 %v592
  %v594 = vand.u32 %v461, 4294901760
  %v595 = vsub.f32 %v461, %v594
  %v596 = vand.u32 %v595, 4294901760
  %v597 = vsub.f32 %v595, %v596
  %v598 = vand.u32 %v597, 4294901760
  %599 = vmatpush.xpose.msra.mxu0 %v598
  %v600 = vand.u32 %v458, 4294901760
  %v601 = vsub.f32 %v458, %v600
  %v602 = vand.u32 %v601, 4294901760
  %v603 = vsub.f32 %v601, %v602
  %v604 = vand.u32 %v603, 4294901760
  %605 = vmatpush.xpose.msra.mxu0 %v604
  %v606 = vand.u32 %v455, 4294901760
  %v607 = vsub.f32 %v455, %v606
  %v608 = vand.u32 %v607, 4294901760
  %v609 = vsub.f32 %v607, %v608
  %v610 = vand.u32 %v609, 4294901760
  %611 = vmatpush.xpose.msra.mxu0 %v610
  %v612 = vand.u32 %v452, 4294901760
  %v613 = vsub.f32 %v452, %v612
  %v614 = vand.u32 %v613, 4294901760
  %v615 = vsub.f32 %v613, %v614
  %v616 = vand.u32 %v615, 4294901760
  %617 = vmatpush.xpose.msra.mxu0 %v616
  %v618 = vand.u32 %v449, 4294901760
  %v619 = vsub.f32 %v449, %v618
  %v620 = vand.u32 %v619, 4294901760
  %v621 = vsub.f32 %v619, %v620
  %v622 = vand.u32 %v621, 4294901760
  %623 = vmatpush.xpose.msra.mxu0 %v622
  %v624 = vand.u32 %v446, 4294901760
  %v625 = vsub.f32 %v446, %v624
  %v626 = vand.u32 %v625, 4294901760
  %v627 = vsub.f32 %v625, %v626
  %v628 = vand.u32 %v627, 4294901760
  %629 = vmatpush.xpose.msra.mxu0 %v628
  %v630 = vand.u32 %v443, 4294901760
  %631 = vmatmul.f32.gmra.mxu0 %v630
  %v632 = vpop.f32.mrf.mxu0
  %v633 = vadd.f32 %v532, %v632
  %634 = vdwg.mxu0
  %v635 = vand.u32 %v491, 4294901760
  %v636 = vsub.f32 %v491, %v635
  %637 = vmatpush.xpose.msra.mxu0 %v636
  %v638 = vand.u32 %v488, 4294901760
  %v639 = vsub.f32 %v488, %v638
  %640 = vmatpush.xpose.msra.mxu0 %v639
  %v641 = vand.u32 %v485, 4294901760
  %v642 = vsub.f32 %v485, %v641
  %643 = vmatpush.xpose.msra.mxu0 %v642
  %v644 = vand.u32 %v482, 4294901760
  %v645 = vsub.f32 %v482, %v644
  %646 = vmatpush.xpose.msra.mxu0 %v645
  %v647 = vand.u32 %v479, 4294901760
  %v648 = vsub.f32 %v479, %v647
  %649 = vmatpush.xpose.msra.mxu0 %v648
  %v650 = vand.u32 %v476, 4294901760
  %v651 = vsub.f32 %v476, %v650
  %652 = vmatpush.xpose.msra.mxu0 %v651
  %v653 = vand.u32 %v473, 4294901760
  %v654 = vsub.f32 %v473, %v653
  %655 = vmatpush.xpose.msra.mxu0 %v654
  %v656 = vand.u32 %v470, 4294901760
  %v657 = vsub.f32 %v470, %v656
  %658 = vmatpush.xpose.msra.mxu0 %v657
  %v659 = vand.u32 %v467, 4294901760
  %v660 = vsub.f32 %v467, %v659
  %661 = vmatpush.xpose.msra.mxu0 %v660
  %v662 = vand.u32 %v464, 4294901760
  %v663 = vsub.f32 %v464, %v662
  %664 = vmatpush.xpose.msra.mxu0 %v663
  %v665 = vand.u32 %v461, 4294901760
  %v666 = vsub.f32 %v461, %v665
  %667 = vmatpush.xpose.msra.mxu0 %v666
  %v668 = vand.u32 %v458, 4294901760
  %v669 = vsub.f32 %v458, %v668
  %670 = vmatpush.xpose.msra.mxu0 %v669
  %v671 = vand.u32 %v455, 4294901760
  %v672 = vsub.f32 %v455, %v671
  %673 = vmatpush.xpose.msra.mxu0 %v672
  %v674 = vand.u32 %v452, 4294901760
  %v675 = vsub.f32 %v452, %v674
  %676 = vmatpush.xpose.msra.mxu0 %v675
  %v677 = vand.u32 %v449, 4294901760
  %v678 = vsub.f32 %v449, %v677
  %679 = vmatpush.xpose.msra.mxu0 %v678
  %v680 = vand.u32 %v446, 4294901760
  %v681 = vsub.f32 %v446, %v680
  %682 = vmatpush.xpose.msra.mxu0 %v681
  %v683 = vand.u32 %v443, 4294901760
  %v684 = vsub.f32 %v443, %v683
  %685 = vmatmul.f32.gmra.mxu0 %v684
  %v686 = vpop.f32.mrf.mxu0
  %v687 = vadd.f32 %v633, %v686
  %688 = vdwg.mxu0
  %v689 = vand.u32 %v491, 4294901760
  %690 = vmatpush.xpose.msra.mxu0 %v689
  %v691 = vand.u32 %v488, 4294901760
  %692 = vmatpush.xpose.msra.mxu0 %v691
  %v693 = vand.u32 %v485, 4294901760
  %694 = vmatpush.xpose.msra.mxu0 %v693
  %v695 = vand.u32 %v482, 4294901760
  %696 = vmatpush.xpose.msra.mxu0 %v695
  %v697 = vand.u32 %v479, 4294901760
  %698 = vmatpush.xpose.msra.mxu0 %v697
  %v699 = vand.u32 %v476, 4294901760
  %700 = vmatpush.xpose.msra.mxu0 %v699
  %v701 = vand.u32 %v473, 4294901760
  %702 = vmatpush.xpose.msra.mxu0 %v701
  %v703 = vand.u32 %v470, 4294901760
  %704 = vmatpush.xpose.msra.mxu0 %v703
  %v705 = vand.u32 %v467, 4294901760
  %706 = vmatpush.xpose.msra.mxu0 %v705
  %v707 = vand.u32 %v464, 4294901760
  %708 = vmatpush.xpose.msra.mxu0 %v707
  %v709 = vand.u32 %v461, 4294901760
  %710 = vmatpush.xpose.msra.mxu0 %v709
  %v711 = vand.u32 %v458, 4294901760
  %712 = vmatpush.xpose.msra.mxu0 %v711
  %v713 = vand.u32 %v455, 4294901760
  %714 = vmatpush.xpose.msra.mxu0 %v713
  %v715 = vand.u32 %v452, 4294901760
  %716 = vmatpush.xpose.msra.mxu0 %v715
  %v717 = vand.u32 %v449, 4294901760
  %718 = vmatpush.xpose.msra.mxu0 %v717
  %v719 = vand.u32 %v446, 4294901760
  %720 = vmatpush.xpose.msra.mxu0 %v719
  %v721 = vand.u32 %v443, 4294901760
  %v722 = vsub.f32 %v443, %v721
  %v723 = vand.u32 %v722, 4294901760
  %724 = vmatmul.f32.gmra.mxu0 %v723
  %v725 = vpop.f32.mrf.mxu0
  %v726 = vadd.f32 %v687, %v725
  %727 = vdwg.mxu0
  %v728 = vand.u32 %v491, 4294901760
  %v729 = vsub.f32 %v491, %v728
  %v730 = vand.u32 %v729, 4294901760
  %731 = vmatpush.xpose.msra.mxu0 %v730
  %v732 = vand.u32 %v488, 4294901760
  %v733 = vsub.f32 %v488, %v732
  %v734 = vand.u32 %v733, 4294901760
  %735 = vmatpush.xpose.msra.mxu0 %v734
  %v736 = vand.u32 %v485, 4294901760
  %v737 = vsub.f32 %v485, %v736
  %v738 = vand.u32 %v737, 4294901760
  %739 = vmatpush.xpose.msra.mxu0 %v738
  %v740 = vand.u32 %v482, 4294901760
  %v741 = vsub.f32 %v482, %v740
  %v742 = vand.u32 %v741, 4294901760
  %743 = vmatpush.xpose.msra.mxu0 %v742
  %v744 = vand.u32 %v479, 4294901760
  %v745 = vsub.f32 %v479, %v744
  %v746 = vand.u32 %v745, 4294901760
  %747 = vmatpush.xpose.msra.mxu0 %v746
  %v748 = vand.u32 %v476, 4294901760
  %v749 = vsub.f32 %v476, %v748
  %v750 = vand.u32 %v749, 4294901760
  %751 = vmatpush.xpose.msra.mxu0 %v750
  %v752 = vand.u32 %v473, 4294901760
  %v753 = vsub.f32 %v473, %v752
  %v754 = vand.u32 %v753, 4294901760
  %755 = vmatpush.xpose.msra.mxu0 %v754
  %v756 = vand.u32 %v470, 4294901760
  %v757 = vsub.f32 %v470, %v756
  %v758 = vand.u32 %v757, 4294901760
  %759 = vmatpush.xpose.msra.mxu0 %v758
  %v760 = vand.u32 %v467, 4294901760
  %v761 = vsub.f32 %v467, %v760
  %v762 = vand.u32 %v761, 4294901760
  %763 = vmatpush.xpose.msra.mxu0 %v762
  %v764 = vand.u32 %v464, 4294901760
  %v765 = vsub.f32 %v464, %v764
  %v766 = vand.u32 %v765, 4294901760
  %767 = vmatpush.xpose.msra.mxu0 %v766
  %v768 = vand.u32 %v461, 4294901760
  %v769 = vsub.f32 %v461, %v768
  %v770 = vand.u32 %v769, 4294901760
  %771 = vmatpush.xpose.msra.mxu0 %v770
  %v772 = vand.u32 %v458, 4294901760
  %v773 = vsub.f32 %v458, %v772
  %v774 = vand.u32 %v773, 4294901760
  %775 = vmatpush.xpose.msra.mxu0 %v774
  %v776 = vand.u32 %v455, 4294901760
  %v777 = vsub.f32 %v455, %v776
  %v778 = vand.u32 %v777, 4294901760
  %779 = vmatpush.xpose.msra.mxu0 %v778
  %v780 = vand.u32 %v452, 4294901760
  %v781 = vsub.f32 %v452, %v780
  %v782 = vand.u32 %v781, 4294901760
  %783 = vmatpush.xpose.msra.mxu0 %v782
  %v784 = vand.u32 %v449, 4294901760
  %v785 = vsub.f32 %v449, %v784
  %v786 = vand.u32 %v785, 4294901760
  %787 = vmatpush.xpose.msra.mxu0 %v786
  %v788 = vand.u32 %v446, 4294901760
  %v789 = vsub.f32 %v446, %v788
  %v790 = vand.u32 %v789, 4294901760
  %791 = vmatpush.xpose.msra.mxu0 %v790
  %v792 = vand.u32 %v443, 4294901760
  %793 = vmatmul.f32.gmra.mxu0 %v792
  %v794 = vpop.f32.mrf.mxu0
  %v795 = vadd.f32 %v726, %v794
  %796 = vdwg.mxu0
  %v797 = vand.u32 %v491, 4294901760
  %798 = vmatpush.xpose.msra.mxu0 %v797
  %v799 = vand.u32 %v488, 4294901760
  %800 = vmatpush.xpose.msra.mxu0 %v799
  %v801 = vand.u32 %v485, 4294901760
  %802 = vmatpush.xpose.msra.mxu0 %v801
  %v803 = vand.u32 %v482, 4294901760
  %804 = vmatpush.xpose.msra.mxu0 %v803
  %v805 = vand.u32 %v479, 4294901760
  %806 = vmatpush.xpose.msra.mxu0 %v805
  %v807 = vand.u32 %v476, 4294901760
  %808 = vmatpush.xpose.msra.mxu0 %v807
  %v809 = vand.u32 %v473, 4294901760
  %810 = vmatpush.xpose.msra.mxu0 %v809
  %v811 = vand.u32 %v470, 4294901760
  %812 = vmatpush.xpose.msra.mxu0 %v811
  %v813 = vand.u32 %v467, 4294901760
  %814 = vmatpush.xpose.msra.mxu0 %v813
  %v815 = vand.u32 %v464, 4294901760
  %816 = vmatpush.xpose.msra.mxu0 %v815
  %v817 = vand.u32 %v461, 4294901760
  %818 = vmatpush.xpose.msra.mxu0 %v817
  %v819 = vand.u32 %v458, 4294901760
  %820 = vmatpush.xpose.msra.mxu0 %v819
  %v821 = vand.u32 %v455, 4294901760
  %822 = vmatpush.xpose.msra.mxu0 %v821
  %v823 = vand.u32 %v452, 4294901760
  %824 = vmatpush.xpose.msra.mxu0 %v823
  %v825 = vand.u32 %v449, 4294901760
  %826 = vmatpush.xpose.msra.mxu0 %v825
  %v827 = vand.u32 %v446, 4294901760
  %828 = vmatpush.xpose.msra.mxu0 %v827
  %v829 = vand.u32 %v443, 4294901760
  %830 = vmatmul.f32.gmra.mxu0 %v829
  %v831 = vpop.f32.mrf.mxu0
  %v832 = vadd.f32 %v795, %v831
  %833 = vdwg.mxu0
  %v834 = vmul.f32 %v17, %v17
  %v835 = vmul.f32 %v18, %v18
  %v836 = vmul.f32 %v19, %v19
  %v837 = vmul.f32 %v20, %v20
  %v838 = vmul.f32 %v21, %v21
  %v839 = vmul.f32 %v22, %v22
  %v840 = vmul.f32 %v23, %v23
  %v841 = vmul.f32 %v24, %v24
  %v842 = vmul.f32 %v25, %v25
  %v843 = vmul.f32 %v26, %v26
  %v844 = vmul.f32 %v27, %v27
  %v845 = vmul.f32 %v28, %v28
  %v846 = vmul.f32 %v29, %v29
  %v847 = vmul.f32 %v30, %v30
  %v848 = vmul.f32 %v31, %v31
  %v849 = vmul.f32 %v32, %v32
  %v850 = vmul.f32 %v33, %v33
  %v851 = vmul.f32 %v34, %v34
  %v852 = vmul.f32 %v35, %v35
  %v853 = vmul.f32 %v36, %v36
  %v854 = vmul.f32 %v37, %v37
  %v855 = vmul.f32 %v38, %v38
  %v856 = vmul.f32 %v39, %v39
  %v857 = vmul.f32 %v40, %v40
  %v858 = vmul.f32 %v41, %v41
  %v859 = vmul.f32 %v42, %v42
  %v860 = vmul.f32 %v43, %v43
  %v861 = vmul.f32 %v44, %v44
  %v862 = vmul.f32 %v45, %v45
  %v863 = vmul.f32 %v46, %v46
  %v864 = vmul.f32 %v47, %v47
  %v865 = vmul.f32 %v48, %v48
  %v867 = vsel %vm49, %v850, 0
  %v870 = vsel %vm49, %v851, 0
  %v873 = vsel %vm49, %v852, 0
  %v876 = vsel %vm49, %v853, 0
  %v879 = vsel %vm49, %v854, 0
  %v882 = vsel %vm49, %v855, 0
  %v885 = vsel %vm49, %v856, 0
  %v888 = vsel %vm49, %v857, 0
  %v891 = vsel %vm49, %v858, 0
  %v894 = vsel %vm49, %v859, 0
  %v897 = vsel %vm49, %v860, 0
  %v900 = vsel %vm49, %v861, 0
  %v903 = vsel %vm49, %v862, 0
  %v906 = vsel %vm49, %v863, 0
  %v909 = vsel %vm49, %v864, 0
  %v912 = vsel %vm49, %v865, 0
  %v914 = vand.u32 %v912, 4294901760
  %915 = vmatpush.xpose.msra.mxu0 %v914
  %v916 = vand.u32 %v909, 4294901760
  %917 = vmatpush.xpose.msra.mxu0 %v916
  %v918 = vand.u32 %v906, 4294901760
  %919 = vmatpush.xpose.msra.mxu0 %v918
  %v920 = vand.u32 %v903, 4294901760
  %921 = vmatpush.xpose.msra.mxu0 %v920
  %v922 = vand.u32 %v900, 4294901760
  %923 = vmatpush.xpose.msra.mxu0 %v922
  %v924 = vand.u32 %v897, 4294901760
  %925 = vmatpush.xpose.msra.mxu0 %v924
  %v926 = vand.u32 %v894, 4294901760
  %927 = vmatpush.xpose.msra.mxu0 %v926
  %v928 = vand.u32 %v891, 4294901760
  %929 = vmatpush.xpose.msra.mxu0 %v928
  %v930 = vand.u32 %v888, 4294901760
  %931 = vmatpush.xpose.msra.mxu0 %v930
  %v932 = vand.u32 %v885, 4294901760
  %933 = vmatpush.xpose.msra.mxu0 %v932
  %v934 = vand.u32 %v882, 4294901760
  %935 = vmatpush.xpose.msra.mxu0 %v934
  %v936 = vand.u32 %v879, 4294901760
  %937 = vmatpush.xpose.msra.mxu0 %v936
  %v938 = vand.u32 %v876, 4294901760
  %939 = vmatpush.xpose.msra.mxu0 %v938
  %v940 = vand.u32 %v873, 4294901760
  %941 = vmatpush.xpose.msra.mxu0 %v940
  %v942 = vand.u32 %v870, 4294901760
  %943 = vmatpush.xpose.msra.mxu0 %v942
  %v944 = vand.u32 %v867, 4294901760
  %945 = vmatpush.xpose.msra.mxu0 %v944
  %v946 = vand.u32 %v51, 4294901760
  %v947 = vsub.f32 %v51, %v946
  %v948 = vand.u32 %v947, 4294901760
  %v949 = vsub.f32 %v947, %v948
  %v950 = vand.u32 %v949, 4294901760
  %951 = vmatmul.f32.gmra.mxu0 %v950
  %v952 = vpop.f32.mrf.mxu0
  %v953 = vadd.f32 0.0, %v952
  %954 = vdwg.mxu0
  %v955 = vand.u32 %v912, 4294901760
  %v956 = vsub.f32 %v912, %v955
  %v957 = vand.u32 %v956, 4294901760
  %v958 = vsub.f32 %v956, %v957
  %v959 = vand.u32 %v958, 4294901760
  %960 = vmatpush.xpose.msra.mxu0 %v959
  %v961 = vand.u32 %v909, 4294901760
  %v962 = vsub.f32 %v909, %v961
  %v963 = vand.u32 %v962, 4294901760
  %v964 = vsub.f32 %v962, %v963
  %v965 = vand.u32 %v964, 4294901760
  %966 = vmatpush.xpose.msra.mxu0 %v965
  %v967 = vand.u32 %v906, 4294901760
  %v968 = vsub.f32 %v906, %v967
  %v969 = vand.u32 %v968, 4294901760
  %v970 = vsub.f32 %v968, %v969
  %v971 = vand.u32 %v970, 4294901760
  %972 = vmatpush.xpose.msra.mxu0 %v971
  %v973 = vand.u32 %v903, 4294901760
  %v974 = vsub.f32 %v903, %v973
  %v975 = vand.u32 %v974, 4294901760
  %v976 = vsub.f32 %v974, %v975
  %v977 = vand.u32 %v976, 4294901760
  %978 = vmatpush.xpose.msra.mxu0 %v977
  %v979 = vand.u32 %v900, 4294901760
  %v980 = vsub.f32 %v900, %v979
  %v981 = vand.u32 %v980, 4294901760
  %v982 = vsub.f32 %v980, %v981
  %v983 = vand.u32 %v982, 4294901760
  %984 = vmatpush.xpose.msra.mxu0 %v983
  %v985 = vand.u32 %v897, 4294901760
  %v986 = vsub.f32 %v897, %v985
  %v987 = vand.u32 %v986, 4294901760
  %v988 = vsub.f32 %v986, %v987
  %v989 = vand.u32 %v988, 4294901760
  %990 = vmatpush.xpose.msra.mxu0 %v989
  %v991 = vand.u32 %v894, 4294901760
  %v992 = vsub.f32 %v894, %v991
  %v993 = vand.u32 %v992, 4294901760
  %v994 = vsub.f32 %v992, %v993
  %v995 = vand.u32 %v994, 4294901760
  %996 = vmatpush.xpose.msra.mxu0 %v995
  %v997 = vand.u32 %v891, 4294901760
  %v998 = vsub.f32 %v891, %v997
  %v999 = vand.u32 %v998, 4294901760
  %v1000 = vsub.f32 %v998, %v999
  %v1001 = vand.u32 %v1000, 4294901760
  %1002 = vmatpush.xpose.msra.mxu0 %v1001
  %v1003 = vand.u32 %v888, 4294901760
  %v1004 = vsub.f32 %v888, %v1003
  %v1005 = vand.u32 %v1004, 4294901760
  %v1006 = vsub.f32 %v1004, %v1005
  %v1007 = vand.u32 %v1006, 4294901760
  %1008 = vmatpush.xpose.msra.mxu0 %v1007
  %v1009 = vand.u32 %v885, 4294901760
  %v1010 = vsub.f32 %v885, %v1009
  %v1011 = vand.u32 %v1010, 4294901760
  %v1012 = vsub.f32 %v1010, %v1011
  %v1013 = vand.u32 %v1012, 4294901760
  %1014 = vmatpush.xpose.msra.mxu0 %v1013
  %v1015 = vand.u32 %v882, 4294901760
  %v1016 = vsub.f32 %v882, %v1015
  %v1017 = vand.u32 %v1016, 4294901760
  %v1018 = vsub.f32 %v1016, %v1017
  %v1019 = vand.u32 %v1018, 4294901760
  %1020 = vmatpush.xpose.msra.mxu0 %v1019
  %v1021 = vand.u32 %v879, 4294901760
  %v1022 = vsub.f32 %v879, %v1021
  %v1023 = vand.u32 %v1022, 4294901760
  %v1024 = vsub.f32 %v1022, %v1023
  %v1025 = vand.u32 %v1024, 4294901760
  %1026 = vmatpush.xpose.msra.mxu0 %v1025
  %v1027 = vand.u32 %v876, 4294901760
  %v1028 = vsub.f32 %v876, %v1027
  %v1029 = vand.u32 %v1028, 4294901760
  %v1030 = vsub.f32 %v1028, %v1029
  %v1031 = vand.u32 %v1030, 4294901760
  %1032 = vmatpush.xpose.msra.mxu0 %v1031
  %v1033 = vand.u32 %v873, 4294901760
  %v1034 = vsub.f32 %v873, %v1033
  %v1035 = vand.u32 %v1034, 4294901760
  %v1036 = vsub.f32 %v1034, %v1035
  %v1037 = vand.u32 %v1036, 4294901760
  %1038 = vmatpush.xpose.msra.mxu0 %v1037
  %v1039 = vand.u32 %v870, 4294901760
  %v1040 = vsub.f32 %v870, %v1039
  %v1041 = vand.u32 %v1040, 4294901760
  %v1042 = vsub.f32 %v1040, %v1041
  %v1043 = vand.u32 %v1042, 4294901760
  %1044 = vmatpush.xpose.msra.mxu0 %v1043
  %v1045 = vand.u32 %v867, 4294901760
  %v1046 = vsub.f32 %v867, %v1045
  %v1047 = vand.u32 %v1046, 4294901760
  %v1048 = vsub.f32 %v1046, %v1047
  %v1049 = vand.u32 %v1048, 4294901760
  %1050 = vmatpush.xpose.msra.mxu0 %v1049
  %v1051 = vand.u32 %v51, 4294901760
  %1052 = vmatmul.f32.gmra.mxu0 %v1051
  %v1053 = vpop.f32.mrf.mxu0
  %v1054 = vadd.f32 %v953, %v1053
  %1055 = vdwg.mxu0
  %v1056 = vand.u32 %v912, 4294901760
  %v1057 = vsub.f32 %v912, %v1056
  %1058 = vmatpush.xpose.msra.mxu0 %v1057
  %v1059 = vand.u32 %v909, 4294901760
  %v1060 = vsub.f32 %v909, %v1059
  %1061 = vmatpush.xpose.msra.mxu0 %v1060
  %v1062 = vand.u32 %v906, 4294901760
  %v1063 = vsub.f32 %v906, %v1062
  %1064 = vmatpush.xpose.msra.mxu0 %v1063
  %v1065 = vand.u32 %v903, 4294901760
  %v1066 = vsub.f32 %v903, %v1065
  %1067 = vmatpush.xpose.msra.mxu0 %v1066
  %v1068 = vand.u32 %v900, 4294901760
  %v1069 = vsub.f32 %v900, %v1068
  %1070 = vmatpush.xpose.msra.mxu0 %v1069
  %v1071 = vand.u32 %v897, 4294901760
  %v1072 = vsub.f32 %v897, %v1071
  %1073 = vmatpush.xpose.msra.mxu0 %v1072
  %v1074 = vand.u32 %v894, 4294901760
  %v1075 = vsub.f32 %v894, %v1074
  %1076 = vmatpush.xpose.msra.mxu0 %v1075
  %v1077 = vand.u32 %v891, 4294901760
  %v1078 = vsub.f32 %v891, %v1077
  %1079 = vmatpush.xpose.msra.mxu0 %v1078
  %v1080 = vand.u32 %v888, 4294901760
  %v1081 = vsub.f32 %v888, %v1080
  %1082 = vmatpush.xpose.msra.mxu0 %v1081
  %v1083 = vand.u32 %v885, 4294901760
  %v1084 = vsub.f32 %v885, %v1083
  %1085 = vmatpush.xpose.msra.mxu0 %v1084
  %v1086 = vand.u32 %v882, 4294901760
  %v1087 = vsub.f32 %v882, %v1086
  %1088 = vmatpush.xpose.msra.mxu0 %v1087
  %v1089 = vand.u32 %v879, 4294901760
  %v1090 = vsub.f32 %v879, %v1089
  %1091 = vmatpush.xpose.msra.mxu0 %v1090
  %v1092 = vand.u32 %v876, 4294901760
  %v1093 = vsub.f32 %v876, %v1092
  %1094 = vmatpush.xpose.msra.mxu0 %v1093
  %v1095 = vand.u32 %v873, 4294901760
  %v1096 = vsub.f32 %v873, %v1095
  %1097 = vmatpush.xpose.msra.mxu0 %v1096
  %v1098 = vand.u32 %v870, 4294901760
  %v1099 = vsub.f32 %v870, %v1098
  %1100 = vmatpush.xpose.msra.mxu0 %v1099
  %v1101 = vand.u32 %v867, 4294901760
  %v1102 = vsub.f32 %v867, %v1101
  %1103 = vmatpush.xpose.msra.mxu0 %v1102
  %v1104 = vand.u32 %v51, 4294901760
  %v1105 = vsub.f32 %v51, %v1104
  %1106 = vmatmul.f32.gmra.mxu0 %v1105
  %v1107 = vpop.f32.mrf.mxu0
  %v1108 = vadd.f32 %v1054, %v1107
  %1109 = vdwg.mxu0
  %v1110 = vand.u32 %v912, 4294901760
  %1111 = vmatpush.xpose.msra.mxu0 %v1110
  %v1112 = vand.u32 %v909, 4294901760
  %1113 = vmatpush.xpose.msra.mxu0 %v1112
  %v1114 = vand.u32 %v906, 4294901760
  %1115 = vmatpush.xpose.msra.mxu0 %v1114
  %v1116 = vand.u32 %v903, 4294901760
  %1117 = vmatpush.xpose.msra.mxu0 %v1116
  %v1118 = vand.u32 %v900, 4294901760
  %1119 = vmatpush.xpose.msra.mxu0 %v1118
  %v1120 = vand.u32 %v897, 4294901760
  %1121 = vmatpush.xpose.msra.mxu0 %v1120
  %v1122 = vand.u32 %v894, 4294901760
  %1123 = vmatpush.xpose.msra.mxu0 %v1122
  %v1124 = vand.u32 %v891, 4294901760
  %1125 = vmatpush.xpose.msra.mxu0 %v1124
  %v1126 = vand.u32 %v888, 4294901760
  %1127 = vmatpush.xpose.msra.mxu0 %v1126
  %v1128 = vand.u32 %v885, 4294901760
  %1129 = vmatpush.xpose.msra.mxu0 %v1128
  %v1130 = vand.u32 %v882, 4294901760
  %1131 = vmatpush.xpose.msra.mxu0 %v1130
  %v1132 = vand.u32 %v879, 4294901760
  %1133 = vmatpush.xpose.msra.mxu0 %v1132
  %v1134 = vand.u32 %v876, 4294901760
  %1135 = vmatpush.xpose.msra.mxu0 %v1134
  %v1136 = vand.u32 %v873, 4294901760
  %1137 = vmatpush.xpose.msra.mxu0 %v1136
  %v1138 = vand.u32 %v870, 4294901760
  %1139 = vmatpush.xpose.msra.mxu0 %v1138
  %v1140 = vand.u32 %v867, 4294901760
  %1141 = vmatpush.xpose.msra.mxu0 %v1140
  %v1142 = vand.u32 %v51, 4294901760
  %v1143 = vsub.f32 %v51, %v1142
  %v1144 = vand.u32 %v1143, 4294901760
  %1145 = vmatmul.f32.gmra.mxu0 %v1144
  %v1146 = vpop.f32.mrf.mxu0
  %v1147 = vadd.f32 %v1108, %v1146
  %1148 = vdwg.mxu0
  %v1149 = vand.u32 %v912, 4294901760
  %v1150 = vsub.f32 %v912, %v1149
  %v1151 = vand.u32 %v1150, 4294901760
  %1152 = vmatpush.xpose.msra.mxu0 %v1151
  %v1153 = vand.u32 %v909, 4294901760
  %v1154 = vsub.f32 %v909, %v1153
  %v1155 = vand.u32 %v1154, 4294901760
  %1156 = vmatpush.xpose.msra.mxu0 %v1155
  %v1157 = vand.u32 %v906, 4294901760
  %v1158 = vsub.f32 %v906, %v1157
  %v1159 = vand.u32 %v1158, 4294901760
  %1160 = vmatpush.xpose.msra.mxu0 %v1159
  %v1161 = vand.u32 %v903, 4294901760
  %v1162 = vsub.f32 %v903, %v1161
  %v1163 = vand.u32 %v1162, 4294901760
  %1164 = vmatpush.xpose.msra.mxu0 %v1163
  %v1165 = vand.u32 %v900, 4294901760
  %v1166 = vsub.f32 %v900, %v1165
  %v1167 = vand.u32 %v1166, 4294901760
  %1168 = vmatpush.xpose.msra.mxu0 %v1167
  %v1169 = vand.u32 %v897, 4294901760
  %v1170 = vsub.f32 %v897, %v1169
  %v1171 = vand.u32 %v1170, 4294901760
  %1172 = vmatpush.xpose.msra.mxu0 %v1171
  %v1173 = vand.u32 %v894, 4294901760
  %v1174 = vsub.f32 %v894, %v1173
  %v1175 = vand.u32 %v1174, 4294901760
  %1176 = vmatpush.xpose.msra.mxu0 %v1175
  %v1177 = vand.u32 %v891, 4294901760
  %v1178 = vsub.f32 %v891, %v1177
  %v1179 = vand.u32 %v1178, 4294901760
  %1180 = vmatpush.xpose.msra.mxu0 %v1179
  %v1181 = vand.u32 %v888, 4294901760
  %v1182 = vsub.f32 %v888, %v1181
  %v1183 = vand.u32 %v1182, 4294901760
  %1184 = vmatpush.xpose.msra.mxu0 %v1183
  %v1185 = vand.u32 %v885, 4294901760
  %v1186 = vsub.f32 %v885, %v1185
  %v1187 = vand.u32 %v1186, 4294901760
  %1188 = vmatpush.xpose.msra.mxu0 %v1187
  %v1189 = vand.u32 %v882, 4294901760
  %v1190 = vsub.f32 %v882, %v1189
  %v1191 = vand.u32 %v1190, 4294901760
  %1192 = vmatpush.xpose.msra.mxu0 %v1191
  %v1193 = vand.u32 %v879, 4294901760
  %v1194 = vsub.f32 %v879, %v1193
  %v1195 = vand.u32 %v1194, 4294901760
  %1196 = vmatpush.xpose.msra.mxu0 %v1195
  %v1197 = vand.u32 %v876, 4294901760
  %v1198 = vsub.f32 %v876, %v1197
  %v1199 = vand.u32 %v1198, 4294901760
  %1200 = vmatpush.xpose.msra.mxu0 %v1199
  %v1201 = vand.u32 %v873, 4294901760
  %v1202 = vsub.f32 %v873, %v1201
  %v1203 = vand.u32 %v1202, 4294901760
  %1204 = vmatpush.xpose.msra.mxu0 %v1203
  %v1205 = vand.u32 %v870, 4294901760
  %v1206 = vsub.f32 %v870, %v1205
  %v1207 = vand.u32 %v1206, 4294901760
  %1208 = vmatpush.xpose.msra.mxu0 %v1207
  %v1209 = vand.u32 %v867, 4294901760
  %v1210 = vsub.f32 %v867, %v1209
  %v1211 = vand.u32 %v1210, 4294901760
  %1212 = vmatpush.xpose.msra.mxu0 %v1211
  %v1213 = vand.u32 %v51, 4294901760
  %1214 = vmatmul.f32.gmra.mxu0 %v1213
  %v1215 = vpop.f32.mrf.mxu0
  %v1216 = vadd.f32 %v1147, %v1215
  %1217 = vdwg.mxu0
  %v1218 = vand.u32 %v912, 4294901760
  %1219 = vmatpush.xpose.msra.mxu0 %v1218
  %v1220 = vand.u32 %v909, 4294901760
  %1221 = vmatpush.xpose.msra.mxu0 %v1220
  %v1222 = vand.u32 %v906, 4294901760
  %1223 = vmatpush.xpose.msra.mxu0 %v1222
  %v1224 = vand.u32 %v903, 4294901760
  %1225 = vmatpush.xpose.msra.mxu0 %v1224
  %v1226 = vand.u32 %v900, 4294901760
  %1227 = vmatpush.xpose.msra.mxu0 %v1226
  %v1228 = vand.u32 %v897, 4294901760
  %1229 = vmatpush.xpose.msra.mxu0 %v1228
  %v1230 = vand.u32 %v894, 4294901760
  %1231 = vmatpush.xpose.msra.mxu0 %v1230
  %v1232 = vand.u32 %v891, 4294901760
  %1233 = vmatpush.xpose.msra.mxu0 %v1232
  %v1234 = vand.u32 %v888, 4294901760
  %1235 = vmatpush.xpose.msra.mxu0 %v1234
  %v1236 = vand.u32 %v885, 4294901760
  %1237 = vmatpush.xpose.msra.mxu0 %v1236
  %v1238 = vand.u32 %v882, 4294901760
  %1239 = vmatpush.xpose.msra.mxu0 %v1238
  %v1240 = vand.u32 %v879, 4294901760
  %1241 = vmatpush.xpose.msra.mxu0 %v1240
  %v1242 = vand.u32 %v876, 4294901760
  %1243 = vmatpush.xpose.msra.mxu0 %v1242
  %v1244 = vand.u32 %v873, 4294901760
  %1245 = vmatpush.xpose.msra.mxu0 %v1244
  %v1246 = vand.u32 %v870, 4294901760
  %1247 = vmatpush.xpose.msra.mxu0 %v1246
  %v1248 = vand.u32 %v867, 4294901760
  %1249 = vmatpush.xpose.msra.mxu0 %v1248
  %v1250 = vand.u32 %v51, 4294901760
  %1251 = vmatmul.f32.gmra.mxu0 %v1250
  %v1252 = vpop.f32.mrf.mxu0
  %v1253 = vadd.f32 %v1216, %v1252
  %1254 = vdwg.mxu0
  %v1256 = vsel %vm442, %v834, 0
  %v1259 = vsel %vm442, %v835, 0
  %v1262 = vsel %vm442, %v836, 0
  %v1265 = vsel %vm442, %v837, 0
  %v1268 = vsel %vm442, %v838, 0
  %v1271 = vsel %vm442, %v839, 0
  %v1274 = vsel %vm442, %v840, 0
  %v1277 = vsel %vm442, %v841, 0
  %v1280 = vsel %vm442, %v842, 0
  %v1283 = vsel %vm442, %v843, 0
  %v1286 = vsel %vm442, %v844, 0
  %v1289 = vsel %vm442, %v845, 0
  %v1292 = vsel %vm442, %v846, 0
  %v1295 = vsel %vm442, %v847, 0
  %v1298 = vsel %vm442, %v848, 0
  %v1301 = vsel %vm442, %v849, 0
  %v1303 = vand.u32 %v1301, 4294901760
  %1304 = vmatpush.xpose.msra.mxu0 %v1303
  %v1305 = vand.u32 %v1298, 4294901760
  %1306 = vmatpush.xpose.msra.mxu0 %v1305
  %v1307 = vand.u32 %v1295, 4294901760
  %1308 = vmatpush.xpose.msra.mxu0 %v1307
  %v1309 = vand.u32 %v1292, 4294901760
  %1310 = vmatpush.xpose.msra.mxu0 %v1309
  %v1311 = vand.u32 %v1289, 4294901760
  %1312 = vmatpush.xpose.msra.mxu0 %v1311
  %v1313 = vand.u32 %v1286, 4294901760
  %1314 = vmatpush.xpose.msra.mxu0 %v1313
  %v1315 = vand.u32 %v1283, 4294901760
  %1316 = vmatpush.xpose.msra.mxu0 %v1315
  %v1317 = vand.u32 %v1280, 4294901760
  %1318 = vmatpush.xpose.msra.mxu0 %v1317
  %v1319 = vand.u32 %v1277, 4294901760
  %1320 = vmatpush.xpose.msra.mxu0 %v1319
  %v1321 = vand.u32 %v1274, 4294901760
  %1322 = vmatpush.xpose.msra.mxu0 %v1321
  %v1323 = vand.u32 %v1271, 4294901760
  %1324 = vmatpush.xpose.msra.mxu0 %v1323
  %v1325 = vand.u32 %v1268, 4294901760
  %1326 = vmatpush.xpose.msra.mxu0 %v1325
  %v1327 = vand.u32 %v1265, 4294901760
  %1328 = vmatpush.xpose.msra.mxu0 %v1327
  %v1329 = vand.u32 %v1262, 4294901760
  %1330 = vmatpush.xpose.msra.mxu0 %v1329
  %v1331 = vand.u32 %v1259, 4294901760
  %1332 = vmatpush.xpose.msra.mxu0 %v1331
  %v1333 = vand.u32 %v1256, 4294901760
  %1334 = vmatpush.xpose.msra.mxu0 %v1333
  %v1335 = vand.u32 %v443, 4294901760
  %v1336 = vsub.f32 %v443, %v1335
  %v1337 = vand.u32 %v1336, 4294901760
  %v1338 = vsub.f32 %v1336, %v1337
  %v1339 = vand.u32 %v1338, 4294901760
  %1340 = vmatmul.f32.gmra.mxu0 %v1339
  %v1341 = vpop.f32.mrf.mxu0
  %v1342 = vadd.f32 %v1253, %v1341
  %1343 = vdwg.mxu0
  %v1344 = vand.u32 %v1301, 4294901760
  %v1345 = vsub.f32 %v1301, %v1344
  %v1346 = vand.u32 %v1345, 4294901760
  %v1347 = vsub.f32 %v1345, %v1346
  %v1348 = vand.u32 %v1347, 4294901760
  %1349 = vmatpush.xpose.msra.mxu0 %v1348
  %v1350 = vand.u32 %v1298, 4294901760
  %v1351 = vsub.f32 %v1298, %v1350
  %v1352 = vand.u32 %v1351, 4294901760
  %v1353 = vsub.f32 %v1351, %v1352
  %v1354 = vand.u32 %v1353, 4294901760
  %1355 = vmatpush.xpose.msra.mxu0 %v1354
  %v1356 = vand.u32 %v1295, 4294901760
  %v1357 = vsub.f32 %v1295, %v1356
  %v1358 = vand.u32 %v1357, 4294901760
  %v1359 = vsub.f32 %v1357, %v1358
  %v1360 = vand.u32 %v1359, 4294901760
  %1361 = vmatpush.xpose.msra.mxu0 %v1360
  %v1362 = vand.u32 %v1292, 4294901760
  %v1363 = vsub.f32 %v1292, %v1362
  %v1364 = vand.u32 %v1363, 4294901760
  %v1365 = vsub.f32 %v1363, %v1364
  %v1366 = vand.u32 %v1365, 4294901760
  %1367 = vmatpush.xpose.msra.mxu0 %v1366
  %v1368 = vand.u32 %v1289, 4294901760
  %v1369 = vsub.f32 %v1289, %v1368
  %v1370 = vand.u32 %v1369, 4294901760
  %v1371 = vsub.f32 %v1369, %v1370
  %v1372 = vand.u32 %v1371, 4294901760
  %1373 = vmatpush.xpose.msra.mxu0 %v1372
  %v1374 = vand.u32 %v1286, 4294901760
  %v1375 = vsub.f32 %v1286, %v1374
  %v1376 = vand.u32 %v1375, 4294901760
  %v1377 = vsub.f32 %v1375, %v1376
  %v1378 = vand.u32 %v1377, 4294901760
  %1379 = vmatpush.xpose.msra.mxu0 %v1378
  %v1380 = vand.u32 %v1283, 4294901760
  %v1381 = vsub.f32 %v1283, %v1380
  %v1382 = vand.u32 %v1381, 4294901760
  %v1383 = vsub.f32 %v1381, %v1382
  %v1384 = vand.u32 %v1383, 4294901760
  %1385 = vmatpush.xpose.msra.mxu0 %v1384
  %v1386 = vand.u32 %v1280, 4294901760
  %v1387 = vsub.f32 %v1280, %v1386
  %v1388 = vand.u32 %v1387, 4294901760
  %v1389 = vsub.f32 %v1387, %v1388
  %v1390 = vand.u32 %v1389, 4294901760
  %1391 = vmatpush.xpose.msra.mxu0 %v1390
  %v1392 = vand.u32 %v1277, 4294901760
  %v1393 = vsub.f32 %v1277, %v1392
  %v1394 = vand.u32 %v1393, 4294901760
  %v1395 = vsub.f32 %v1393, %v1394
  %v1396 = vand.u32 %v1395, 4294901760
  %1397 = vmatpush.xpose.msra.mxu0 %v1396
  %v1398 = vand.u32 %v1274, 4294901760
  %v1399 = vsub.f32 %v1274, %v1398
  %v1400 = vand.u32 %v1399, 4294901760
  %v1401 = vsub.f32 %v1399, %v1400
  %v1402 = vand.u32 %v1401, 4294901760
  %1403 = vmatpush.xpose.msra.mxu0 %v1402
  %v1404 = vand.u32 %v1271, 4294901760
  %v1405 = vsub.f32 %v1271, %v1404
  %v1406 = vand.u32 %v1405, 4294901760
  %v1407 = vsub.f32 %v1405, %v1406
  %v1408 = vand.u32 %v1407, 4294901760
  %1409 = vmatpush.xpose.msra.mxu0 %v1408
  %v1410 = vand.u32 %v1268, 4294901760
  %v1411 = vsub.f32 %v1268, %v1410
  %v1412 = vand.u32 %v1411, 4294901760
  %v1413 = vsub.f32 %v1411, %v1412
  %v1414 = vand.u32 %v1413, 4294901760
  %1415 = vmatpush.xpose.msra.mxu0 %v1414
  %v1416 = vand.u32 %v1265, 4294901760
  %v1417 = vsub.f32 %v1265, %v1416
  %v1418 = vand.u32 %v1417, 4294901760
  %v1419 = vsub.f32 %v1417, %v1418
  %v1420 = vand.u32 %v1419, 4294901760
  %1421 = vmatpush.xpose.msra.mxu0 %v1420
  %v1422 = vand.u32 %v1262, 4294901760
  %v1423 = vsub.f32 %v1262, %v1422
  %v1424 = vand.u32 %v1423, 4294901760
  %v1425 = vsub.f32 %v1423, %v1424
  %v1426 = vand.u32 %v1425, 4294901760
  %1427 = vmatpush.xpose.msra.mxu0 %v1426
  %v1428 = vand.u32 %v1259, 4294901760
  %v1429 = vsub.f32 %v1259, %v1428
  %v1430 = vand.u32 %v1429, 4294901760
  %v1431 = vsub.f32 %v1429, %v1430
  %v1432 = vand.u32 %v1431, 4294901760
  %1433 = vmatpush.xpose.msra.mxu0 %v1432
  %v1434 = vand.u32 %v1256, 4294901760
  %v1435 = vsub.f32 %v1256, %v1434
  %v1436 = vand.u32 %v1435, 4294901760
  %v1437 = vsub.f32 %v1435, %v1436
  %v1438 = vand.u32 %v1437, 4294901760
  %1439 = vmatpush.xpose.msra.mxu0 %v1438
  %v1440 = vand.u32 %v443, 4294901760
  %1441 = vmatmul.f32.gmra.mxu0 %v1440
  %v1442 = vpop.f32.mrf.mxu0
  %v1443 = vadd.f32 %v1342, %v1442
  %1444 = vdwg.mxu0
  %v1445 = vand.u32 %v1301, 4294901760
  %v1446 = vsub.f32 %v1301, %v1445
  %1447 = vmatpush.xpose.msra.mxu0 %v1446
  %v1448 = vand.u32 %v1298, 4294901760
  %v1449 = vsub.f32 %v1298, %v1448
  %1450 = vmatpush.xpose.msra.mxu0 %v1449
  %v1451 = vand.u32 %v1295, 4294901760
  %v1452 = vsub.f32 %v1295, %v1451
  %1453 = vmatpush.xpose.msra.mxu0 %v1452
  %v1454 = vand.u32 %v1292, 4294901760
  %v1455 = vsub.f32 %v1292, %v1454
  %1456 = vmatpush.xpose.msra.mxu0 %v1455
  %v1457 = vand.u32 %v1289, 4294901760
  %v1458 = vsub.f32 %v1289, %v1457
  %1459 = vmatpush.xpose.msra.mxu0 %v1458
  %v1460 = vand.u32 %v1286, 4294901760
  %v1461 = vsub.f32 %v1286, %v1460
  %1462 = vmatpush.xpose.msra.mxu0 %v1461
  %v1463 = vand.u32 %v1283, 4294901760
  %v1464 = vsub.f32 %v1283, %v1463
  %1465 = vmatpush.xpose.msra.mxu0 %v1464
  %v1466 = vand.u32 %v1280, 4294901760
  %v1467 = vsub.f32 %v1280, %v1466
  %1468 = vmatpush.xpose.msra.mxu0 %v1467
  %v1469 = vand.u32 %v1277, 4294901760
  %v1470 = vsub.f32 %v1277, %v1469
  %1471 = vmatpush.xpose.msra.mxu0 %v1470
  %v1472 = vand.u32 %v1274, 4294901760
  %v1473 = vsub.f32 %v1274, %v1472
  %1474 = vmatpush.xpose.msra.mxu0 %v1473
  %v1475 = vand.u32 %v1271, 4294901760
  %v1476 = vsub.f32 %v1271, %v1475
  %1477 = vmatpush.xpose.msra.mxu0 %v1476
  %v1478 = vand.u32 %v1268, 4294901760
  %v1479 = vsub.f32 %v1268, %v1478
  %1480 = vmatpush.xpose.msra.mxu0 %v1479
  %v1481 = vand.u32 %v1265, 4294901760
  %v1482 = vsub.f32 %v1265, %v1481
  %1483 = vmatpush.xpose.msra.mxu0 %v1482
  %v1484 = vand.u32 %v1262, 4294901760
  %v1485 = vsub.f32 %v1262, %v1484
  %1486 = vmatpush.xpose.msra.mxu0 %v1485
  %v1487 = vand.u32 %v1259, 4294901760
  %v1488 = vsub.f32 %v1259, %v1487
  %1489 = vmatpush.xpose.msra.mxu0 %v1488
  %v1490 = vand.u32 %v1256, 4294901760
  %v1491 = vsub.f32 %v1256, %v1490
  %1492 = vmatpush.xpose.msra.mxu0 %v1491
  %v1493 = vand.u32 %v443, 4294901760
  %v1494 = vsub.f32 %v443, %v1493
  %1495 = vmatmul.f32.gmra.mxu0 %v1494
  %v1496 = vpop.f32.mrf.mxu0
  %v1497 = vadd.f32 %v1443, %v1496
  %1498 = vdwg.mxu0
  %v1499 = vand.u32 %v1301, 4294901760
  %1500 = vmatpush.xpose.msra.mxu0 %v1499
  %v1501 = vand.u32 %v1298, 4294901760
  %1502 = vmatpush.xpose.msra.mxu0 %v1501
  %v1503 = vand.u32 %v1295, 4294901760
  %1504 = vmatpush.xpose.msra.mxu0 %v1503
  %v1505 = vand.u32 %v1292, 4294901760
  %1506 = vmatpush.xpose.msra.mxu0 %v1505
  %v1507 = vand.u32 %v1289, 4294901760
  %1508 = vmatpush.xpose.msra.mxu0 %v1507
  %v1509 = vand.u32 %v1286, 4294901760
  %1510 = vmatpush.xpose.msra.mxu0 %v1509
  %v1511 = vand.u32 %v1283, 4294901760
  %1512 = vmatpush.xpose.msra.mxu0 %v1511
  %v1513 = vand.u32 %v1280, 4294901760
  %1514 = vmatpush.xpose.msra.mxu0 %v1513
  %v1515 = vand.u32 %v1277, 4294901760
  %1516 = vmatpush.xpose.msra.mxu0 %v1515
  %v1517 = vand.u32 %v1274, 4294901760
  %1518 = vmatpush.xpose.msra.mxu0 %v1517
  %v1519 = vand.u32 %v1271, 4294901760
  %1520 = vmatpush.xpose.msra.mxu0 %v1519
  %v1521 = vand.u32 %v1268, 4294901760
  %1522 = vmatpush.xpose.msra.mxu0 %v1521
  %v1523 = vand.u32 %v1265, 4294901760
  %1524 = vmatpush.xpose.msra.mxu0 %v1523
  %v1525 = vand.u32 %v1262, 4294901760
  %1526 = vmatpush.xpose.msra.mxu0 %v1525
  %v1527 = vand.u32 %v1259, 4294901760
  %1528 = vmatpush.xpose.msra.mxu0 %v1527
  %v1529 = vand.u32 %v1256, 4294901760
  %1530 = vmatpush.xpose.msra.mxu0 %v1529
  %v1531 = vand.u32 %v443, 4294901760
  %v1532 = vsub.f32 %v443, %v1531
  %v1533 = vand.u32 %v1532, 4294901760
  %1534 = vmatmul.f32.gmra.mxu0 %v1533
  %v1535 = vpop.f32.mrf.mxu0
  %v1536 = vadd.f32 %v1497, %v1535
  %1537 = vdwg.mxu0
  %v1538 = vand.u32 %v1301, 4294901760
  %v1539 = vsub.f32 %v1301, %v1538
  %v1540 = vand.u32 %v1539, 4294901760
  %1541 = vmatpush.xpose.msra.mxu0 %v1540
  %v1542 = vand.u32 %v1298, 4294901760
  %v1543 = vsub.f32 %v1298, %v1542
  %v1544 = vand.u32 %v1543, 4294901760
  %1545 = vmatpush.xpose.msra.mxu0 %v1544
  %v1546 = vand.u32 %v1295, 4294901760
  %v1547 = vsub.f32 %v1295, %v1546
  %v1548 = vand.u32 %v1547, 4294901760
  %1549 = vmatpush.xpose.msra.mxu0 %v1548
  %v1550 = vand.u32 %v1292, 4294901760
  %v1551 = vsub.f32 %v1292, %v1550
  %v1552 = vand.u32 %v1551, 4294901760
  %1553 = vmatpush.xpose.msra.mxu0 %v1552
  %v1554 = vand.u32 %v1289, 4294901760
  %v1555 = vsub.f32 %v1289, %v1554
  %v1556 = vand.u32 %v1555, 4294901760
  %1557 = vmatpush.xpose.msra.mxu0 %v1556
  %v1558 = vand.u32 %v1286, 4294901760
  %v1559 = vsub.f32 %v1286, %v1558
  %v1560 = vand.u32 %v1559, 4294901760
  %1561 = vmatpush.xpose.msra.mxu0 %v1560
  %v1562 = vand.u32 %v1283, 4294901760
  %v1563 = vsub.f32 %v1283, %v1562
  %v1564 = vand.u32 %v1563, 4294901760
  %1565 = vmatpush.xpose.msra.mxu0 %v1564
  %v1566 = vand.u32 %v1280, 4294901760
  %v1567 = vsub.f32 %v1280, %v1566
  %v1568 = vand.u32 %v1567, 4294901760
  %1569 = vmatpush.xpose.msra.mxu0 %v1568
  %v1570 = vand.u32 %v1277, 4294901760
  %v1571 = vsub.f32 %v1277, %v1570
  %v1572 = vand.u32 %v1571, 4294901760
  %1573 = vmatpush.xpose.msra.mxu0 %v1572
  %v1574 = vand.u32 %v1274, 4294901760
  %v1575 = vsub.f32 %v1274, %v1574
  %v1576 = vand.u32 %v1575, 4294901760
  %1577 = vmatpush.xpose.msra.mxu0 %v1576
  %v1578 = vand.u32 %v1271, 4294901760
  %v1579 = vsub.f32 %v1271, %v1578
  %v1580 = vand.u32 %v1579, 4294901760
  %1581 = vmatpush.xpose.msra.mxu0 %v1580
  %v1582 = vand.u32 %v1268, 4294901760
  %v1583 = vsub.f32 %v1268, %v1582
  %v1584 = vand.u32 %v1583, 4294901760
  %1585 = vmatpush.xpose.msra.mxu0 %v1584
  %v1586 = vand.u32 %v1265, 4294901760
  %v1587 = vsub.f32 %v1265, %v1586
  %v1588 = vand.u32 %v1587, 4294901760
  %1589 = vmatpush.xpose.msra.mxu0 %v1588
  %v1590 = vand.u32 %v1262, 4294901760
  %v1591 = vsub.f32 %v1262, %v1590
  %v1592 = vand.u32 %v1591, 4294901760
  %1593 = vmatpush.xpose.msra.mxu0 %v1592
  %v1594 = vand.u32 %v1259, 4294901760
  %v1595 = vsub.f32 %v1259, %v1594
  %v1596 = vand.u32 %v1595, 4294901760
  %1597 = vmatpush.xpose.msra.mxu0 %v1596
  %v1598 = vand.u32 %v1256, 4294901760
  %v1599 = vsub.f32 %v1256, %v1598
  %v1600 = vand.u32 %v1599, 4294901760
  %1601 = vmatpush.xpose.msra.mxu0 %v1600
  %v1602 = vand.u32 %v443, 4294901760
  %1603 = vmatmul.f32.gmra.mxu0 %v1602
  %v1604 = vpop.f32.mrf.mxu0
  %v1605 = vadd.f32 %v1536, %v1604
  %1606 = vdwg.mxu0
  %v1607 = vand.u32 %v1301, 4294901760
  %1608 = vmatpush.xpose.msra.mxu0 %v1607
  %v1609 = vand.u32 %v1298, 4294901760
  %1610 = vmatpush.xpose.msra.mxu0 %v1609
  %v1611 = vand.u32 %v1295, 4294901760
  %1612 = vmatpush.xpose.msra.mxu0 %v1611
  %v1613 = vand.u32 %v1292, 4294901760
  %1614 = vmatpush.xpose.msra.mxu0 %v1613
  %v1615 = vand.u32 %v1289, 4294901760
  %1616 = vmatpush.xpose.msra.mxu0 %v1615
  %v1617 = vand.u32 %v1286, 4294901760
  %1618 = vmatpush.xpose.msra.mxu0 %v1617
  %v1619 = vand.u32 %v1283, 4294901760
  %1620 = vmatpush.xpose.msra.mxu0 %v1619
  %v1621 = vand.u32 %v1280, 4294901760
  %1622 = vmatpush.xpose.msra.mxu0 %v1621
  %v1623 = vand.u32 %v1277, 4294901760
  %1624 = vmatpush.xpose.msra.mxu0 %v1623
  %v1625 = vand.u32 %v1274, 4294901760
  %1626 = vmatpush.xpose.msra.mxu0 %v1625
  %v1627 = vand.u32 %v1271, 4294901760
  %1628 = vmatpush.xpose.msra.mxu0 %v1627
  %v1629 = vand.u32 %v1268, 4294901760
  %1630 = vmatpush.xpose.msra.mxu0 %v1629
  %v1631 = vand.u32 %v1265, 4294901760
  %1632 = vmatpush.xpose.msra.mxu0 %v1631
  %v1633 = vand.u32 %v1262, 4294901760
  %1634 = vmatpush.xpose.msra.mxu0 %v1633
  %v1635 = vand.u32 %v1259, 4294901760
  %1636 = vmatpush.xpose.msra.mxu0 %v1635
  %v1637 = vand.u32 %v1256, 4294901760
  %1638 = vmatpush.xpose.msra.mxu0 %v1637
  %v1639 = vand.u32 %v443, 4294901760
  %1640 = vmatmul.f32.gmra.mxu0 %v1639
  %v1641 = vpop.f32.mrf.mxu0
  %v1642 = vadd.f32 %v1605, %v1641
  %1643 = vdwg.mxu0
  %v1644 = vmul.f32 %v832, 0.0625
  %v1645 = vmul.f32 %v1642, 0.0625
  %v1646 = vmul.f32 %v1644, %v1644
  %v1647 = vsub.f32 %v1645, %v1646
  %v1648 = vadd.f32 %v1647, 1e-05
  %v1649 = vrsqrt.pop %v1648
  %v1650 = vmul.f32 %v1649, %v1648
  %v1651 = vmul.f32 %v1650, %v1649
  %v1652 = vmul.f32 0.5, %v1651
  %v1653 = vsub.f32 1.5, %v1652
  %v1654 = vmul.f32 %v1649, %v1653
  %vm1655 = vweird.f32 %v1648
  %vm1656 = vweird.f32 %v1649
  %vm1657 = vmor %vm1655, %vm1656
  %v1658 = vsel %vm1657, %v1649, %v1654
  %v1659 = vld [vmem:[%s0] sm:$0xff]
  %v1660 = vld [vmem:[%s0 + $0x8] sm:$0xff]
  %v1661 = vld [vmem:[%s0 + $0x10] sm:$0xff]
  %v1662 = vld [vmem:[%s0 + $0x18] sm:$0xff]
  %v1663 = vld [vmem:[%s0 + $0x20] sm:$0xff]
  %v1664 = vld [vmem:[%s0 + $0x28] sm:$0xff]
  %v1665 = vld [vmem:[%s0 + $0x30] sm:$0xff]
  %v1666 = vld [vmem:[%s0 + $0x38] sm:$0xff]
  %v1668 = vsel %vm49, %v1663, 0
  %v1671 = vsel %vm49, %v1664, 0
  %v1674 = vsel %vm49, %v1665, 0
  %v1677 = vsel %vm49, %v1666, 0
  %v1679 = vand.u32 %v99, 4294901760
  %1680 = vmatpush.xpose.msra.mxu0 %v1679
  %v1681 = vand.u32 %v96, 4294901760
  %1682 = vmatpush.xpose.msra.mxu0 %v1681
  %v1683 = vand.u32 %v93, 4294901760
  %1684 = vmatpush.xpose.msra.mxu0 %v1683
  %v1685 = vand.u32 %v90, 4294901760
  %1686 = vmatpush.xpose.msra.mxu0 %v1685
  %v1687 = vand.u32 %v87, 4294901760
  %1688 = vmatpush.xpose.msra.mxu0 %v1687
  %v1689 = vand.u32 %v84, 4294901760
  %1690 = vmatpush.xpose.msra.mxu0 %v1689
  %v1691 = vand.u32 %v81, 4294901760
  %1692 = vmatpush.xpose.msra.mxu0 %v1691
  %v1693 = vand.u32 %v78, 4294901760
  %1694 = vmatpush.xpose.msra.mxu0 %v1693
  %v1695 = vand.u32 %v75, 4294901760
  %1696 = vmatpush.xpose.msra.mxu0 %v1695
  %v1697 = vand.u32 %v72, 4294901760
  %1698 = vmatpush.xpose.msra.mxu0 %v1697
  %v1699 = vand.u32 %v69, 4294901760
  %1700 = vmatpush.xpose.msra.mxu0 %v1699
  %v1701 = vand.u32 %v66, 4294901760
  %1702 = vmatpush.xpose.msra.mxu0 %v1701
  %v1703 = vand.u32 %v63, 4294901760
  %1704 = vmatpush.xpose.msra.mxu0 %v1703
  %v1705 = vand.u32 %v60, 4294901760
  %1706 = vmatpush.xpose.msra.mxu0 %v1705
  %v1707 = vand.u32 %v57, 4294901760
  %1708 = vmatpush.xpose.msra.mxu0 %v1707
  %v1709 = vand.u32 %v54, 4294901760
  %1710 = vmatpush.xpose.msra.mxu0 %v1709
  %v1711 = vand.u32 %v1668, 4294901760
  %v1712 = vsub.f32 %v1668, %v1711
  %v1713 = vand.u32 %v1712, 4294901760
  %v1714 = vsub.f32 %v1712, %v1713
  %v1715 = vand.u32 %v1714, 4294901760
  %1716 = vmatmul.f32.gmra.mxu0 %v1715
  %v1717 = vpop.f32.mrf.mxu0
  %v1718 = vadd.f32 0.0, %v1717
  %v1719 = vand.u32 %v1671, 4294901760
  %v1720 = vsub.f32 %v1671, %v1719
  %v1721 = vand.u32 %v1720, 4294901760
  %v1722 = vsub.f32 %v1720, %v1721
  %v1723 = vand.u32 %v1722, 4294901760
  %1724 = vmatmul.f32.gmra.mxu0 %v1723
  %v1725 = vpop.f32.mrf.mxu0
  %v1726 = vadd.f32 0.0, %v1725
  %v1727 = vand.u32 %v1674, 4294901760
  %v1728 = vsub.f32 %v1674, %v1727
  %v1729 = vand.u32 %v1728, 4294901760
  %v1730 = vsub.f32 %v1728, %v1729
  %v1731 = vand.u32 %v1730, 4294901760
  %1732 = vmatmul.f32.gmra.mxu0 %v1731
  %v1733 = vpop.f32.mrf.mxu0
  %v1734 = vadd.f32 0.0, %v1733
  %v1735 = vand.u32 %v1677, 4294901760
  %v1736 = vsub.f32 %v1677, %v1735
  %v1737 = vand.u32 %v1736, 4294901760
  %v1738 = vsub.f32 %v1736, %v1737
  %v1739 = vand.u32 %v1738, 4294901760
  %1740 = vmatmul.f32.gmra.mxu0 %v1739
  %v1741 = vpop.f32.mrf.mxu0
  %v1742 = vadd.f32 0.0, %v1741
  %1743 = vdwg.mxu0
  %v1744 = vand.u32 %v99, 4294901760
  %v1745 = vsub.f32 %v99, %v1744
  %v1746 = vand.u32 %v1745, 4294901760
  %v1747 = vsub.f32 %v1745, %v1746
  %v1748 = vand.u32 %v1747, 4294901760
  %1749 = vmatpush.xpose.msra.mxu0 %v1748
  %v1750 = vand.u32 %v96, 4294901760
  %v1751 = vsub.f32 %v96, %v1750
  %v1752 = vand.u32 %v1751, 4294901760
  %v1753 = vsub.f32 %v1751, %v1752
  %v1754 = vand.u32 %v1753, 4294901760
  %1755 = vmatpush.xpose.msra.mxu0 %v1754
  %v1756 = vand.u32 %v93, 4294901760
  %v1757 = vsub.f32 %v93, %v1756
  %v1758 = vand.u32 %v1757, 4294901760
  %v1759 = vsub.f32 %v1757, %v1758
  %v1760 = vand.u32 %v1759, 4294901760
  %1761 = vmatpush.xpose.msra.mxu0 %v1760
  %v1762 = vand.u32 %v90, 4294901760
  %v1763 = vsub.f32 %v90, %v1762
  %v1764 = vand.u32 %v1763, 4294901760
  %v1765 = vsub.f32 %v1763, %v1764
  %v1766 = vand.u32 %v1765, 4294901760
  %1767 = vmatpush.xpose.msra.mxu0 %v1766
  %v1768 = vand.u32 %v87, 4294901760
  %v1769 = vsub.f32 %v87, %v1768
  %v1770 = vand.u32 %v1769, 4294901760
  %v1771 = vsub.f32 %v1769, %v1770
  %v1772 = vand.u32 %v1771, 4294901760
  %1773 = vmatpush.xpose.msra.mxu0 %v1772
  %v1774 = vand.u32 %v84, 4294901760
  %v1775 = vsub.f32 %v84, %v1774
  %v1776 = vand.u32 %v1775, 4294901760
  %v1777 = vsub.f32 %v1775, %v1776
  %v1778 = vand.u32 %v1777, 4294901760
  %1779 = vmatpush.xpose.msra.mxu0 %v1778
  %v1780 = vand.u32 %v81, 4294901760
  %v1781 = vsub.f32 %v81, %v1780
  %v1782 = vand.u32 %v1781, 4294901760
  %v1783 = vsub.f32 %v1781, %v1782
  %v1784 = vand.u32 %v1783, 4294901760
  %1785 = vmatpush.xpose.msra.mxu0 %v1784
  %v1786 = vand.u32 %v78, 4294901760
  %v1787 = vsub.f32 %v78, %v1786
  %v1788 = vand.u32 %v1787, 4294901760
  %v1789 = vsub.f32 %v1787, %v1788
  %v1790 = vand.u32 %v1789, 4294901760
  %1791 = vmatpush.xpose.msra.mxu0 %v1790
  %v1792 = vand.u32 %v75, 4294901760
  %v1793 = vsub.f32 %v75, %v1792
  %v1794 = vand.u32 %v1793, 4294901760
  %v1795 = vsub.f32 %v1793, %v1794
  %v1796 = vand.u32 %v1795, 4294901760
  %1797 = vmatpush.xpose.msra.mxu0 %v1796
  %v1798 = vand.u32 %v72, 4294901760
  %v1799 = vsub.f32 %v72, %v1798
  %v1800 = vand.u32 %v1799, 4294901760
  %v1801 = vsub.f32 %v1799, %v1800
  %v1802 = vand.u32 %v1801, 4294901760
  %1803 = vmatpush.xpose.msra.mxu0 %v1802
  %v1804 = vand.u32 %v69, 4294901760
  %v1805 = vsub.f32 %v69, %v1804
  %v1806 = vand.u32 %v1805, 4294901760
  %v1807 = vsub.f32 %v1805, %v1806
  %v1808 = vand.u32 %v1807, 4294901760
  %1809 = vmatpush.xpose.msra.mxu0 %v1808
  %v1810 = vand.u32 %v66, 4294901760
  %v1811 = vsub.f32 %v66, %v1810
  %v1812 = vand.u32 %v1811, 4294901760
  %v1813 = vsub.f32 %v1811, %v1812
  %v1814 = vand.u32 %v1813, 4294901760
  %1815 = vmatpush.xpose.msra.mxu0 %v1814
  %v1816 = vand.u32 %v63, 4294901760
  %v1817 = vsub.f32 %v63, %v1816
  %v1818 = vand.u32 %v1817, 4294901760
  %v1819 = vsub.f32 %v1817, %v1818
  %v1820 = vand.u32 %v1819, 4294901760
  %1821 = vmatpush.xpose.msra.mxu0 %v1820
  %v1822 = vand.u32 %v60, 4294901760
  %v1823 = vsub.f32 %v60, %v1822
  %v1824 = vand.u32 %v1823, 4294901760
  %v1825 = vsub.f32 %v1823, %v1824
  %v1826 = vand.u32 %v1825, 4294901760
  %1827 = vmatpush.xpose.msra.mxu0 %v1826
  %v1828 = vand.u32 %v57, 4294901760
  %v1829 = vsub.f32 %v57, %v1828
  %v1830 = vand.u32 %v1829, 4294901760
  %v1831 = vsub.f32 %v1829, %v1830
  %v1832 = vand.u32 %v1831, 4294901760
  %1833 = vmatpush.xpose.msra.mxu0 %v1832
  %v1834 = vand.u32 %v54, 4294901760
  %v1835 = vsub.f32 %v54, %v1834
  %v1836 = vand.u32 %v1835, 4294901760
  %v1837 = vsub.f32 %v1835, %v1836
  %v1838 = vand.u32 %v1837, 4294901760
  %1839 = vmatpush.xpose.msra.mxu0 %v1838
  %v1840 = vand.u32 %v1668, 4294901760
  %1841 = vmatmul.f32.gmra.mxu0 %v1840
  %v1842 = vpop.f32.mrf.mxu0
  %v1843 = vadd.f32 %v1718, %v1842
  %v1844 = vand.u32 %v1671, 4294901760
  %1845 = vmatmul.f32.gmra.mxu0 %v1844
  %v1846 = vpop.f32.mrf.mxu0
  %v1847 = vadd.f32 %v1726, %v1846
  %v1848 = vand.u32 %v1674, 4294901760
  %1849 = vmatmul.f32.gmra.mxu0 %v1848
  %v1850 = vpop.f32.mrf.mxu0
  %v1851 = vadd.f32 %v1734, %v1850
  %v1852 = vand.u32 %v1677, 4294901760
  %1853 = vmatmul.f32.gmra.mxu0 %v1852
  %v1854 = vpop.f32.mrf.mxu0
  %v1855 = vadd.f32 %v1742, %v1854
  %1856 = vdwg.mxu0
  %v1857 = vand.u32 %v99, 4294901760
  %v1858 = vsub.f32 %v99, %v1857
  %1859 = vmatpush.xpose.msra.mxu0 %v1858
  %v1860 = vand.u32 %v96, 4294901760
  %v1861 = vsub.f32 %v96, %v1860
  %1862 = vmatpush.xpose.msra.mxu0 %v1861
  %v1863 = vand.u32 %v93, 4294901760
  %v1864 = vsub.f32 %v93, %v1863
  %1865 = vmatpush.xpose.msra.mxu0 %v1864
  %v1866 = vand.u32 %v90, 4294901760
  %v1867 = vsub.f32 %v90, %v1866
  %1868 = vmatpush.xpose.msra.mxu0 %v1867
  %v1869 = vand.u32 %v87, 4294901760
  %v1870 = vsub.f32 %v87, %v1869
  %1871 = vmatpush.xpose.msra.mxu0 %v1870
  %v1872 = vand.u32 %v84, 4294901760
  %v1873 = vsub.f32 %v84, %v1872
  %1874 = vmatpush.xpose.msra.mxu0 %v1873
  %v1875 = vand.u32 %v81, 4294901760
  %v1876 = vsub.f32 %v81, %v1875
  %1877 = vmatpush.xpose.msra.mxu0 %v1876
  %v1878 = vand.u32 %v78, 4294901760
  %v1879 = vsub.f32 %v78, %v1878
  %1880 = vmatpush.xpose.msra.mxu0 %v1879
  %v1881 = vand.u32 %v75, 4294901760
  %v1882 = vsub.f32 %v75, %v1881
  %1883 = vmatpush.xpose.msra.mxu0 %v1882
  %v1884 = vand.u32 %v72, 4294901760
  %v1885 = vsub.f32 %v72, %v1884
  %1886 = vmatpush.xpose.msra.mxu0 %v1885
  %v1887 = vand.u32 %v69, 4294901760
  %v1888 = vsub.f32 %v69, %v1887
  %1889 = vmatpush.xpose.msra.mxu0 %v1888
  %v1890 = vand.u32 %v66, 4294901760
  %v1891 = vsub.f32 %v66, %v1890
  %1892 = vmatpush.xpose.msra.mxu0 %v1891
  %v1893 = vand.u32 %v63, 4294901760
  %v1894 = vsub.f32 %v63, %v1893
  %1895 = vmatpush.xpose.msra.mxu0 %v1894
  %v1896 = vand.u32 %v60, 4294901760
  %v1897 = vsub.f32 %v60, %v1896
  %1898 = vmatpush.xpose.msra.mxu0 %v1897
  %v1899 = vand.u32 %v57, 4294901760
  %v1900 = vsub.f32 %v57, %v1899
  %1901 = vmatpush.xpose.msra.mxu0 %v1900
  %v1902 = vand.u32 %v54, 4294901760
  %v1903 = vsub.f32 %v54, %v1902
  %1904 = vmatpush.xpose.msra.mxu0 %v1903
  %v1905 = vand.u32 %v1668, 4294901760
  %v1906 = vsub.f32 %v1668, %v1905
  %1907 = vmatmul.f32.gmra.mxu0 %v1906
  %v1908 = vpop.f32.mrf.mxu0
  %v1909 = vadd.f32 %v1843, %v1908
  %v1910 = vand.u32 %v1671, 4294901760
  %v1911 = vsub.f32 %v1671, %v1910
  %1912 = vmatmul.f32.gmra.mxu0 %v1911
  %v1913 = vpop.f32.mrf.mxu0
  %v1914 = vadd.f32 %v1847, %v1913
  %v1915 = vand.u32 %v1674, 4294901760
  %v1916 = vsub.f32 %v1674, %v1915
  %1917 = vmatmul.f32.gmra.mxu0 %v1916
  %v1918 = vpop.f32.mrf.mxu0
  %v1919 = vadd.f32 %v1851, %v1918
  %v1920 = vand.u32 %v1677, 4294901760
  %v1921 = vsub.f32 %v1677, %v1920
  %1922 = vmatmul.f32.gmra.mxu0 %v1921
  %v1923 = vpop.f32.mrf.mxu0
  %v1924 = vadd.f32 %v1855, %v1923
  %1925 = vdwg.mxu0
  %v1926 = vand.u32 %v99, 4294901760
  %1927 = vmatpush.xpose.msra.mxu0 %v1926
  %v1928 = vand.u32 %v96, 4294901760
  %1929 = vmatpush.xpose.msra.mxu0 %v1928
  %v1930 = vand.u32 %v93, 4294901760
  %1931 = vmatpush.xpose.msra.mxu0 %v1930
  %v1932 = vand.u32 %v90, 4294901760
  %1933 = vmatpush.xpose.msra.mxu0 %v1932
  %v1934 = vand.u32 %v87, 4294901760
  %1935 = vmatpush.xpose.msra.mxu0 %v1934
  %v1936 = vand.u32 %v84, 4294901760
  %1937 = vmatpush.xpose.msra.mxu0 %v1936
  %v1938 = vand.u32 %v81, 4294901760
  %1939 = vmatpush.xpose.msra.mxu0 %v1938
  %v1940 = vand.u32 %v78, 4294901760
  %1941 = vmatpush.xpose.msra.mxu0 %v1940
  %v1942 = vand.u32 %v75, 4294901760
  %1943 = vmatpush.xpose.msra.mxu0 %v1942
  %v1944 = vand.u32 %v72, 4294901760
  %1945 = vmatpush.xpose.msra.mxu0 %v1944
  %v1946 = vand.u32 %v69, 4294901760
  %1947 = vmatpush.xpose.msra.mxu0 %v1946
  %v1948 = vand.u32 %v66, 4294901760
  %1949 = vmatpush.xpose.msra.mxu0 %v1948
  %v1950 = vand.u32 %v63, 4294901760
  %1951 = vmatpush.xpose.msra.mxu0 %v1950
  %v1952 = vand.u32 %v60, 4294901760
  %1953 = vmatpush.xpose.msra.mxu0 %v1952
  %v1954 = vand.u32 %v57, 4294901760
  %1955 = vmatpush.xpose.msra.mxu0 %v1954
  %v1956 = vand.u32 %v54, 4294901760
  %1957 = vmatpush.xpose.msra.mxu0 %v1956
  %v1958 = vand.u32 %v1668, 4294901760
  %v1959 = vsub.f32 %v1668, %v1958
  %v1960 = vand.u32 %v1959, 4294901760
  %1961 = vmatmul.f32.gmra.mxu0 %v1960
  %v1962 = vpop.f32.mrf.mxu0
  %v1963 = vadd.f32 %v1909, %v1962
  %v1964 = vand.u32 %v1671, 4294901760
  %v1965 = vsub.f32 %v1671, %v1964
  %v1966 = vand.u32 %v1965, 4294901760
  %1967 = vmatmul.f32.gmra.mxu0 %v1966
  %v1968 = vpop.f32.mrf.mxu0
  %v1969 = vadd.f32 %v1914, %v1968
  %v1970 = vand.u32 %v1674, 4294901760
  %v1971 = vsub.f32 %v1674, %v1970
  %v1972 = vand.u32 %v1971, 4294901760
  %1973 = vmatmul.f32.gmra.mxu0 %v1972
  %v1974 = vpop.f32.mrf.mxu0
  %v1975 = vadd.f32 %v1919, %v1974
  %v1976 = vand.u32 %v1677, 4294901760
  %v1977 = vsub.f32 %v1677, %v1976
  %v1978 = vand.u32 %v1977, 4294901760
  %1979 = vmatmul.f32.gmra.mxu0 %v1978
  %v1980 = vpop.f32.mrf.mxu0
  %v1981 = vadd.f32 %v1924, %v1980
  %1982 = vdwg.mxu0
  %v1983 = vand.u32 %v99, 4294901760
  %v1984 = vsub.f32 %v99, %v1983
  %v1985 = vand.u32 %v1984, 4294901760
  %1986 = vmatpush.xpose.msra.mxu0 %v1985
  %v1987 = vand.u32 %v96, 4294901760
  %v1988 = vsub.f32 %v96, %v1987
  %v1989 = vand.u32 %v1988, 4294901760
  %1990 = vmatpush.xpose.msra.mxu0 %v1989
  %v1991 = vand.u32 %v93, 4294901760
  %v1992 = vsub.f32 %v93, %v1991
  %v1993 = vand.u32 %v1992, 4294901760
  %1994 = vmatpush.xpose.msra.mxu0 %v1993
  %v1995 = vand.u32 %v90, 4294901760
  %v1996 = vsub.f32 %v90, %v1995
  %v1997 = vand.u32 %v1996, 4294901760
  %1998 = vmatpush.xpose.msra.mxu0 %v1997
  %v1999 = vand.u32 %v87, 4294901760
  %v2000 = vsub.f32 %v87, %v1999
  %v2001 = vand.u32 %v2000, 4294901760
  %2002 = vmatpush.xpose.msra.mxu0 %v2001
  %v2003 = vand.u32 %v84, 4294901760
  %v2004 = vsub.f32 %v84, %v2003
  %v2005 = vand.u32 %v2004, 4294901760
  %2006 = vmatpush.xpose.msra.mxu0 %v2005
  %v2007 = vand.u32 %v81, 4294901760
  %v2008 = vsub.f32 %v81, %v2007
  %v2009 = vand.u32 %v2008, 4294901760
  %2010 = vmatpush.xpose.msra.mxu0 %v2009
  %v2011 = vand.u32 %v78, 4294901760
  %v2012 = vsub.f32 %v78, %v2011
  %v2013 = vand.u32 %v2012, 4294901760
  %2014 = vmatpush.xpose.msra.mxu0 %v2013
  %v2015 = vand.u32 %v75, 4294901760
  %v2016 = vsub.f32 %v75, %v2015
  %v2017 = vand.u32 %v2016, 4294901760
  %2018 = vmatpush.xpose.msra.mxu0 %v2017
  %v2019 = vand.u32 %v72, 4294901760
  %v2020 = vsub.f32 %v72, %v2019
  %v2021 = vand.u32 %v2020, 4294901760
  %2022 = vmatpush.xpose.msra.mxu0 %v2021
  %v2023 = vand.u32 %v69, 4294901760
  %v2024 = vsub.f32 %v69, %v2023
  %v2025 = vand.u32 %v2024, 4294901760
  %2026 = vmatpush.xpose.msra.mxu0 %v2025
  %v2027 = vand.u32 %v66, 4294901760
  %v2028 = vsub.f32 %v66, %v2027
  %v2029 = vand.u32 %v2028, 4294901760
  %2030 = vmatpush.xpose.msra.mxu0 %v2029
  %v2031 = vand.u32 %v63, 4294901760
  %v2032 = vsub.f32 %v63, %v2031
  %v2033 = vand.u32 %v2032, 4294901760
  %2034 = vmatpush.xpose.msra.mxu0 %v2033
  %v2035 = vand.u32 %v60, 4294901760
  %v2036 = vsub.f32 %v60, %v2035
  %v2037 = vand.u32 %v2036, 4294901760
  %2038 = vmatpush.xpose.msra.mxu0 %v2037
  %v2039 = vand.u32 %v57, 4294901760
  %v2040 = vsub.f32 %v57, %v2039
  %v2041 = vand.u32 %v2040, 4294901760
  %2042 = vmatpush.xpose.msra.mxu0 %v2041
  %v2043 = vand.u32 %v54, 4294901760
  %v2044 = vsub.f32 %v54, %v2043
  %v2045 = vand.u32 %v2044, 4294901760
  %2046 = vmatpush.xpose.msra.mxu0 %v2045
  %v2047 = vand.u32 %v1668, 4294901760
  %2048 = vmatmul.f32.gmra.mxu0 %v2047
  %v2049 = vpop.f32.mrf.mxu0
  %v2050 = vadd.f32 %v1963, %v2049
  %v2051 = vand.u32 %v1671, 4294901760
  %2052 = vmatmul.f32.gmra.mxu0 %v2051
  %v2053 = vpop.f32.mrf.mxu0
  %v2054 = vadd.f32 %v1969, %v2053
  %v2055 = vand.u32 %v1674, 4294901760
  %2056 = vmatmul.f32.gmra.mxu0 %v2055
  %v2057 = vpop.f32.mrf.mxu0
  %v2058 = vadd.f32 %v1975, %v2057
  %v2059 = vand.u32 %v1677, 4294901760
  %2060 = vmatmul.f32.gmra.mxu0 %v2059
  %v2061 = vpop.f32.mrf.mxu0
  %v2062 = vadd.f32 %v1981, %v2061
  %2063 = vdwg.mxu0
  %v2064 = vand.u32 %v99, 4294901760
  %2065 = vmatpush.xpose.msra.mxu0 %v2064
  %v2066 = vand.u32 %v96, 4294901760
  %2067 = vmatpush.xpose.msra.mxu0 %v2066
  %v2068 = vand.u32 %v93, 4294901760
  %2069 = vmatpush.xpose.msra.mxu0 %v2068
  %v2070 = vand.u32 %v90, 4294901760
  %2071 = vmatpush.xpose.msra.mxu0 %v2070
  %v2072 = vand.u32 %v87, 4294901760
  %2073 = vmatpush.xpose.msra.mxu0 %v2072
  %v2074 = vand.u32 %v84, 4294901760
  %2075 = vmatpush.xpose.msra.mxu0 %v2074
  %v2076 = vand.u32 %v81, 4294901760
  %2077 = vmatpush.xpose.msra.mxu0 %v2076
  %v2078 = vand.u32 %v78, 4294901760
  %2079 = vmatpush.xpose.msra.mxu0 %v2078
  %v2080 = vand.u32 %v75, 4294901760
  %2081 = vmatpush.xpose.msra.mxu0 %v2080
  %v2082 = vand.u32 %v72, 4294901760
  %2083 = vmatpush.xpose.msra.mxu0 %v2082
  %v2084 = vand.u32 %v69, 4294901760
  %2085 = vmatpush.xpose.msra.mxu0 %v2084
  %v2086 = vand.u32 %v66, 4294901760
  %2087 = vmatpush.xpose.msra.mxu0 %v2086
  %v2088 = vand.u32 %v63, 4294901760
  %2089 = vmatpush.xpose.msra.mxu0 %v2088
  %v2090 = vand.u32 %v60, 4294901760
  %2091 = vmatpush.xpose.msra.mxu0 %v2090
  %v2092 = vand.u32 %v57, 4294901760
  %2093 = vmatpush.xpose.msra.mxu0 %v2092
  %v2094 = vand.u32 %v54, 4294901760
  %2095 = vmatpush.xpose.msra.mxu0 %v2094
  %v2096 = vand.u32 %v1668, 4294901760
  %2097 = vmatmul.f32.gmra.mxu0 %v2096
  %v2098 = vpop.f32.mrf.mxu0
  %v2099 = vadd.f32 %v2050, %v2098
  %v2100 = vand.u32 %v1671, 4294901760
  %2101 = vmatmul.f32.gmra.mxu0 %v2100
  %v2102 = vpop.f32.mrf.mxu0
  %v2103 = vadd.f32 %v2054, %v2102
  %v2104 = vand.u32 %v1674, 4294901760
  %2105 = vmatmul.f32.gmra.mxu0 %v2104
  %v2106 = vpop.f32.mrf.mxu0
  %v2107 = vadd.f32 %v2058, %v2106
  %v2108 = vand.u32 %v1677, 4294901760
  %2109 = vmatmul.f32.gmra.mxu0 %v2108
  %v2110 = vpop.f32.mrf.mxu0
  %v2111 = vadd.f32 %v2062, %v2110
  %2112 = vdwg.mxu0
  %v2114 = vsel %vm442, %v1659, 0
  %v2117 = vsel %vm442, %v1660, 0
  %v2120 = vsel %vm442, %v1661, 0
  %v2123 = vsel %vm442, %v1662, 0
  %v2125 = vand.u32 %v491, 4294901760
  %2126 = vmatpush.xpose.msra.mxu0 %v2125
  %v2127 = vand.u32 %v488, 4294901760
  %2128 = vmatpush.xpose.msra.mxu0 %v2127
  %v2129 = vand.u32 %v485, 4294901760
  %2130 = vmatpush.xpose.msra.mxu0 %v2129
  %v2131 = vand.u32 %v482, 4294901760
  %2132 = vmatpush.xpose.msra.mxu0 %v2131
  %v2133 = vand.u32 %v479, 4294901760
  %2134 = vmatpush.xpose.msra.mxu0 %v2133
  %v2135 = vand.u32 %v476, 4294901760
  %2136 = vmatpush.xpose.msra.mxu0 %v2135
  %v2137 = vand.u32 %v473, 4294901760
  %2138 = vmatpush.xpose.msra.mxu0 %v2137
  %v2139 = vand.u32 %v470, 4294901760
  %2140 = vmatpush.xpose.msra.mxu0 %v2139
  %v2141 = vand.u32 %v467, 4294901760
  %2142 = vmatpush.xpose.msra.mxu0 %v2141
  %v2143 = vand.u32 %v464, 4294901760
  %2144 = vmatpush.xpose.msra.mxu0 %v2143
  %v2145 = vand.u32 %v461, 4294901760
  %2146 = vmatpush.xpose.msra.mxu0 %v2145
  %v2147 = vand.u32 %v458, 4294901760
  %2148 = vmatpush.xpose.msra.mxu0 %v2147
  %v2149 = vand.u32 %v455, 4294901760
  %2150 = vmatpush.xpose.msra.mxu0 %v2149
  %v2151 = vand.u32 %v452, 4294901760
  %2152 = vmatpush.xpose.msra.mxu0 %v2151
  %v2153 = vand.u32 %v449, 4294901760
  %2154 = vmatpush.xpose.msra.mxu0 %v2153
  %v2155 = vand.u32 %v446, 4294901760
  %2156 = vmatpush.xpose.msra.mxu0 %v2155
  %v2157 = vand.u32 %v2114, 4294901760
  %v2158 = vsub.f32 %v2114, %v2157
  %v2159 = vand.u32 %v2158, 4294901760
  %v2160 = vsub.f32 %v2158, %v2159
  %v2161 = vand.u32 %v2160, 4294901760
  %2162 = vmatmul.f32.gmra.mxu0 %v2161
  %v2163 = vpop.f32.mrf.mxu0
  %v2164 = vadd.f32 %v2099, %v2163
  %v2165 = vand.u32 %v2117, 4294901760
  %v2166 = vsub.f32 %v2117, %v2165
  %v2167 = vand.u32 %v2166, 4294901760
  %v2168 = vsub.f32 %v2166, %v2167
  %v2169 = vand.u32 %v2168, 4294901760
  %2170 = vmatmul.f32.gmra.mxu0 %v2169
  %v2171 = vpop.f32.mrf.mxu0
  %v2172 = vadd.f32 %v2103, %v2171
  %v2173 = vand.u32 %v2120, 4294901760
  %v2174 = vsub.f32 %v2120, %v2173
  %v2175 = vand.u32 %v2174, 4294901760
  %v2176 = vsub.f32 %v2174, %v2175
  %v2177 = vand.u32 %v2176, 4294901760
  %2178 = vmatmul.f32.gmra.mxu0 %v2177
  %v2179 = vpop.f32.mrf.mxu0
  %v2180 = vadd.f32 %v2107, %v2179
  %v2181 = vand.u32 %v2123, 4294901760
  %v2182 = vsub.f32 %v2123, %v2181
  %v2183 = vand.u32 %v2182, 4294901760
  %v2184 = vsub.f32 %v2182, %v2183
  %v2185 = vand.u32 %v2184, 4294901760
  %2186 = vmatmul.f32.gmra.mxu0 %v2185
  %v2187 = vpop.f32.mrf.mxu0
  %v2188 = vadd.f32 %v2111, %v2187
  %2189 = vdwg.mxu0
  %v2190 = vand.u32 %v491, 4294901760
  %v2191 = vsub.f32 %v491, %v2190
  %v2192 = vand.u32 %v2191, 4294901760
  %v2193 = vsub.f32 %v2191, %v2192
  %v2194 = vand.u32 %v2193, 4294901760
  %2195 = vmatpush.xpose.msra.mxu0 %v2194
  %v2196 = vand.u32 %v488, 4294901760
  %v2197 = vsub.f32 %v488, %v2196
  %v2198 = vand.u32 %v2197, 4294901760
  %v2199 = vsub.f32 %v2197, %v2198
  %v2200 = vand.u32 %v2199, 4294901760
  %2201 = vmatpush.xpose.msra.mxu0 %v2200
  %v2202 = vand.u32 %v485, 4294901760
  %v2203 = vsub.f32 %v485, %v2202
  %v2204 = vand.u32 %v2203, 4294901760
  %v2205 = vsub.f32 %v2203, %v2204
  %v2206 = vand.u32 %v2205, 4294901760
  %2207 = vmatpush.xpose.msra.mxu0 %v2206
  %v2208 = vand.u32 %v482, 4294901760
  %v2209 = vsub.f32 %v482, %v2208
  %v2210 = vand.u32 %v2209, 4294901760
  %v2211 = vsub.f32 %v2209, %v2210
  %v2212 = vand.u32 %v2211, 4294901760
  %2213 = vmatpush.xpose.msra.mxu0 %v2212
  %v2214 = vand.u32 %v479, 4294901760
  %v2215 = vsub.f32 %v479, %v2214
  %v2216 = vand.u32 %v2215, 4294901760
  %v2217 = vsub.f32 %v2215, %v2216
  %v2218 = vand.u32 %v2217, 4294901760
  %2219 = vmatpush.xpose.msra.mxu0 %v2218
  %v2220 = vand.u32 %v476, 4294901760
  %v2221 = vsub.f32 %v476, %v2220
  %v2222 = vand.u32 %v2221, 4294901760
  %v2223 = vsub.f32 %v2221, %v2222
  %v2224 = vand.u32 %v2223, 4294901760
  %2225 = vmatpush.xpose.msra.mxu0 %v2224
  %v2226 = vand.u32 %v473, 4294901760
  %v2227 = vsub.f32 %v473, %v2226
  %v2228 = vand.u32 %v2227, 4294901760
  %v2229 = vsub.f32 %v2227, %v2228
  %v2230 = vand.u32 %v2229, 4294901760
  %2231 = vmatpush.xpose.msra.mxu0 %v2230
  %v2232 = vand.u32 %v470, 4294901760
  %v2233 = vsub.f32 %v470, %v2232
  %v2234 = vand.u32 %v2233, 4294901760
  %v2235 = vsub.f32 %v2233, %v2234
  %v2236 = vand.u32 %v2235, 4294901760
  %2237 = vmatpush.xpose.msra.mxu0 %v2236
  %v2238 = vand.u32 %v467, 4294901760
  %v2239 = vsub.f32 %v467, %v2238
  %v2240 = vand.u32 %v2239, 4294901760
  %v2241 = vsub.f32 %v2239, %v2240
  %v2242 = vand.u32 %v2241, 4294901760
  %2243 = vmatpush.xpose.msra.mxu0 %v2242
  %v2244 = vand.u32 %v464, 4294901760
  %v2245 = vsub.f32 %v464, %v2244
  %v2246 = vand.u32 %v2245, 4294901760
  %v2247 = vsub.f32 %v2245, %v2246
  %v2248 = vand.u32 %v2247, 4294901760
  %2249 = vmatpush.xpose.msra.mxu0 %v2248
  %v2250 = vand.u32 %v461, 4294901760
  %v2251 = vsub.f32 %v461, %v2250
  %v2252 = vand.u32 %v2251, 4294901760
  %v2253 = vsub.f32 %v2251, %v2252
  %v2254 = vand.u32 %v2253, 4294901760
  %2255 = vmatpush.xpose.msra.mxu0 %v2254
  %v2256 = vand.u32 %v458, 4294901760
  %v2257 = vsub.f32 %v458, %v2256
  %v2258 = vand.u32 %v2257, 4294901760
  %v2259 = vsub.f32 %v2257, %v2258
  %v2260 = vand.u32 %v2259, 4294901760
  %2261 = vmatpush.xpose.msra.mxu0 %v2260
  %v2262 = vand.u32 %v455, 4294901760
  %v2263 = vsub.f32 %v455, %v2262
  %v2264 = vand.u32 %v2263, 4294901760
  %v2265 = vsub.f32 %v2263, %v2264
  %v2266 = vand.u32 %v2265, 4294901760
  %2267 = vmatpush.xpose.msra.mxu0 %v2266
  %v2268 = vand.u32 %v452, 4294901760
  %v2269 = vsub.f32 %v452, %v2268
  %v2270 = vand.u32 %v2269, 4294901760
  %v2271 = vsub.f32 %v2269, %v2270
  %v2272 = vand.u32 %v2271, 4294901760
  %2273 = vmatpush.xpose.msra.mxu0 %v2272
  %v2274 = vand.u32 %v449, 4294901760
  %v2275 = vsub.f32 %v449, %v2274
  %v2276 = vand.u32 %v2275, 4294901760
  %v2277 = vsub.f32 %v2275, %v2276
  %v2278 = vand.u32 %v2277, 4294901760
  %2279 = vmatpush.xpose.msra.mxu0 %v2278
  %v2280 = vand.u32 %v446, 4294901760
  %v2281 = vsub.f32 %v446, %v2280
  %v2282 = vand.u32 %v2281, 4294901760
  %v2283 = vsub.f32 %v2281, %v2282
  %v2284 = vand.u32 %v2283, 4294901760
  %2285 = vmatpush.xpose.msra.mxu0 %v2284
  %v2286 = vand.u32 %v2114, 4294901760
  %2287 = vmatmul.f32.gmra.mxu0 %v2286
  %v2288 = vpop.f32.mrf.mxu0
  %v2289 = vadd.f32 %v2164, %v2288
  %v2290 = vand.u32 %v2117, 4294901760
  %2291 = vmatmul.f32.gmra.mxu0 %v2290
  %v2292 = vpop.f32.mrf.mxu0
  %v2293 = vadd.f32 %v2172, %v2292
  %v2294 = vand.u32 %v2120, 4294901760
  %2295 = vmatmul.f32.gmra.mxu0 %v2294
  %v2296 = vpop.f32.mrf.mxu0
  %v2297 = vadd.f32 %v2180, %v2296
  %v2298 = vand.u32 %v2123, 4294901760
  %2299 = vmatmul.f32.gmra.mxu0 %v2298
  %v2300 = vpop.f32.mrf.mxu0
  %v2301 = vadd.f32 %v2188, %v2300
  %2302 = vdwg.mxu0
  %v2303 = vand.u32 %v491, 4294901760
  %v2304 = vsub.f32 %v491, %v2303
  %2305 = vmatpush.xpose.msra.mxu0 %v2304
  %v2306 = vand.u32 %v488, 4294901760
  %v2307 = vsub.f32 %v488, %v2306
  %2308 = vmatpush.xpose.msra.mxu0 %v2307
  %v2309 = vand.u32 %v485, 4294901760
  %v2310 = vsub.f32 %v485, %v2309
  %2311 = vmatpush.xpose.msra.mxu0 %v2310
  %v2312 = vand.u32 %v482, 4294901760
  %v2313 = vsub.f32 %v482, %v2312
  %2314 = vmatpush.xpose.msra.mxu0 %v2313
  %v2315 = vand.u32 %v479, 4294901760
  %v2316 = vsub.f32 %v479, %v2315
  %2317 = vmatpush.xpose.msra.mxu0 %v2316
  %v2318 = vand.u32 %v476, 4294901760
  %v2319 = vsub.f32 %v476, %v2318
  %2320 = vmatpush.xpose.msra.mxu0 %v2319
  %v2321 = vand.u32 %v473, 4294901760
  %v2322 = vsub.f32 %v473, %v2321
  %2323 = vmatpush.xpose.msra.mxu0 %v2322
  %v2324 = vand.u32 %v470, 4294901760
  %v2325 = vsub.f32 %v470, %v2324
  %2326 = vmatpush.xpose.msra.mxu0 %v2325
  %v2327 = vand.u32 %v467, 4294901760
  %v2328 = vsub.f32 %v467, %v2327
  %2329 = vmatpush.xpose.msra.mxu0 %v2328
  %v2330 = vand.u32 %v464, 4294901760
  %v2331 = vsub.f32 %v464, %v2330
  %2332 = vmatpush.xpose.msra.mxu0 %v2331
  %v2333 = vand.u32 %v461, 4294901760
  %v2334 = vsub.f32 %v461, %v2333
  %2335 = vmatpush.xpose.msra.mxu0 %v2334
  %v2336 = vand.u32 %v458, 4294901760
  %v2337 = vsub.f32 %v458, %v2336
  %2338 = vmatpush.xpose.msra.mxu0 %v2337
  %v2339 = vand.u32 %v455, 4294901760
  %v2340 = vsub.f32 %v455, %v2339
  %2341 = vmatpush.xpose.msra.mxu0 %v2340
  %v2342 = vand.u32 %v452, 4294901760
  %v2343 = vsub.f32 %v452, %v2342
  %2344 = vmatpush.xpose.msra.mxu0 %v2343
  %v2345 = vand.u32 %v449, 4294901760
  %v2346 = vsub.f32 %v449, %v2345
  %2347 = vmatpush.xpose.msra.mxu0 %v2346
  %v2348 = vand.u32 %v446, 4294901760
  %v2349 = vsub.f32 %v446, %v2348
  %2350 = vmatpush.xpose.msra.mxu0 %v2349
  %v2351 = vand.u32 %v2114, 4294901760
  %v2352 = vsub.f32 %v2114, %v2351
  %2353 = vmatmul.f32.gmra.mxu0 %v2352
  %v2354 = vpop.f32.mrf.mxu0
  %v2355 = vadd.f32 %v2289, %v2354
  %v2356 = vand.u32 %v2117, 4294901760
  %v2357 = vsub.f32 %v2117, %v2356
  %2358 = vmatmul.f32.gmra.mxu0 %v2357
  %v2359 = vpop.f32.mrf.mxu0
  %v2360 = vadd.f32 %v2293, %v2359
  %v2361 = vand.u32 %v2120, 4294901760
  %v2362 = vsub.f32 %v2120, %v2361
  %2363 = vmatmul.f32.gmra.mxu0 %v2362
  %v2364 = vpop.f32.mrf.mxu0
  %v2365 = vadd.f32 %v2297, %v2364
  %v2366 = vand.u32 %v2123, 4294901760
  %v2367 = vsub.f32 %v2123, %v2366
  %2368 = vmatmul.f32.gmra.mxu0 %v2367
  %v2369 = vpop.f32.mrf.mxu0
  %v2370 = vadd.f32 %v2301, %v2369
  %2371 = vdwg.mxu0
  %v2372 = vand.u32 %v491, 4294901760
  %2373 = vmatpush.xpose.msra.mxu0 %v2372
  %v2374 = vand.u32 %v488, 4294901760
  %2375 = vmatpush.xpose.msra.mxu0 %v2374
  %v2376 = vand.u32 %v485, 4294901760
  %2377 = vmatpush.xpose.msra.mxu0 %v2376
  %v2378 = vand.u32 %v482, 4294901760
  %2379 = vmatpush.xpose.msra.mxu0 %v2378
  %v2380 = vand.u32 %v479, 4294901760
  %2381 = vmatpush.xpose.msra.mxu0 %v2380
  %v2382 = vand.u32 %v476, 4294901760
  %2383 = vmatpush.xpose.msra.mxu0 %v2382
  %v2384 = vand.u32 %v473, 4294901760
  %2385 = vmatpush.xpose.msra.mxu0 %v2384
  %v2386 = vand.u32 %v470, 4294901760
  %2387 = vmatpush.xpose.msra.mxu0 %v2386
  %v2388 = vand.u32 %v467, 4294901760
  %2389 = vmatpush.xpose.msra.mxu0 %v2388
  %v2390 = vand.u32 %v464, 4294901760
  %2391 = vmatpush.xpose.msra.mxu0 %v2390
  %v2392 = vand.u32 %v461, 4294901760
  %2393 = vmatpush.xpose.msra.mxu0 %v2392
  %v2394 = vand.u32 %v458, 4294901760
  %2395 = vmatpush.xpose.msra.mxu0 %v2394
  %v2396 = vand.u32 %v455, 4294901760
  %2397 = vmatpush.xpose.msra.mxu0 %v2396
  %v2398 = vand.u32 %v452, 4294901760
  %2399 = vmatpush.xpose.msra.mxu0 %v2398
  %v2400 = vand.u32 %v449, 4294901760
  %2401 = vmatpush.xpose.msra.mxu0 %v2400
  %v2402 = vand.u32 %v446, 4294901760
  %2403 = vmatpush.xpose.msra.mxu0 %v2402
  %v2404 = vand.u32 %v2114, 4294901760
  %v2405 = vsub.f32 %v2114, %v2404
  %v2406 = vand.u32 %v2405, 4294901760
  %2407 = vmatmul.f32.gmra.mxu0 %v2406
  %v2408 = vpop.f32.mrf.mxu0
  %v2409 = vadd.f32 %v2355, %v2408
  %v2410 = vand.u32 %v2117, 4294901760
  %v2411 = vsub.f32 %v2117, %v2410
  %v2412 = vand.u32 %v2411, 4294901760
  %2413 = vmatmul.f32.gmra.mxu0 %v2412
  %v2414 = vpop.f32.mrf.mxu0
  %v2415 = vadd.f32 %v2360, %v2414
  %v2416 = vand.u32 %v2120, 4294901760
  %v2417 = vsub.f32 %v2120, %v2416
  %v2418 = vand.u32 %v2417, 4294901760
  %2419 = vmatmul.f32.gmra.mxu0 %v2418
  %v2420 = vpop.f32.mrf.mxu0
  %v2421 = vadd.f32 %v2365, %v2420
  %v2422 = vand.u32 %v2123, 4294901760
  %v2423 = vsub.f32 %v2123, %v2422
  %v2424 = vand.u32 %v2423, 4294901760
  %2425 = vmatmul.f32.gmra.mxu0 %v2424
  %v2426 = vpop.f32.mrf.mxu0
  %v2427 = vadd.f32 %v2370, %v2426
  %2428 = vdwg.mxu0
  %v2429 = vand.u32 %v491, 4294901760
  %v2430 = vsub.f32 %v491, %v2429
  %v2431 = vand.u32 %v2430, 4294901760
  %2432 = vmatpush.xpose.msra.mxu0 %v2431
  %v2433 = vand.u32 %v488, 4294901760
  %v2434 = vsub.f32 %v488, %v2433
  %v2435 = vand.u32 %v2434, 4294901760
  %2436 = vmatpush.xpose.msra.mxu0 %v2435
  %v2437 = vand.u32 %v485, 4294901760
  %v2438 = vsub.f32 %v485, %v2437
  %v2439 = vand.u32 %v2438, 4294901760
  %2440 = vmatpush.xpose.msra.mxu0 %v2439
  %v2441 = vand.u32 %v482, 4294901760
  %v2442 = vsub.f32 %v482, %v2441
  %v2443 = vand.u32 %v2442, 4294901760
  %2444 = vmatpush.xpose.msra.mxu0 %v2443
  %v2445 = vand.u32 %v479, 4294901760
  %v2446 = vsub.f32 %v479, %v2445
  %v2447 = vand.u32 %v2446, 4294901760
  %2448 = vmatpush.xpose.msra.mxu0 %v2447
  %v2449 = vand.u32 %v476, 4294901760
  %v2450 = vsub.f32 %v476, %v2449
  %v2451 = vand.u32 %v2450, 4294901760
  %2452 = vmatpush.xpose.msra.mxu0 %v2451
  %v2453 = vand.u32 %v473, 4294901760
  %v2454 = vsub.f32 %v473, %v2453
  %v2455 = vand.u32 %v2454, 4294901760
  %2456 = vmatpush.xpose.msra.mxu0 %v2455
  %v2457 = vand.u32 %v470, 4294901760
  %v2458 = vsub.f32 %v470, %v2457
  %v2459 = vand.u32 %v2458, 4294901760
  %2460 = vmatpush.xpose.msra.mxu0 %v2459
  %v2461 = vand.u32 %v467, 4294901760
  %v2462 = vsub.f32 %v467, %v2461
  %v2463 = vand.u32 %v2462, 4294901760
  %2464 = vmatpush.xpose.msra.mxu0 %v2463
  %v2465 = vand.u32 %v464, 4294901760
  %v2466 = vsub.f32 %v464, %v2465
  %v2467 = vand.u32 %v2466, 4294901760
  %2468 = vmatpush.xpose.msra.mxu0 %v2467
  %v2469 = vand.u32 %v461, 4294901760
  %v2470 = vsub.f32 %v461, %v2469
  %v2471 = vand.u32 %v2470, 4294901760
  %2472 = vmatpush.xpose.msra.mxu0 %v2471
  %v2473 = vand.u32 %v458, 4294901760
  %v2474 = vsub.f32 %v458, %v2473
  %v2475 = vand.u32 %v2474, 4294901760
  %2476 = vmatpush.xpose.msra.mxu0 %v2475
  %v2477 = vand.u32 %v455, 4294901760
  %v2478 = vsub.f32 %v455, %v2477
  %v2479 = vand.u32 %v2478, 4294901760
  %2480 = vmatpush.xpose.msra.mxu0 %v2479
  %v2481 = vand.u32 %v452, 4294901760
  %v2482 = vsub.f32 %v452, %v2481
  %v2483 = vand.u32 %v2482, 4294901760
  %2484 = vmatpush.xpose.msra.mxu0 %v2483
  %v2485 = vand.u32 %v449, 4294901760
  %v2486 = vsub.f32 %v449, %v2485
  %v2487 = vand.u32 %v2486, 4294901760
  %2488 = vmatpush.xpose.msra.mxu0 %v2487
  %v2489 = vand.u32 %v446, 4294901760
  %v2490 = vsub.f32 %v446, %v2489
  %v2491 = vand.u32 %v2490, 4294901760
  %2492 = vmatpush.xpose.msra.mxu0 %v2491
  %v2493 = vand.u32 %v2114, 4294901760
  %2494 = vmatmul.f32.gmra.mxu0 %v2493
  %v2495 = vpop.f32.mrf.mxu0
  %v2496 = vadd.f32 %v2409, %v2495
  %v2497 = vand.u32 %v2117, 4294901760
  %2498 = vmatmul.f32.gmra.mxu0 %v2497
  %v2499 = vpop.f32.mrf.mxu0
  %v2500 = vadd.f32 %v2415, %v2499
  %v2501 = vand.u32 %v2120, 4294901760
  %2502 = vmatmul.f32.gmra.mxu0 %v2501
  %v2503 = vpop.f32.mrf.mxu0
  %v2504 = vadd.f32 %v2421, %v2503
  %v2505 = vand.u32 %v2123, 4294901760
  %2506 = vmatmul.f32.gmra.mxu0 %v2505
  %v2507 = vpop.f32.mrf.mxu0
  %v2508 = vadd.f32 %v2427, %v2507
  %2509 = vdwg.mxu0
  %v2510 = vand.u32 %v491, 4294901760
  %2511 = vmatpush.xpose.msra.mxu0 %v2510
  %v2512 = vand.u32 %v488, 4294901760
  %2513 = vmatpush.xpose.msra.mxu0 %v2512
  %v2514 = vand.u32 %v485, 4294901760
  %2515 = vmatpush.xpose.msra.mxu0 %v2514
  %v2516 = vand.u32 %v482, 4294901760
  %2517 = vmatpush.xpose.msra.mxu0 %v2516
  %v2518 = vand.u32 %v479, 4294901760
  %2519 = vmatpush.xpose.msra.mxu0 %v2518
  %v2520 = vand.u32 %v476, 4294901760
  %2521 = vmatpush.xpose.msra.mxu0 %v2520
  %v2522 = vand.u32 %v473, 4294901760
  %2523 = vmatpush.xpose.msra.mxu0 %v2522
  %v2524 = vand.u32 %v470, 4294901760
  %2525 = vmatpush.xpose.msra.mxu0 %v2524
  %v2526 = vand.u32 %v467, 4294901760
  %2527 = vmatpush.xpose.msra.mxu0 %v2526
  %v2528 = vand.u32 %v464, 4294901760
  %2529 = vmatpush.xpose.msra.mxu0 %v2528
  %v2530 = vand.u32 %v461, 4294901760
  %2531 = vmatpush.xpose.msra.mxu0 %v2530
  %v2532 = vand.u32 %v458, 4294901760
  %2533 = vmatpush.xpose.msra.mxu0 %v2532
  %v2534 = vand.u32 %v455, 4294901760
  %2535 = vmatpush.xpose.msra.mxu0 %v2534
  %v2536 = vand.u32 %v452, 4294901760
  %2537 = vmatpush.xpose.msra.mxu0 %v2536
  %v2538 = vand.u32 %v449, 4294901760
  %2539 = vmatpush.xpose.msra.mxu0 %v2538
  %v2540 = vand.u32 %v446, 4294901760
  %2541 = vmatpush.xpose.msra.mxu0 %v2540
  %v2542 = vand.u32 %v2114, 4294901760
  %2543 = vmatmul.f32.gmra.mxu0 %v2542
  %v2544 = vpop.f32.mrf.mxu0
  %v2545 = vadd.f32 %v2496, %v2544
  %v2546 = vand.u32 %v2117, 4294901760
  %2547 = vmatmul.f32.gmra.mxu0 %v2546
  %v2548 = vpop.f32.mrf.mxu0
  %v2549 = vadd.f32 %v2500, %v2548
  %v2550 = vand.u32 %v2120, 4294901760
  %2551 = vmatmul.f32.gmra.mxu0 %v2550
  %v2552 = vpop.f32.mrf.mxu0
  %v2553 = vadd.f32 %v2504, %v2552
  %v2554 = vand.u32 %v2123, 4294901760
  %2555 = vmatmul.f32.gmra.mxu0 %v2554
  %v2556 = vpop.f32.mrf.mxu0
  %v2557 = vadd.f32 %v2508, %v2556
  %2558 = vdwg.mxu0
  %v2559 = vld [vmem:[%s1] sm:$0xff]
  %v2560 = vld [vmem:[%s1 + $0x8] sm:$0xff]
  %v2561 = vld [vmem:[%s1 + $0x10] sm:$0xff]
  %v2562 = vld [vmem:[%s1 + $0x18] sm:$0xff]
  %2564 = vset.pattern.permute.xlu0 6
  %2565 = vperm.xlu0 %2564, %v2559
  %v2566 = vpop.permute.xlu0 %2565
  %2569 = vset.pattern.permute.xlu0 6
  %2570 = vperm.xlu0 %2569, %v2560
  %v2571 = vpop.permute.xlu0 %2570
  %2574 = vset.pattern.permute.xlu0 6
  %2575 = vperm.xlu0 %2574, %v2561
  %v2576 = vpop.permute.xlu0 %2575
  %2579 = vset.pattern.permute.xlu0 6
  %2580 = vperm.xlu0 %2579, %v2562
  %v2581 = vpop.permute.xlu0 %2580
  %v2583 = vperm.slane %v1644, 0
  %v2584 = vmul.f32 %v2566, %v2583
  %v2585 = vmul.f32 %v2571, %v2583
  %v2586 = vmul.f32 %v2576, %v2583
  %v2587 = vmul.f32 %v2581, %v2583
  %v2588 = vsub.f32 %v2545, %v2584
  %v2589 = vsub.f32 %v2549, %v2585
  %v2590 = vsub.f32 %v2553, %v2586
  %v2591 = vsub.f32 %v2557, %v2587
  %v2592 = vperm.slane %v1658, 0
  %v2593 = vmul.f32 %v2588, %v2592
  %v2594 = vmul.f32 %v2589, %v2592
  %v2595 = vmul.f32 %v2590, %v2592
  %v2596 = vmul.f32 %v2591, %v2592
  %2597 = vset.pattern.permute.xlu0 0
  %2598 = vperm.xlu0 %2597, %v2559
  %v2599 = vpop.permute.xlu0 %2598
  %2601 = vset.pattern.permute.xlu0 0
  %2602 = vperm.xlu0 %2601, %v2560
  %v2603 = vpop.permute.xlu0 %2602
  %2605 = vset.pattern.permute.xlu0 0
  %2606 = vperm.xlu0 %2605, %v2561
  %v2607 = vpop.permute.xlu0 %2606
  %2609 = vset.pattern.permute.xlu0 0
  %2610 = vperm.xlu0 %2609, %v2562
  %v2611 = vpop.permute.xlu0 %2610
  %v2613 = vadd.f32 %v2593, %v2599
  %v2614 = vadd.f32 %v2594, %v2603
  %v2615 = vadd.f32 %v2595, %v2607
  %v2616 = vadd.f32 %v2596, %v2611
  %vm2617 = vcmask 261120
  %v2618 = vsel %vm2617, 1.0, 0
  %2620 = vmatpush.msra.mxu0 0.0
  %2621 = vmatpush.msra.mxu0 0.0
  %2622 = vmatpush.msra.mxu0 0.0
  %2623 = vmatpush.msra.mxu0 0.0
  %2624 = vmatpush.msra.mxu0 0.0
  %2625 = vmatpush.msra.mxu0 0.0
  %2626 = vmatpush.msra.mxu0 0.0
  %2627 = vmatpush.msra.mxu0 0.0
  %2628 = vmatpush.msra.mxu0 0.0
  %2629 = vmatpush.msra.mxu0 0.0
  %2630 = vmatpush.msra.mxu0 0.0
  %2631 = vmatpush.msra.mxu0 0.0
  %v2632 = vand.u32 %v2616, 4294901760
  %2633 = vmatpush.msra.mxu0 %v2632
  %v2634 = vand.u32 %v2615, 4294901760
  %2635 = vmatpush.msra.mxu0 %v2634
  %v2636 = vand.u32 %v2614, 4294901760
  %2637 = vmatpush.msra.mxu0 %v2636
  %v2638 = vand.u32 %v2613, 4294901760
  %2639 = vmatpush.msra.mxu0 %v2638
  %v2640 = vand.u32 %v2618, 4294901760
  %v2641 = vsub.f32 %v2618, %v2640
  %v2642 = vand.u32 %v2641, 4294901760
  %v2643 = vsub.f32 %v2641, %v2642
  %v2644 = vand.u32 %v2643, 4294901760
  %2645 = vmatmul.f32.gmra.mxu0 %v2644
  %v2646 = vpop.f32.mrf.mxu0
  %v2647 = vadd.f32 0.0, %v2646
  %2648 = vdwg.mxu0
  %2649 = vmatpush.msra.mxu0 0.0
  %2650 = vmatpush.msra.mxu0 0.0
  %2651 = vmatpush.msra.mxu0 0.0
  %2652 = vmatpush.msra.mxu0 0.0
  %2653 = vmatpush.msra.mxu0 0.0
  %2654 = vmatpush.msra.mxu0 0.0
  %2655 = vmatpush.msra.mxu0 0.0
  %2656 = vmatpush.msra.mxu0 0.0
  %2657 = vmatpush.msra.mxu0 0.0
  %2658 = vmatpush.msra.mxu0 0.0
  %2659 = vmatpush.msra.mxu0 0.0
  %2660 = vmatpush.msra.mxu0 0.0
  %v2661 = vand.u32 %v2616, 4294901760
  %v2662 = vsub.f32 %v2616, %v2661
  %v2663 = vand.u32 %v2662, 4294901760
  %v2664 = vsub.f32 %v2662, %v2663
  %v2665 = vand.u32 %v2664, 4294901760
  %2666 = vmatpush.msra.mxu0 %v2665
  %v2667 = vand.u32 %v2615, 4294901760
  %v2668 = vsub.f32 %v2615, %v2667
  %v2669 = vand.u32 %v2668, 4294901760
  %v2670 = vsub.f32 %v2668, %v2669
  %v2671 = vand.u32 %v2670, 4294901760
  %2672 = vmatpush.msra.mxu0 %v2671
  %v2673 = vand.u32 %v2614, 4294901760
  %v2674 = vsub.f32 %v2614, %v2673
  %v2675 = vand.u32 %v2674, 4294901760
  %v2676 = vsub.f32 %v2674, %v2675
  %v2677 = vand.u32 %v2676, 4294901760
  %2678 = vmatpush.msra.mxu0 %v2677
  %v2679 = vand.u32 %v2613, 4294901760
  %v2680 = vsub.f32 %v2613, %v2679
  %v2681 = vand.u32 %v2680, 4294901760
  %v2682 = vsub.f32 %v2680, %v2681
  %v2683 = vand.u32 %v2682, 4294901760
  %2684 = vmatpush.msra.mxu0 %v2683
  %v2685 = vand.u32 %v2618, 4294901760
  %2686 = vmatmul.f32.gmra.mxu0 %v2685
  %v2687 = vpop.f32.mrf.mxu0
  %v2688 = vadd.f32 %v2647, %v2687
  %2689 = vdwg.mxu0
  %2690 = vmatpush.msra.mxu0 0.0
  %2691 = vmatpush.msra.mxu0 0.0
  %2692 = vmatpush.msra.mxu0 0.0
  %2693 = vmatpush.msra.mxu0 0.0
  %2694 = vmatpush.msra.mxu0 0.0
  %2695 = vmatpush.msra.mxu0 0.0
  %2696 = vmatpush.msra.mxu0 0.0
  %2697 = vmatpush.msra.mxu0 0.0
  %2698 = vmatpush.msra.mxu0 0.0
  %2699 = vmatpush.msra.mxu0 0.0
  %2700 = vmatpush.msra.mxu0 0.0
  %2701 = vmatpush.msra.mxu0 0.0
  %v2702 = vand.u32 %v2616, 4294901760
  %v2703 = vsub.f32 %v2616, %v2702
  %2704 = vmatpush.msra.mxu0 %v2703
  %v2705 = vand.u32 %v2615, 4294901760
  %v2706 = vsub.f32 %v2615, %v2705
  %2707 = vmatpush.msra.mxu0 %v2706
  %v2708 = vand.u32 %v2614, 4294901760
  %v2709 = vsub.f32 %v2614, %v2708
  %2710 = vmatpush.msra.mxu0 %v2709
  %v2711 = vand.u32 %v2613, 4294901760
  %v2712 = vsub.f32 %v2613, %v2711
  %2713 = vmatpush.msra.mxu0 %v2712
  %v2714 = vand.u32 %v2618, 4294901760
  %v2715 = vsub.f32 %v2618, %v2714
  %2716 = vmatmul.f32.gmra.mxu0 %v2715
  %v2717 = vpop.f32.mrf.mxu0
  %v2718 = vadd.f32 %v2688, %v2717
  %2719 = vdwg.mxu0
  %2720 = vmatpush.msra.mxu0 0.0
  %2721 = vmatpush.msra.mxu0 0.0
  %2722 = vmatpush.msra.mxu0 0.0
  %2723 = vmatpush.msra.mxu0 0.0
  %2724 = vmatpush.msra.mxu0 0.0
  %2725 = vmatpush.msra.mxu0 0.0
  %2726 = vmatpush.msra.mxu0 0.0
  %2727 = vmatpush.msra.mxu0 0.0
  %2728 = vmatpush.msra.mxu0 0.0
  %2729 = vmatpush.msra.mxu0 0.0
  %2730 = vmatpush.msra.mxu0 0.0
  %2731 = vmatpush.msra.mxu0 0.0
  %v2732 = vand.u32 %v2616, 4294901760
  %2733 = vmatpush.msra.mxu0 %v2732
  %v2734 = vand.u32 %v2615, 4294901760
  %2735 = vmatpush.msra.mxu0 %v2734
  %v2736 = vand.u32 %v2614, 4294901760
  %2737 = vmatpush.msra.mxu0 %v2736
  %v2738 = vand.u32 %v2613, 4294901760
  %2739 = vmatpush.msra.mxu0 %v2738
  %v2740 = vand.u32 %v2618, 4294901760
  %v2741 = vsub.f32 %v2618, %v2740
  %v2742 = vand.u32 %v2741, 4294901760
  %2743 = vmatmul.f32.gmra.mxu0 %v2742
  %v2744 = vpop.f32.mrf.mxu0
  %v2745 = vadd.f32 %v2718, %v2744
  %2746 = vdwg.mxu0
  %2747 = vmatpush.msra.mxu0 0.0
  %2748 = vmatpush.msra.mxu0 0.0
  %2749 = vmatpush.msra.mxu0 0.0
  %2750 = vmatpush.msra.mxu0 0.0
  %2751 = vmatpush.msra.mxu0 0.0
  %2752 = vmatpush.msra.mxu0 0.0
  %2753 = vmatpush.msra.mxu0 0.0
  %2754 = vmatpush.msra.mxu0 0.0
  %2755 = vmatpush.msra.mxu0 0.0
  %2756 = vmatpush.msra.mxu0 0.0
  %2757 = vmatpush.msra.mxu0 0.0
  %2758 = vmatpush.msra.mxu0 0.0
  %v2759 = vand.u32 %v2616, 4294901760
  %v2760 = vsub.f32 %v2616, %v2759
  %v2761 = vand.u32 %v2760, 4294901760
  %2762 = vmatpush.msra.mxu0 %v2761
  %v2763 = vand.u32 %v2615, 4294901760
  %v2764 = vsub.f32 %v2615, %v2763
  %v2765 = vand.u32 %v2764, 4294901760
  %2766 = vmatpush.msra.mxu0 %v2765
  %v2767 = vand.u32 %v2614, 4294901760
  %v2768 = vsub.f32 %v2614, %v2767
  %v2769 = vand.u32 %v2768, 4294901760
  %2770 = vmatpush.msra.mxu0 %v2769
  %v2771 = vand.u32 %v2613, 4294901760
  %v2772 = vsub.f32 %v2613, %v2771
  %v2773 = vand.u32 %v2772, 4294901760
  %2774 = vmatpush.msra.mxu0 %v2773
  %v2775 = vand.u32 %v2618, 4294901760
  %2776 = vmatmul.f32.gmra.mxu0 %v2775
  %v2777 = vpop.f32.mrf.mxu0
  %v2778 = vadd.f32 %v2745, %v2777
  %2779 = vdwg.mxu0
  %2780 = vmatpush.msra.mxu0 0.0
  %2781 = vmatpush.msra.mxu0 0.0
  %2782 = vmatpush.msra.mxu0 0.0
  %2783 = vmatpush.msra.mxu0 0.0
  %2784 = vmatpush.msra.mxu0 0.0
  %2785 = vmatpush.msra.mxu0 0.0
  %2786 = vmatpush.msra.mxu0 0.0
  %2787 = vmatpush.msra.mxu0 0.0
  %2788 = vmatpush.msra.mxu0 0.0
  %2789 = vmatpush.msra.mxu0 0.0
  %2790 = vmatpush.msra.mxu0 0.0
  %2791 = vmatpush.msra.mxu0 0.0
  %v2792 = vand.u32 %v2616, 4294901760
  %2793 = vmatpush.msra.mxu0 %v2792
  %v2794 = vand.u32 %v2615, 4294901760
  %2795 = vmatpush.msra.mxu0 %v2794
  %v2796 = vand.u32 %v2614, 4294901760
  %2797 = vmatpush.msra.mxu0 %v2796
  %v2798 = vand.u32 %v2613, 4294901760
  %2799 = vmatpush.msra.mxu0 %v2798
  %v2800 = vand.u32 %v2618, 4294901760
  %2801 = vmatmul.f32.gmra.mxu0 %v2800
  %v2802 = vpop.f32.mrf.mxu0
  %v2803 = vadd.f32 %v2778, %v2802
  %2804 = vdwg.mxu0
  %v2805 = vmul.f32 %v2803, 0.03125
  %v2806 = vperm.slane %v2805, 0
  %v2807 = vsub.f32 %v2613, %v2806
  %v2808 = vsub.f32 %v2614, %v2806
  %v2809 = vsub.f32 %v2615, %v2806
  %v2810 = vsub.f32 %v2616, %v2806
  %v2811 = vmul.f32 %v2807, %v2807
  %v2812 = vmul.f32 %v2808, %v2808
  %v2813 = vmul.f32 %v2809, %v2809
  %v2814 = vmul.f32 %v2810, %v2810
  %2815 = vmatpush.msra.mxu0 0.0
  %2816 = vmatpush.msra.mxu0 0.0
  %2817 = vmatpush.msra.mxu0 0.0
  %2818 = vmatpush.msra.mxu0 0.0
  %2819 = vmatpush.msra.mxu0 0.0
  %2820 = vmatpush.msra.mxu0 0.0
  %2821 = vmatpush.msra.mxu0 0.0
  %2822 = vmatpush.msra.mxu0 0.0
  %2823 = vmatpush.msra.mxu0 0.0
  %2824 = vmatpush.msra.mxu0 0.0
  %2825 = vmatpush.msra.mxu0 0.0
  %2826 = vmatpush.msra.mxu0 0.0
  %v2827 = vand.u32 %v2814, 4294901760
  %2828 = vmatpush.msra.mxu0 %v2827
  %v2829 = vand.u32 %v2813, 4294901760
  %2830 = vmatpush.msra.mxu0 %v2829
  %v2831 = vand.u32 %v2812, 4294901760
  %2832 = vmatpush.msra.mxu0 %v2831
  %v2833 = vand.u32 %v2811, 4294901760
  %2834 = vmatpush.msra.mxu0 %v2833
  %v2835 = vand.u32 %v2618, 4294901760
  %v2836 = vsub.f32 %v2618, %v2835
  %v2837 = vand.u32 %v2836, 4294901760
  %v2838 = vsub.f32 %v2836, %v2837
  %v2839 = vand.u32 %v2838, 4294901760
  %2840 = vmatmul.f32.gmra.mxu0 %v2839
  %v2841 = vpop.f32.mrf.mxu0
  %v2842 = vadd.f32 0.0, %v2841
  %2843 = vdwg.mxu0
  %2844 = vmatpush.msra.mxu0 0.0
  %2845 = vmatpush.msra.mxu0 0.0
  %2846 = vmatpush.msra.mxu0 0.0
  %2847 = vmatpush.msra.mxu0 0.0
  %2848 = vmatpush.msra.mxu0 0.0
  %2849 = vmatpush.msra.mxu0 0.0
  %2850 = vmatpush.msra.mxu0 0.0
  %2851 = vmatpush.msra.mxu0 0.0
  %2852 = vmatpush.msra.mxu0 0.0
  %2853 = vmatpush.msra.mxu0 0.0
  %2854 = vmatpush.msra.mxu0 0.0
  %2855 = vmatpush.msra.mxu0 0.0
  %v2856 = vand.u32 %v2814, 4294901760
  %v2857 = vsub.f32 %v2814, %v2856
  %v2858 = vand.u32 %v2857, 4294901760
  %v2859 = vsub.f32 %v2857, %v2858
  %v2860 = vand.u32 %v2859, 4294901760
  %2861 = vmatpush.msra.mxu0 %v2860
  %v2862 = vand.u32 %v2813, 4294901760
  %v2863 = vsub.f32 %v2813, %v2862
  %v2864 = vand.u32 %v2863, 4294901760
  %v2865 = vsub.f32 %v2863, %v2864
  %v2866 = vand.u32 %v2865, 4294901760
  %2867 = vmatpush.msra.mxu0 %v2866
  %v2868 = vand.u32 %v2812, 4294901760
  %v2869 = vsub.f32 %v2812, %v2868
  %v2870 = vand.u32 %v2869, 4294901760
  %v2871 = vsub.f32 %v2869, %v2870
  %v2872 = vand.u32 %v2871, 4294901760
  %2873 = vmatpush.msra.mxu0 %v2872
  %v2874 = vand.u32 %v2811, 4294901760
  %v2875 = vsub.f32 %v2811, %v2874
  %v2876 = vand.u32 %v2875, 4294901760
  %v2877 = vsub.f32 %v2875, %v2876
  %v2878 = vand.u32 %v2877, 4294901760
  %2879 = vmatpush.msra.mxu0 %v2878
  %v2880 = vand.u32 %v2618, 4294901760
  %2881 = vmatmul.f32.gmra.mxu0 %v2880
  %v2882 = vpop.f32.mrf.mxu0
  %v2883 = vadd.f32 %v2842, %v2882
  %2884 = vdwg.mxu0
  %2885 = vmatpush.msra.mxu0 0.0
  %2886 = vmatpush.msra.mxu0 0.0
  %2887 = vmatpush.msra.mxu0 0.0
  %2888 = vmatpush.msra.mxu0 0.0
  %2889 = vmatpush.msra.mxu0 0.0
  %2890 = vmatpush.msra.mxu0 0.0
  %2891 = vmatpush.msra.mxu0 0.0
  %2892 = vmatpush.msra.mxu0 0.0
  %2893 = vmatpush.msra.mxu0 0.0
  %2894 = vmatpush.msra.mxu0 0.0
  %2895 = vmatpush.msra.mxu0 0.0
  %2896 = vmatpush.msra.mxu0 0.0
  %v2897 = vand.u32 %v2814, 4294901760
  %v2898 = vsub.f32 %v2814, %v2897
  %2899 = vmatpush.msra.mxu0 %v2898
  %v2900 = vand.u32 %v2813, 4294901760
  %v2901 = vsub.f32 %v2813, %v2900
  %2902 = vmatpush.msra.mxu0 %v2901
  %v2903 = vand.u32 %v2812, 4294901760
  %v2904 = vsub.f32 %v2812, %v2903
  %2905 = vmatpush.msra.mxu0 %v2904
  %v2906 = vand.u32 %v2811, 4294901760
  %v2907 = vsub.f32 %v2811, %v2906
  %2908 = vmatpush.msra.mxu0 %v2907
  %v2909 = vand.u32 %v2618, 4294901760
  %v2910 = vsub.f32 %v2618, %v2909
  %2911 = vmatmul.f32.gmra.mxu0 %v2910
  %v2912 = vpop.f32.mrf.mxu0
  %v2913 = vadd.f32 %v2883, %v2912
  %2914 = vdwg.mxu0
  %2915 = vmatpush.msra.mxu0 0.0
  %2916 = vmatpush.msra.mxu0 0.0
  %2917 = vmatpush.msra.mxu0 0.0
  %2918 = vmatpush.msra.mxu0 0.0
  %2919 = vmatpush.msra.mxu0 0.0
  %2920 = vmatpush.msra.mxu0 0.0
  %2921 = vmatpush.msra.mxu0 0.0
  %2922 = vmatpush.msra.mxu0 0.0
  %2923 = vmatpush.msra.mxu0 0.0
  %2924 = vmatpush.msra.mxu0 0.0
  %2925 = vmatpush.msra.mxu0 0.0
  %2926 = vmatpush.msra.mxu0 0.0
  %v2927 = vand.u32 %v2814, 4294901760
  %2928 = vmatpush.msra.mxu0 %v2927
  %v2929 = vand.u32 %v2813, 4294901760
  %2930 = vmatpush.msra.mxu0 %v2929
  %v2931 = vand.u32 %v2812, 4294901760
  %2932 = vmatpush.msra.mxu0 %v2931
  %v2933 = vand.u32 %v2811, 4294901760
  %2934 = vmatpush.msra.mxu0 %v2933
  %v2935 = vand.u32 %v2618, 4294901760
  %v2936 = vsub.f32 %v2618, %v2935
  %v2937 = vand.u32 %v2936, 4294901760
  %2938 = vmatmul.f32.gmra.mxu0 %v2937
  %v2939 = vpop.f32.mrf.mxu0
  %v2940 = vadd.f32 %v2913, %v2939
  %2941 = vdwg.mxu0
  %2942 = vmatpush.msra.mxu0 0.0
  %2943 = vmatpush.msra.mxu0 0.0
  %2944 = vmatpush.msra.mxu0 0.0
  %2945 = vmatpush.msra.mxu0 0.0
  %2946 = vmatpush.msra.mxu0 0.0
  %2947 = vmatpush.msra.mxu0 0.0
  %2948 = vmatpush.msra.mxu0 0.0
  %2949 = vmatpush.msra.mxu0 0.0
  %2950 = vmatpush.msra.mxu0 0.0
  %2951 = vmatpush.msra.mxu0 0.0
  %2952 = vmatpush.msra.mxu0 0.0
  %2953 = vmatpush.msra.mxu0 0.0
  %v2954 = vand.u32 %v2814, 4294901760
  %v2955 = vsub.f32 %v2814, %v2954
  %v2956 = vand.u32 %v2955, 4294901760
  %2957 = vmatpush.msra.mxu0 %v2956
  %v2958 = vand.u32 %v2813, 4294901760
  %v2959 = vsub.f32 %v2813, %v2958
  %v2960 = vand.u32 %v2959, 4294901760
  %2961 = vmatpush.msra.mxu0 %v2960
  %v2962 = vand.u32 %v2812, 4294901760
  %v2963 = vsub.f32 %v2812, %v2962
  %v2964 = vand.u32 %v2963, 4294901760
  %2965 = vmatpush.msra.mxu0 %v2964
  %v2966 = vand.u32 %v2811, 4294901760
  %v2967 = vsub.f32 %v2811, %v2966
  %v2968 = vand.u32 %v2967, 4294901760
  %2969 = vmatpush.msra.mxu0 %v2968
  %v2970 = vand.u32 %v2618, 4294901760
  %2971 = vmatmul.f32.gmra.mxu0 %v2970
  %v2972 = vpop.f32.mrf.mxu0
  %v2973 = vadd.f32 %v2940, %v2972
  %2974 = vdwg.mxu0
  %2975 = vmatpush.msra.mxu0 0.0
  %2976 = vmatpush.msra.mxu0 0.0
  %2977 = vmatpush.msra.mxu0 0.0
  %2978 = vmatpush.msra.mxu0 0.0
  %2979 = vmatpush.msra.mxu0 0.0
  %2980 = vmatpush.msra.mxu0 0.0
  %2981 = vmatpush.msra.mxu0 0.0
  %2982 = vmatpush.msra.mxu0 0.0
  %2983 = vmatpush.msra.mxu0 0.0
  %2984 = vmatpush.msra.mxu0 0.0
  %2985 = vmatpush.msra.mxu0 0.0
  %2986 = vmatpush.msra.mxu0 0.0
  %v2987 = vand.u32 %v2814, 4294901760
  %2988 = vmatpush.msra.mxu0 %v2987
  %v2989 = vand.u32 %v2813, 4294901760
  %2990 = vmatpush.msra.mxu0 %v2989
  %v2991 = vand.u32 %v2812, 4294901760
  %2992 = vmatpush.msra.mxu0 %v2991
  %v2993 = vand.u32 %v2811, 4294901760
  %2994 = vmatpush.msra.mxu0 %v2993
  %v2995 = vand.u32 %v2618, 4294901760
  %2996 = vmatmul.f32.gmra.mxu0 %v2995
  %v2997 = vpop.f32.mrf.mxu0
  %v2998 = vadd.f32 %v2973, %v2997
  %2999 = vdwg.mxu0
  %v3000 = vmul.f32 %v2998, 0.03125
  %v3001 = vadd.f32 %v3000, 1e-05
  %v3002 = vrsqrt.pop %v3001
  %v3003 = vmul.f32 %v3002, %v3001
  %v3004 = vmul.f32 %v3003, %v3002
  %v3005 = vmul.f32 0.5, %v3004
  %v3006 = vsub.f32 1.5, %v3005
  %v3007 = vmul.f32 %v3002, %v3006
  %vm3008 = vweird.f32 %v3001
  %vm3009 = vweird.f32 %v3002
  %vm3010 = vmor %vm3008, %vm3009
  %v3011 = vsel %vm3010, %v3002, %v3007
  %v3012 = vperm.slane %v3011, 0
  %v3013 = vmul.f32 %v2807, %v3012
  %v3014 = vmul.f32 %v2808, %v3012
  %v3015 = vmul.f32 %v2809, %v3012
  %v3016 = vmul.f32 %v2810, %v3012
  %3017 = vset.pattern.permute.xlu0 7
  %3018 = vperm.xlu0 %3017, %v2559
  %v3019 = vpop.permute.xlu0 %3018
  %3021 = vset.pattern.permute.xlu0 7
  %3022 = vperm.xlu0 %3021, %v2560
  %v3023 = vpop.permute.xlu0 %3022
  %3025 = vset.pattern.permute.xlu0 7
  %3026 = vperm.xlu0 %3025, %v2561
  %v3027 = vpop.permute.xlu0 %3026
  %3029 = vset.pattern.permute.xlu0 7
  %3030 = vperm.xlu0 %3029, %v2562
  %v3031 = vpop.permute.xlu0 %3030
  %v3033 = vmul.f32 %v3013, %v3019
  %v3034 = vmul.f32 %v3014, %v3023
  %v3035 = vmul.f32 %v3015, %v3027
  %v3036 = vmul.f32 %v3016, %v3031
  %3037 = vset.pattern.permute.xlu0 8
  %3038 = vperm.xlu0 %3037, %v2559
  %v3039 = vpop.permute.xlu0 %3038
  %3041 = vset.pattern.permute.xlu0 8
  %3042 = vperm.xlu0 %3041, %v2560
  %v3043 = vpop.permute.xlu0 %3042
  %3045 = vset.pattern.permute.xlu0 8
  %3046 = vperm.xlu0 %3045, %v2561
  %v3047 = vpop.permute.xlu0 %3046
  %3049 = vset.pattern.permute.xlu0 8
  %3050 = vperm.xlu0 %3049, %v2562
  %v3051 = vpop.permute.xlu0 %3050
  %v3053 = vadd.f32 %v3033, %v3039
  %v3054 = vadd.f32 %v3034, %v3043
  %v3055 = vadd.f32 %v3035, %v3047
  %v3056 = vadd.f32 %v3036, %v3051
  %v3057 = vmax.f32 %v3053, 0.0
  %v3058 = vmax.f32 %v3054, 0.0
  %v3059 = vmax.f32 %v3055, 0.0
  %v3060 = vmax.f32 %v3056, 0.0
  %v3061 = vld [vmem:[%s0 + $0x40] sm:$0xff]
  %v3062 = vld [vmem:[%s0 + $0x48] sm:$0xff]
  %v3063 = vld [vmem:[%s0 + $0x50] sm:$0xff]
  %v3064 = vld [vmem:[%s0 + $0x58] sm:$0xff]
  %3065 = vset.pattern.permute.xlu0 1
  %3066 = vperm.xlu0 %3065, %v2559
  %v3067 = vpop.permute.xlu0 %3066
  %3069 = vset.pattern.permute.xlu0 1
  %3070 = vperm.xlu0 %3069, %v2560
  %v3071 = vpop.permute.xlu0 %3070
  %3073 = vset.pattern.permute.xlu0 1
  %3074 = vperm.xlu0 %3073, %v2561
  %v3075 = vpop.permute.xlu0 %3074
  %3077 = vset.pattern.permute.xlu0 1
  %3078 = vperm.xlu0 %3077, %v2562
  %v3079 = vpop.permute.xlu0 %3078
  %v3082 = vsel %vm2617, %v3061, 0
  %v3085 = vsel %vm2617, %v3062, 0
  %v3088 = vsel %vm2617, %v3063, 0
  %v3091 = vsel %vm2617, %v3064, 0
  %3093 = vmatpush.msra.mxu0 0.0
  %3094 = vmatpush.msra.mxu0 0.0
  %3095 = vmatpush.msra.mxu0 0.0
  %3096 = vmatpush.msra.mxu0 0.0
  %3097 = vmatpush.msra.mxu0 0.0
  %3098 = vmatpush.msra.mxu0 0.0
  %3099 = vmatpush.msra.mxu0 0.0
  %3100 = vmatpush.msra.mxu0 0.0
  %3101 = vmatpush.msra.mxu0 0.0
  %3102 = vmatpush.msra.mxu0 0.0
  %3103 = vmatpush.msra.mxu0 0.0
  %3104 = vmatpush.msra.mxu0 0.0
  %v3105 = vand.u32 %v3060, 4294901760
  %3106 = vmatpush.msra.mxu0 %v3105
  %v3107 = vand.u32 %v3059, 4294901760
  %3108 = vmatpush.msra.mxu0 %v3107
  %v3109 = vand.u32 %v3058, 4294901760
  %3110 = vmatpush.msra.mxu0 %v3109
  %v3111 = vand.u32 %v3057, 4294901760
  %3112 = vmatpush.msra.mxu0 %v3111
  %v3113 = vand.u32 %v3082, 4294901760
  %v3114 = vsub.f32 %v3082, %v3113
  %v3115 = vand.u32 %v3114, 4294901760
  %v3116 = vsub.f32 %v3114, %v3115
  %v3117 = vand.u32 %v3116, 4294901760
  %3118 = vmatmul.f32.gmra.mxu0 %v3117
  %v3119 = vpop.f32.mrf.mxu0
  %v3120 = vadd.f32 %v3067, %v3119
  %v3121 = vand.u32 %v3085, 4294901760
  %v3122 = vsub.f32 %v3085, %v3121
  %v3123 = vand.u32 %v3122, 4294901760
  %v3124 = vsub.f32 %v3122, %v3123
  %v3125 = vand.u32 %v3124, 4294901760
  %3126 = vmatmul.f32.gmra.mxu0 %v3125
  %v3127 = vpop.f32.mrf.mxu0
  %v3128 = vadd.f32 %v3071, %v3127
  %v3129 = vand.u32 %v3088, 4294901760
  %v3130 = vsub.f32 %v3088, %v3129
  %v3131 = vand.u32 %v3130, 4294901760
  %v3132 = vsub.f32 %v3130, %v3131
  %v3133 = vand.u32 %v3132, 4294901760
  %3134 = vmatmul.f32.gmra.mxu0 %v3133
  %v3135 = vpop.f32.mrf.mxu0
  %v3136 = vadd.f32 %v3075, %v3135
  %v3137 = vand.u32 %v3091, 4294901760
  %v3138 = vsub.f32 %v3091, %v3137
  %v3139 = vand.u32 %v3138, 4294901760
  %v3140 = vsub.f32 %v3138, %v3139
  %v3141 = vand.u32 %v3140, 4294901760
  %3142 = vmatmul.f32.gmra.mxu0 %v3141
  %v3143 = vpop.f32.mrf.mxu0
  %v3144 = vadd.f32 %v3079, %v3143
  %3145 = vdwg.mxu0
  %3146 = vmatpush.msra.mxu0 0.0
  %3147 = vmatpush.msra.mxu0 0.0
  %3148 = vmatpush.msra.mxu0 0.0
  %3149 = vmatpush.msra.mxu0 0.0
  %3150 = vmatpush.msra.mxu0 0.0
  %3151 = vmatpush.msra.mxu0 0.0
  %3152 = vmatpush.msra.mxu0 0.0
  %3153 = vmatpush.msra.mxu0 0.0
  %3154 = vmatpush.msra.mxu0 0.0
  %3155 = vmatpush.msra.mxu0 0.0
  %3156 = vmatpush.msra.mxu0 0.0
  %3157 = vmatpush.msra.mxu0 0.0
  %v3158 = vand.u32 %v3060, 4294901760
  %v3159 = vsub.f32 %v3060, %v3158
  %v3160 = vand.u32 %v3159, 4294901760
  %v3161 = vsub.f32 %v3159, %v3160
  %v3162 = vand.u32 %v3161, 4294901760
  %3163 = vmatpush.msra.mxu0 %v3162
  %v3164 = vand.u32 %v3059, 4294901760
  %v3165 = vsub.f32 %v3059, %v3164
  %v3166 = vand.u32 %v3165, 4294901760
  %v3167 = vsub.f32 %v3165, %v3166
  %v3168 = vand.u32 %v3167, 4294901760
  %3169 = vmatpush.msra.mxu0 %v3168
  %v3170 = vand.u32 %v3058, 4294901760
  %v3171 = vsub.f32 %v3058, %v3170
  %v3172 = vand.u32 %v3171, 4294901760
  %v3173 = vsub.f32 %v3171, %v3172
  %v3174 = vand.u32 %v3173, 4294901760
  %3175 = vmatpush.msra.mxu0 %v3174
  %v3176 = vand.u32 %v3057, 4294901760
  %v3177 = vsub.f32 %v3057, %v3176
  %v3178 = vand.u32 %v3177, 4294901760
  %v3179 = vsub.f32 %v3177, %v3178
  %v3180 = vand.u32 %v3179, 4294901760
  %3181 = vmatpush.msra.mxu0 %v3180
  %v3182 = vand.u32 %v3082, 4294901760
  %3183 = vmatmul.f32.gmra.mxu0 %v3182
  %v3184 = vpop.f32.mrf.mxu0
  %v3185 = vadd.f32 %v3120, %v3184
  %v3186 = vand.u32 %v3085, 4294901760
  %3187 = vmatmul.f32.gmra.mxu0 %v3186
  %v3188 = vpop.f32.mrf.mxu0
  %v3189 = vadd.f32 %v3128, %v3188
  %v3190 = vand.u32 %v3088, 4294901760
  %3191 = vmatmul.f32.gmra.mxu0 %v3190
  %v3192 = vpop.f32.mrf.mxu0
  %v3193 = vadd.f32 %v3136, %v3192
  %v3194 = vand.u32 %v3091, 4294901760
  %3195 = vmatmul.f32.gmra.mxu0 %v3194
  %v3196 = vpop.f32.mrf.mxu0
  %v3197 = vadd.f32 %v3144, %v3196
  %3198 = vdwg.mxu0
  %3199 = vmatpush.msra.mxu0 0.0
  %3200 = vmatpush.msra.mxu0 0.0
  %3201 = vmatpush.msra.mxu0 0.0
  %3202 = vmatpush.msra.mxu0 0.0
  %3203 = vmatpush.msra.mxu0 0.0
  %3204 = vmatpush.msra.mxu0 0.0
  %3205 = vmatpush.msra.mxu0 0.0
  %3206 = vmatpush.msra.mxu0 0.0
  %3207 = vmatpush.msra.mxu0 0.0
  %3208 = vmatpush.msra.mxu0 0.0
  %3209 = vmatpush.msra.mxu0 0.0
  %3210 = vmatpush.msra.mxu0 0.0
  %v3211 = vand.u32 %v3060, 4294901760
  %v3212 = vsub.f32 %v3060, %v3211
  %3213 = vmatpush.msra.mxu0 %v3212
  %v3214 = vand.u32 %v3059, 4294901760
  %v3215 = vsub.f32 %v3059, %v3214
  %3216 = vmatpush.msra.mxu0 %v3215
  %v3217 = vand.u32 %v3058, 4294901760
  %v3218 = vsub.f32 %v3058, %v3217
  %3219 = vmatpush.msra.mxu0 %v3218
  %v3220 = vand.u32 %v3057, 4294901760
  %v3221 = vsub.f32 %v3057, %v3220
  %3222 = vmatpush.msra.mxu0 %v3221
  %v3223 = vand.u32 %v3082, 4294901760
  %v3224 = vsub.f32 %v3082, %v3223
  %3225 = vmatmul.f32.gmra.mxu0 %v3224
  %v3226 = vpop.f32.mrf.mxu0
  %v3227 = vadd.f32 %v3185, %v3226
  %v3228 = vand.u32 %v3085, 4294901760
  %v3229 = vsub.f32 %v3085, %v3228
  %3230 = vmatmul.f32.gmra.mxu0 %v3229
  %v3231 = vpop.f32.mrf.mxu0
  %v3232 = vadd.f32 %v3189, %v3231
  %v3233 = vand.u32 %v3088, 4294901760
  %v3234 = vsub.f32 %v3088, %v3233
  %3235 = vmatmul.f32.gmra.mxu0 %v3234
  %v3236 = vpop.f32.mrf.mxu0
  %v3237 = vadd.f32 %v3193, %v3236
  %v3238 = vand.u32 %v3091, 4294901760
  %v3239 = vsub.f32 %v3091, %v3238
  %3240 = vmatmul.f32.gmra.mxu0 %v3239
  %v3241 = vpop.f32.mrf.mxu0
  %v3242 = vadd.f32 %v3197, %v3241
  %3243 = vdwg.mxu0
  %3244 = vmatpush.msra.mxu0 0.0
  %3245 = vmatpush.msra.mxu0 0.0
  %3246 = vmatpush.msra.mxu0 0.0
  %3247 = vmatpush.msra.mxu0 0.0
  %3248 = vmatpush.msra.mxu0 0.0
  %3249 = vmatpush.msra.mxu0 0.0
  %3250 = vmatpush.msra.mxu0 0.0
  %3251 = vmatpush.msra.mxu0 0.0
  %3252 = vmatpush.msra.mxu0 0.0
  %3253 = vmatpush.msra.mxu0 0.0
  %3254 = vmatpush.msra.mxu0 0.0
  %3255 = vmatpush.msra.mxu0 0.0
  %v3256 = vand.u32 %v3060, 4294901760
  %3257 = vmatpush.msra.mxu0 %v3256
  %v3258 = vand.u32 %v3059, 4294901760
  %3259 = vmatpush.msra.mxu0 %v3258
  %v3260 = vand.u32 %v3058, 4294901760
  %3261 = vmatpush.msra.mxu0 %v3260
  %v3262 = vand.u32 %v3057, 4294901760
  %3263 = vmatpush.msra.mxu0 %v3262
  %v3264 = vand.u32 %v3082, 4294901760
  %v3265 = vsub.f32 %v3082, %v3264
  %v3266 = vand.u32 %v3265, 4294901760
  %3267 = vmatmul.f32.gmra.mxu0 %v3266
  %v3268 = vpop.f32.mrf.mxu0
  %v3269 = vadd.f32 %v3227, %v3268
  %v3270 = vand.u32 %v3085, 4294901760
  %v3271 = vsub.f32 %v3085, %v3270
  %v3272 = vand.u32 %v3271, 4294901760
  %3273 = vmatmul.f32.gmra.mxu0 %v3272
  %v3274 = vpop.f32.mrf.mxu0
  %v3275 = vadd.f32 %v3232, %v3274
  %v3276 = vand.u32 %v3088, 4294901760
  %v3277 = vsub.f32 %v3088, %v3276
  %v3278 = vand.u32 %v3277, 4294901760
  %3279 = vmatmul.f32.gmra.mxu0 %v3278
  %v3280 = vpop.f32.mrf.mxu0
  %v3281 = vadd.f32 %v3237, %v3280
  %v3282 = vand.u32 %v3091, 4294901760
  %v3283 = vsub.f32 %v3091, %v3282
  %v3284 = vand.u32 %v3283, 4294901760
  %3285 = vmatmul.f32.gmra.mxu0 %v3284
  %v3286 = vpop.f32.mrf.mxu0
  %v3287 = vadd.f32 %v3242, %v3286
  %3288 = vdwg.mxu0
  %3289 = vmatpush.msra.mxu0 0.0
  %3290 = vmatpush.msra.mxu0 0.0
  %3291 = vmatpush.msra.mxu0 0.0
  %3292 = vmatpush.msra.mxu0 0.0
  %3293 = vmatpush.msra.mxu0 0.0
  %3294 = vmatpush.msra.mxu0 0.0
  %3295 = vmatpush.msra.mxu0 0.0
  %3296 = vmatpush.msra.mxu0 0.0
  %3297 = vmatpush.msra.mxu0 0.0
  %3298 = vmatpush.msra.mxu0 0.0
  %3299 = vmatpush.msra.mxu0 0.0
  %3300 = vmatpush.msra.mxu0 0.0
  %v3301 = vand.u32 %v3060, 4294901760
  %v3302 = vsub.f32 %v3060, %v3301
  %v3303 = vand.u32 %v3302, 4294901760
  %3304 = vmatpush.msra.mxu0 %v3303
  %v3305 = vand.u32 %v3059, 4294901760
  %v3306 = vsub.f32 %v3059, %v3305
  %v3307 = vand.u32 %v3306, 4294901760
  %3308 = vmatpush.msra.mxu0 %v3307
  %v3309 = vand.u32 %v3058, 4294901760
  %v3310 = vsub.f32 %v3058, %v3309
  %v3311 = vand.u32 %v3310, 4294901760
  %3312 = vmatpush.msra.mxu0 %v3311
  %v3313 = vand.u32 %v3057, 4294901760
  %v3314 = vsub.f32 %v3057, %v3313
  %v3315 = vand.u32 %v3314, 4294901760
  %3316 = vmatpush.msra.mxu0 %v3315
  %v3317 = vand.u32 %v3082, 4294901760
  %3318 = vmatmul.f32.gmra.mxu0 %v3317
  %v3319 = vpop.f32.mrf.mxu0
  %v3320 = vadd.f32 %v3269, %v3319
  %v3321 = vand.u32 %v3085, 4294901760
  %3322 = vmatmul.f32.gmra.mxu0 %v3321
  %v3323 = vpop.f32.mrf.mxu0
  %v3324 = vadd.f32 %v3275, %v3323
  %v3325 = vand.u32 %v3088, 4294901760
  %3326 = vmatmul.f32.gmra.mxu0 %v3325
  %v3327 = vpop.f32.mrf.mxu0
  %v3328 = vadd.f32 %v3281, %v3327
  %v3329 = vand.u32 %v3091, 4294901760
  %3330 = vmatmul.f32.gmra.mxu0 %v3329
  %v3331 = vpop.f32.mrf.mxu0
  %v3332 = vadd.f32 %v3287, %v3331
  %3333 = vdwg.mxu0
  %3334 = vmatpush.msra.mxu0 0.0
  %3335 = vmatpush.msra.mxu0 0.0
  %3336 = vmatpush.msra.mxu0 0.0
  %3337 = vmatpush.msra.mxu0 0.0
  %3338 = vmatpush.msra.mxu0 0.0
  %3339 = vmatpush.msra.mxu0 0.0
  %3340 = vmatpush.msra.mxu0 0.0
  %3341 = vmatpush.msra.mxu0 0.0
  %3342 = vmatpush.msra.mxu0 0.0
  %3343 = vmatpush.msra.mxu0 0.0
  %3344 = vmatpush.msra.mxu0 0.0
  %3345 = vmatpush.msra.mxu0 0.0
  %v3346 = vand.u32 %v3060, 4294901760
  %3347 = vmatpush.msra.mxu0 %v3346
  %v3348 = vand.u32 %v3059, 4294901760
  %3349 = vmatpush.msra.mxu0 %v3348
  %v3350 = vand.u32 %v3058, 4294901760
  %3351 = vmatpush.msra.mxu0 %v3350
  %v3352 = vand.u32 %v3057, 4294901760
  %3353 = vmatpush.msra.mxu0 %v3352
  %v3354 = vand.u32 %v3082, 4294901760
  %3355 = vmatmul.f32.gmra.mxu0 %v3354
  %v3356 = vpop.f32.mrf.mxu0
  %v3357 = vadd.f32 %v3320, %v3356
  %v3358 = vand.u32 %v3085, 4294901760
  %3359 = vmatmul.f32.gmra.mxu0 %v3358
  %v3360 = vpop.f32.mrf.mxu0
  %v3361 = vadd.f32 %v3324, %v3360
  %v3362 = vand.u32 %v3088, 4294901760
  %3363 = vmatmul.f32.gmra.mxu0 %v3362
  %v3364 = vpop.f32.mrf.mxu0
  %v3365 = vadd.f32 %v3328, %v3364
  %v3366 = vand.u32 %v3091, 4294901760
  %3367 = vmatmul.f32.gmra.mxu0 %v3366
  %v3368 = vpop.f32.mrf.mxu0
  %v3369 = vadd.f32 %v3332, %v3368
  %3370 = vdwg.mxu0
  %3371 = vmatpush.msra.mxu0 0.0
  %3372 = vmatpush.msra.mxu0 0.0
  %3373 = vmatpush.msra.mxu0 0.0
  %3374 = vmatpush.msra.mxu0 0.0
  %3375 = vmatpush.msra.mxu0 0.0
  %3376 = vmatpush.msra.mxu0 0.0
  %3377 = vmatpush.msra.mxu0 0.0
  %3378 = vmatpush.msra.mxu0 0.0
  %3379 = vmatpush.msra.mxu0 0.0
  %3380 = vmatpush.msra.mxu0 0.0
  %3381 = vmatpush.msra.mxu0 0.0
  %3382 = vmatpush.msra.mxu0 0.0
  %v3383 = vand.u32 %v3369, 4294901760
  %3384 = vmatpush.msra.mxu0 %v3383
  %v3385 = vand.u32 %v3365, 4294901760
  %3386 = vmatpush.msra.mxu0 %v3385
  %v3387 = vand.u32 %v3361, 4294901760
  %3388 = vmatpush.msra.mxu0 %v3387
  %v3389 = vand.u32 %v3357, 4294901760
  %3390 = vmatpush.msra.mxu0 %v3389
  %v3391 = vand.u32 %v2618, 4294901760
  %v3392 = vsub.f32 %v2618, %v3391
  %v3393 = vand.u32 %v3392, 4294901760
  %v3394 = vsub.f32 %v3392, %v3393
  %v3395 = vand.u32 %v3394, 4294901760
  %3396 = vmatmul.f32.gmra.mxu0 %v3395
  %v3397 = vpop.f32.mrf.mxu0
  %v3398 = vadd.f32 0.0, %v3397
  %3399 = vdwg.mxu0
  %3400 = vmatpush.msra.mxu0 0.0
  %3401 = vmatpush.msra.mxu0 0.0
  %3402 = vmatpush.msra.mxu0 0.0
  %3403 = vmatpush.msra.mxu0 0.0
  %3404 = vmatpush.msra.mxu0 0.0
  %3405 = vmatpush.msra.mxu0 0.0
  %3406 = vmatpush.msra.mxu0 0.0
  %3407 = vmatpush.msra.mxu0 0.0
  %3408 = vmatpush.msra.mxu0 0.0
  %3409 = vmatpush.msra.mxu0 0.0
  %3410 = vmatpush.msra.mxu0 0.0
  %3411 = vmatpush.msra.mxu0 0.0
  %v3412 = vand.u32 %v3369, 4294901760
  %v3413 = vsub.f32 %v3369, %v3412
  %v3414 = vand.u32 %v3413, 4294901760
  %v3415 = vsub.f32 %v3413, %v3414
  %v3416 = vand.u32 %v3415, 4294901760
  %3417 = vmatpush.msra.mxu0 %v3416
  %v3418 = vand.u32 %v3365, 4294901760
  %v3419 = vsub.f32 %v3365, %v3418
  %v3420 = vand.u32 %v3419, 4294901760
  %v3421 = vsub.f32 %v3419, %v3420
  %v3422 = vand.u32 %v3421, 4294901760
  %3423 = vmatpush.msra.mxu0 %v3422
  %v3424 = vand.u32 %v3361, 4294901760
  %v3425 = vsub.f32 %v3361, %v3424
  %v3426 = vand.u32 %v3425, 4294901760
  %v3427 = vsub.f32 %v3425, %v3426
  %v3428 = vand.u32 %v3427, 4294901760
  %3429 = vmatpush.msra.mxu0 %v3428
  %v3430 = vand.u32 %v3357, 4294901760
  %v3431 = vsub.f32 %v3357, %v3430
  %v3432 = vand.u32 %v3431, 4294901760
  %v3433 = vsub.f32 %v3431, %v3432
  %v3434 = vand.u32 %v3433, 4294901760
  %3435 = vmatpush.msra.mxu0 %v3434
  %v3436 = vand.u32 %v2618, 4294901760
  %3437 = vmatmul.f32.gmra.mxu0 %v3436
  %v3438 = vpop.f32.mrf.mxu0
  %v3439 = vadd.f32 %v3398, %v3438
  %3440 = vdwg.mxu0
  %3441 = vmatpush.msra.mxu0 0.0
  %3442 = vmatpush.msra.mxu0 0.0
  %3443 = vmatpush.msra.mxu0 0.0
  %3444 = vmatpush.msra.mxu0 0.0
  %3445 = vmatpush.msra.mxu0 0.0
  %3446 = vmatpush.msra.mxu0 0.0
  %3447 = vmatpush.msra.mxu0 0.0
  %3448 = vmatpush.msra.mxu0 0.0
  %3449 = vmatpush.msra.mxu0 0.0
  %3450 = vmatpush.msra.mxu0 0.0
  %3451 = vmatpush.msra.mxu0 0.0
  %3452 = vmatpush.msra.mxu0 0.0
  %v3453 = vand.u32 %v3369, 4294901760
  %v3454 = vsub.f32 %v3369, %v3453
  %3455 = vmatpush.msra.mxu0 %v3454
  %v3456 = vand.u32 %v3365, 4294901760
  %v3457 = vsub.f32 %v3365, %v3456
  %3458 = vmatpush.msra.mxu0 %v3457
  %v3459 = vand.u32 %v3361, 4294901760
  %v3460 = vsub.f32 %v3361, %v3459
  %3461 = vmatpush.msra.mxu0 %v3460
  %v3462 = vand.u32 %v3357, 4294901760
  %v3463 = vsub.f32 %v3357, %v3462
  %3464 = vmatpush.msra.mxu0 %v3463
  %v3465 = vand.u32 %v2618, 4294901760
  %v3466 = vsub.f32 %v2618, %v3465
  %3467 = vmatmul.f32.gmra.mxu0 %v3466
  %v3468 = vpop.f32.mrf.mxu0
  %v3469 = vadd.f32 %v3439, %v3468
  %3470 = vdwg.mxu0
  %3471 = vmatpush.msra.mxu0 0.0
  %3472 = vmatpush.msra.mxu0 0.0
  %3473 = vmatpush.msra.mxu0 0.0
  %3474 = vmatpush.msra.mxu0 0.0
  %3475 = vmatpush.msra.mxu0 0.0
  %3476 = vmatpush.msra.mxu0 0.0
  %3477 = vmatpush.msra.mxu0 0.0
  %3478 = vmatpush.msra.mxu0 0.0
  %3479 = vmatpush.msra.mxu0 0.0
  %3480 = vmatpush.msra.mxu0 0.0
  %3481 = vmatpush.msra.mxu0 0.0
  %3482 = vmatpush.msra.mxu0 0.0
  %v3483 = vand.u32 %v3369, 4294901760
  %3484 = vmatpush.msra.mxu0 %v3483
  %v3485 = vand.u32 %v3365, 4294901760
  %3486 = vmatpush.msra.mxu0 %v3485
  %v3487 = vand.u32 %v3361, 4294901760
  %3488 = vmatpush.msra.mxu0 %v3487
  %v3489 = vand.u32 %v3357, 4294901760
  %3490 = vmatpush.msra.mxu0 %v3489
  %v3491 = vand.u32 %v2618, 4294901760
  %v3492 = vsub.f32 %v2618, %v3491
  %v3493 = vand.u32 %v3492, 4294901760
  %3494 = vmatmul.f32.gmra.mxu0 %v3493
  %v3495 = vpop.f32.mrf.mxu0
  %v3496 = vadd.f32 %v3469, %v3495
  %3497 = vdwg.mxu0
  %3498 = vmatpush.msra.mxu0 0.0
  %3499 = vmatpush.msra.mxu0 0.0
  %3500 = vmatpush.msra.mxu0 0.0
  %3501 = vmatpush.msra.mxu0 0.0
  %3502 = vmatpush.msra.mxu0 0.0
  %3503 = vmatpush.msra.mxu0 0.0
  %3504 = vmatpush.msra.mxu0 0.0
  %3505 = vmatpush.msra.mxu0 0.0
  %3506 = vmatpush.msra.mxu0 0.0
  %3507 = vmatpush.msra.mxu0 0.0
  %3508 = vmatpush.msra.mxu0 0.0
  %3509 = vmatpush.msra.mxu0 0.0
  %v3510 = vand.u32 %v3369, 4294901760
  %v3511 = vsub.f32 %v3369, %v3510
  %v3512 = vand.u32 %v3511, 4294901760
  %3513 = vmatpush.msra.mxu0 %v3512
  %v3514 = vand.u32 %v3365, 4294901760
  %v3515 = vsub.f32 %v3365, %v3514
  %v3516 = vand.u32 %v3515, 4294901760
  %3517 = vmatpush.msra.mxu0 %v3516
  %v3518 = vand.u32 %v3361, 4294901760
  %v3519 = vsub.f32 %v3361, %v3518
  %v3520 = vand.u32 %v3519, 4294901760
  %3521 = vmatpush.msra.mxu0 %v3520
  %v3522 = vand.u32 %v3357, 4294901760
  %v3523 = vsub.f32 %v3357, %v3522
  %v3524 = vand.u32 %v3523, 4294901760
  %3525 = vmatpush.msra.mxu0 %v3524
  %v3526 = vand.u32 %v2618, 4294901760
  %3527 = vmatmul.f32.gmra.mxu0 %v3526
  %v3528 = vpop.f32.mrf.mxu0
  %v3529 = vadd.f32 %v3496, %v3528
  %3530 = vdwg.mxu0
  %3531 = vmatpush.msra.mxu0 0.0
  %3532 = vmatpush.msra.mxu0 0.0
  %3533 = vmatpush.msra.mxu0 0.0
  %3534 = vmatpush.msra.mxu0 0.0
  %3535 = vmatpush.msra.mxu0 0.0
  %3536 = vmatpush.msra.mxu0 0.0
  %3537 = vmatpush.msra.mxu0 0.0
  %3538 = vmatpush.msra.mxu0 0.0
  %3539 = vmatpush.msra.mxu0 0.0
  %3540 = vmatpush.msra.mxu0 0.0
  %3541 = vmatpush.msra.mxu0 0.0
  %3542 = vmatpush.msra.mxu0 0.0
  %v3543 = vand.u32 %v3369, 4294901760
  %3544 = vmatpush.msra.mxu0 %v3543
  %v3545 = vand.u32 %v3365, 4294901760
  %3546 = vmatpush.msra.mxu0 %v3545
  %v3547 = vand.u32 %v3361, 4294901760
  %3548 = vmatpush.msra.mxu0 %v3547
  %v3549 = vand.u32 %v3357, 4294901760
  %3550 = vmatpush.msra.mxu0 %v3549
  %v3551 = vand.u32 %v2618, 4294901760
  %3552 = vmatmul.f32.gmra.mxu0 %v3551
  %v3553 = vpop.f32.mrf.mxu0
  %v3554 = vadd.f32 %v3529, %v3553
  %3555 = vdwg.mxu0
  %v3556 = vmul.f32 %v3554, 0.03125
  %v3557 = vperm.slane %v3556, 0
  %v3558 = vsub.f32 %v3357, %v3557
  %v3559 = vsub.f32 %v3361, %v3557
  %v3560 = vsub.f32 %v3365, %v3557
  %v3561 = vsub.f32 %v3369, %v3557
  %v3562 = vmul.f32 %v3558, %v3558
  %v3563 = vmul.f32 %v3559, %v3559
  %v3564 = vmul.f32 %v3560, %v3560
  %v3565 = vmul.f32 %v3561, %v3561
  %3566 = vmatpush.msra.mxu0 0.0
  %3567 = vmatpush.msra.mxu0 0.0
  %3568 = vmatpush.msra.mxu0 0.0
  %3569 = vmatpush.msra.mxu0 0.0
  %3570 = vmatpush.msra.mxu0 0.0
  %3571 = vmatpush.msra.mxu0 0.0
  %3572 = vmatpush.msra.mxu0 0.0
  %3573 = vmatpush.msra.mxu0 0.0
  %3574 = vmatpush.msra.mxu0 0.0
  %3575 = vmatpush.msra.mxu0 0.0
  %3576 = vmatpush.msra.mxu0 0.0
  %3577 = vmatpush.msra.mxu0 0.0
  %v3578 = vand.u32 %v3565, 4294901760
  %3579 = vmatpush.msra.mxu0 %v3578
  %v3580 = vand.u32 %v3564, 4294901760
  %3581 = vmatpush.msra.mxu0 %v3580
  %v3582 = vand.u32 %v3563, 4294901760
  %3583 = vmatpush.msra.mxu0 %v3582
  %v3584 = vand.u32 %v3562, 4294901760
  %3585 = vmatpush.msra.mxu0 %v3584
  %v3586 = vand.u32 %v2618, 4294901760
  %v3587 = vsub.f32 %v2618, %v3586
  %v3588 = vand.u32 %v3587, 4294901760
  %v3589 = vsub.f32 %v3587, %v3588
  %v3590 = vand.u32 %v3589, 4294901760
  %3591 = vmatmul.f32.gmra.mxu0 %v3590
  %v3592 = vpop.f32.mrf.mxu0
  %v3593 = vadd.f32 0.0, %v3592
  %3594 = vdwg.mxu0
  %3595 = vmatpush.msra.mxu0 0.0
  %3596 = vmatpush.msra.mxu0 0.0
  %3597 = vmatpush.msra.mxu0 0.0
  %3598 = vmatpush.msra.mxu0 0.0
  %3599 = vmatpush.msra.mxu0 0.0
  %3600 = vmatpush.msra.mxu0 0.0
  %3601 = vmatpush.msra.mxu0 0.0
  %3602 = vmatpush.msra.mxu0 0.0
  %3603 = vmatpush.msra.mxu0 0.0
  %3604 = vmatpush.msra.mxu0 0.0
  %3605 = vmatpush.msra.mxu0 0.0
  %3606 = vmatpush.msra.mxu0 0.0
  %v3607 = vand.u32 %v3565, 4294901760
  %v3608 = vsub.f32 %v3565, %v3607
  %v3609 = vand.u32 %v3608, 4294901760
  %v3610 = vsub.f32 %v3608, %v3609
  %v3611 = vand.u32 %v3610, 4294901760
  %3612 = vmatpush.msra.mxu0 %v3611
  %v3613 = vand.u32 %v3564, 4294901760
  %v3614 = vsub.f32 %v3564, %v3613
  %v3615 = vand.u32 %v3614, 4294901760
  %v3616 = vsub.f32 %v3614, %v3615
  %v3617 = vand.u32 %v3616, 4294901760
  %3618 = vmatpush.msra.mxu0 %v3617
  %v3619 = vand.u32 %v3563, 4294901760
  %v3620 = vsub.f32 %v3563, %v3619
  %v3621 = vand.u32 %v3620, 4294901760
  %v3622 = vsub.f32 %v3620, %v3621
  %v3623 = vand.u32 %v3622, 4294901760
  %3624 = vmatpush.msra.mxu0 %v3623
  %v3625 = vand.u32 %v3562, 4294901760
  %v3626 = vsub.f32 %v3562, %v3625
  %v3627 = vand.u32 %v3626, 4294901760
  %v3628 = vsub.f32 %v3626, %v3627
  %v3629 = vand.u32 %v3628, 4294901760
  %3630 = vmatpush.msra.mxu0 %v3629
  %v3631 = vand.u32 %v2618, 4294901760
  %3632 = vmatmul.f32.gmra.mxu0 %v3631
  %v3633 = vpop.f32.mrf.mxu0
  %v3634 = vadd.f32 %v3593, %v3633
  %3635 = vdwg.mxu0
  %3636 = vmatpush.msra.mxu0 0.0
  %3637 = vmatpush.msra.mxu0 0.0
  %3638 = vmatpush.msra.mxu0 0.0
  %3639 = vmatpush.msra.mxu0 0.0
  %3640 = vmatpush.msra.mxu0 0.0
  %3641 = vmatpush.msra.mxu0 0.0
  %3642 = vmatpush.msra.mxu0 0.0
  %3643 = vmatpush.msra.mxu0 0.0
  %3644 = vmatpush.msra.mxu0 0.0
  %3645 = vmatpush.msra.mxu0 0.0
  %3646 = vmatpush.msra.mxu0 0.0
  %3647 = vmatpush.msra.mxu0 0.0
  %v3648 = vand.u32 %v3565, 4294901760
  %v3649 = vsub.f32 %v3565, %v3648
  %3650 = vmatpush.msra.mxu0 %v3649
  %v3651 = vand.u32 %v3564, 4294901760
  %v3652 = vsub.f32 %v3564, %v3651
  %3653 = vmatpush.msra.mxu0 %v3652
  %v3654 = vand.u32 %v3563, 4294901760
  %v3655 = vsub.f32 %v3563, %v3654
  %3656 = vmatpush.msra.mxu0 %v3655
  %v3657 = vand.u32 %v3562, 4294901760
  %v3658 = vsub.f32 %v3562, %v3657
  %3659 = vmatpush.msra.mxu0 %v3658
  %v3660 = vand.u32 %v2618, 4294901760
  %v3661 = vsub.f32 %v2618, %v3660
  %3662 = vmatmul.f32.gmra.mxu0 %v3661
  %v3663 = vpop.f32.mrf.mxu0
  %v3664 = vadd.f32 %v3634, %v3663
  %3665 = vdwg.mxu0
  %3666 = vmatpush.msra.mxu0 0.0
  %3667 = vmatpush.msra.mxu0 0.0
  %3668 = vmatpush.msra.mxu0 0.0
  %3669 = vmatpush.msra.mxu0 0.0
  %3670 = vmatpush.msra.mxu0 0.0
  %3671 = vmatpush.msra.mxu0 0.0
  %3672 = vmatpush.msra.mxu0 0.0
  %3673 = vmatpush.msra.mxu0 0.0
  %3674 = vmatpush.msra.mxu0 0.0
  %3675 = vmatpush.msra.mxu0 0.0
  %3676 = vmatpush.msra.mxu0 0.0
  %3677 = vmatpush.msra.mxu0 0.0
  %v3678 = vand.u32 %v3565, 4294901760
  %3679 = vmatpush.msra.mxu0 %v3678
  %v3680 = vand.u32 %v3564, 4294901760
  %3681 = vmatpush.msra.mxu0 %v3680
  %v3682 = vand.u32 %v3563, 4294901760
  %3683 = vmatpush.msra.mxu0 %v3682
  %v3684 = vand.u32 %v3562, 4294901760
  %3685 = vmatpush.msra.mxu0 %v3684
  %v3686 = vand.u32 %v2618, 4294901760
  %v3687 = vsub.f32 %v2618, %v3686
  %v3688 = vand.u32 %v3687, 4294901760
  %3689 = vmatmul.f32.gmra.mxu0 %v3688
  %v3690 = vpop.f32.mrf.mxu0
  %v3691 = vadd.f32 %v3664, %v3690
  %3692 = vdwg.mxu0
  %3693 = vmatpush.msra.mxu0 0.0
  %3694 = vmatpush.msra.mxu0 0.0
  %3695 = vmatpush.msra.mxu0 0.0
  %3696 = vmatpush.msra.mxu0 0.0
  %3697 = vmatpush.msra.mxu0 0.0
  %3698 = vmatpush.msra.mxu0 0.0
  %3699 = vmatpush.msra.mxu0 0.0
  %3700 = vmatpush.msra.mxu0 0.0
  %3701 = vmatpush.msra.mxu0 0.0
  %3702 = vmatpush.msra.mxu0 0.0
  %3703 = vmatpush.msra.mxu0 0.0
  %3704 = vmatpush.msra.mxu0 0.0
  %v3705 = vand.u32 %v3565, 4294901760
  %v3706 = vsub.f32 %v3565, %v3705
  %v3707 = vand.u32 %v3706, 4294901760
  %3708 = vmatpush.msra.mxu0 %v3707
  %v3709 = vand.u32 %v3564, 4294901760
  %v3710 = vsub.f32 %v3564, %v3709
  %v3711 = vand.u32 %v3710, 4294901760
  %3712 = vmatpush.msra.mxu0 %v3711
  %v3713 = vand.u32 %v3563, 4294901760
  %v3714 = vsub.f32 %v3563, %v3713
  %v3715 = vand.u32 %v3714, 4294901760
  %3716 = vmatpush.msra.mxu0 %v3715
  %v3717 = vand.u32 %v3562, 4294901760
  %v3718 = vsub.f32 %v3562, %v3717
  %v3719 = vand.u32 %v3718, 4294901760
  %3720 = vmatpush.msra.mxu0 %v3719
  %v3721 = vand.u32 %v2618, 4294901760
  %3722 = vmatmul.f32.gmra.mxu0 %v3721
  %v3723 = vpop.f32.mrf.mxu0
  %v3724 = vadd.f32 %v3691, %v3723
  %3725 = vdwg.mxu0
  %3726 = vmatpush.msra.mxu0 0.0
  %3727 = vmatpush.msra.mxu0 0.0
  %3728 = vmatpush.msra.mxu0 0.0
  %3729 = vmatpush.msra.mxu0 0.0
  %3730 = vmatpush.msra.mxu0 0.0
  %3731 = vmatpush.msra.mxu0 0.0
  %3732 = vmatpush.msra.mxu0 0.0
  %3733 = vmatpush.msra.mxu0 0.0
  %3734 = vmatpush.msra.mxu0 0.0
  %3735 = vmatpush.msra.mxu0 0.0
  %3736 = vmatpush.msra.mxu0 0.0
  %3737 = vmatpush.msra.mxu0 0.0
  %v3738 = vand.u32 %v3565, 4294901760
  %3739 = vmatpush.msra.mxu0 %v3738
  %v3740 = vand.u32 %v3564, 4294901760
  %3741 = vmatpush.msra.mxu0 %v3740
  %v3742 = vand.u32 %v3563, 4294901760
  %3743 = vmatpush.msra.mxu0 %v3742
  %v3744 = vand.u32 %v3562, 4294901760
  %3745 = vmatpush.msra.mxu0 %v3744
  %v3746 = vand.u32 %v2618, 4294901760
  %3747 = vmatmul.f32.gmra.mxu0 %v3746
  %v3748 = vpop.f32.mrf.mxu0
  %v3749 = vadd.f32 %v3724, %v3748
  %3750 = vdwg.mxu0
  %v3751 = vmul.f32 %v3749, 0.03125
  %v3752 = vadd.f32 %v3751, 1e-05
  %v3753 = vrsqrt.pop %v3752
  %v3754 = vmul.f32 %v3753, %v3752
  %v3755 = vmul.f32 %v3754, %v3753
  %v3756 = vmul.f32 0.5, %v3755
  %v3757 = vsub.f32 1.5, %v3756
  %v3758 = vmul.f32 %v3753, %v3757
  %vm3759 = vweird.f32 %v3752
  %vm3760 = vweird.f32 %v3753
  %vm3761 = vmor %vm3759, %vm3760
  %v3762 = vsel %vm3761, %v3753, %v3758
  %v3763 = vperm.slane %v3762, 0
  %v3764 = vmul.f32 %v3558, %v3763
  %v3765 = vmul.f32 %v3559, %v3763
  %v3766 = vmul.f32 %v3560, %v3763
  %v3767 = vmul.f32 %v3561, %v3763
  %3768 = vset.pattern.permute.xlu0 9
  %3769 = vperm.xlu0 %3768, %v2559
  %v3770 = vpop.permute.xlu0 %3769
  %3772 = vset.pattern.permute.xlu0 9
  %3773 = vperm.xlu0 %3772, %v2560
  %v3774 = vpop.permute.xlu0 %3773
  %3776 = vset.pattern.permute.xlu0 9
  %3777 = vperm.xlu0 %3776, %v2561
  %v3778 = vpop.permute.xlu0 %3777
  %3780 = vset.pattern.permute.xlu0 9
  %3781 = vperm.xlu0 %3780, %v2562
  %v3782 = vpop.permute.xlu0 %3781
  %v3784 = vmul.f32 %v3764, %v3770
  %v3785 = vmul.f32 %v3765, %v3774
  %v3786 = vmul.f32 %v3766, %v3778
  %v3787 = vmul.f32 %v3767, %v3782
  %3788 = vset.pattern.permute.xlu0 10
  %3789 = vperm.xlu0 %3788, %v2559
  %v3790 = vpop.permute.xlu0 %3789
  %3792 = vset.pattern.permute.xlu0 10
  %3793 = vperm.xlu0 %3792, %v2560
  %v3794 = vpop.permute.xlu0 %3793
  %3796 = vset.pattern.permute.xlu0 10
  %3797 = vperm.xlu0 %3796, %v2561
  %v3798 = vpop.permute.xlu0 %3797
  %3800 = vset.pattern.permute.xlu0 10
  %3801 = vperm.xlu0 %3800, %v2562
  %v3802 = vpop.permute.xlu0 %3801
  %v3804 = vadd.f32 %v3784, %v3790
  %v3805 = vadd.f32 %v3785, %v3794
  %v3806 = vadd.f32 %v3786, %v3798
  %v3807 = vadd.f32 %v3787, %v3802
  %v3808 = vmax.f32 %v3804, 0.0
  %v3809 = vmax.f32 %v3805, 0.0
  %v3810 = vmax.f32 %v3806, 0.0
  %v3811 = vmax.f32 %v3807, 0.0
  %v3812 = vld [vmem:[%s0 + $0x60] sm:$0xff]
  %v3813 = vld [vmem:[%s0 + $0x68] sm:$0xff]
  %v3814 = vld [vmem:[%s0 + $0x70] sm:$0xff]
  %v3815 = vld [vmem:[%s0 + $0x78] sm:$0xff]
  %3816 = vset.pattern.permute.xlu0 2
  %3817 = vperm.xlu0 %3816, %v2559
  %v3818 = vpop.permute.xlu0 %3817
  %3820 = vset.pattern.permute.xlu0 2
  %3821 = vperm.xlu0 %3820, %v2560
  %v3822 = vpop.permute.xlu0 %3821
  %3824 = vset.pattern.permute.xlu0 2
  %3825 = vperm.xlu0 %3824, %v2561
  %v3826 = vpop.permute.xlu0 %3825
  %3828 = vset.pattern.permute.xlu0 2
  %3829 = vperm.xlu0 %3828, %v2562
  %v3830 = vpop.permute.xlu0 %3829
  %v3833 = vsel %vm2617, %v3812, 0
  %v3836 = vsel %vm2617, %v3813, 0
  %v3839 = vsel %vm2617, %v3814, 0
  %v3842 = vsel %vm2617, %v3815, 0
  %3844 = vmatpush.msra.mxu0 0.0
  %3845 = vmatpush.msra.mxu0 0.0
  %3846 = vmatpush.msra.mxu0 0.0
  %3847 = vmatpush.msra.mxu0 0.0
  %3848 = vmatpush.msra.mxu0 0.0
  %3849 = vmatpush.msra.mxu0 0.0
  %3850 = vmatpush.msra.mxu0 0.0
  %3851 = vmatpush.msra.mxu0 0.0
  %3852 = vmatpush.msra.mxu0 0.0
  %3853 = vmatpush.msra.mxu0 0.0
  %3854 = vmatpush.msra.mxu0 0.0
  %3855 = vmatpush.msra.mxu0 0.0
  %v3856 = vand.u32 %v3811, 4294901760
  %3857 = vmatpush.msra.mxu0 %v3856
  %v3858 = vand.u32 %v3810, 4294901760
  %3859 = vmatpush.msra.mxu0 %v3858
  %v3860 = vand.u32 %v3809, 4294901760
  %3861 = vmatpush.msra.mxu0 %v3860
  %v3862 = vand.u32 %v3808, 4294901760
  %3863 = vmatpush.msra.mxu0 %v3862
  %v3864 = vand.u32 %v3833, 4294901760
  %v3865 = vsub.f32 %v3833, %v3864
  %v3866 = vand.u32 %v3865, 4294901760
  %v3867 = vsub.f32 %v3865, %v3866
  %v3868 = vand.u32 %v3867, 4294901760
  %3869 = vmatmul.f32.gmra.mxu0 %v3868
  %v3870 = vpop.f32.mrf.mxu0
  %v3871 = vadd.f32 %v3818, %v3870
  %v3872 = vand.u32 %v3836, 4294901760
  %v3873 = vsub.f32 %v3836, %v3872
  %v3874 = vand.u32 %v3873, 4294901760
  %v3875 = vsub.f32 %v3873, %v3874
  %v3876 = vand.u32 %v3875, 4294901760
  %3877 = vmatmul.f32.gmra.mxu0 %v3876
  %v3878 = vpop.f32.mrf.mxu0
  %v3879 = vadd.f32 %v3822, %v3878
  %v3880 = vand.u32 %v3839, 4294901760
  %v3881 = vsub.f32 %v3839, %v3880
  %v3882 = vand.u32 %v3881, 4294901760
  %v3883 = vsub.f32 %v3881, %v3882
  %v3884 = vand.u32 %v3883, 4294901760
  %3885 = vmatmul.f32.gmra.mxu0 %v3884
  %v3886 = vpop.f32.mrf.mxu0
  %v3887 = vadd.f32 %v3826, %v3886
  %v3888 = vand.u32 %v3842, 4294901760
  %v3889 = vsub.f32 %v3842, %v3888
  %v3890 = vand.u32 %v3889, 4294901760
  %v3891 = vsub.f32 %v3889, %v3890
  %v3892 = vand.u32 %v3891, 4294901760
  %3893 = vmatmul.f32.gmra.mxu0 %v3892
  %v3894 = vpop.f32.mrf.mxu0
  %v3895 = vadd.f32 %v3830, %v3894
  %3896 = vdwg.mxu0
  %3897 = vmatpush.msra.mxu0 0.0
  %3898 = vmatpush.msra.mxu0 0.0
  %3899 = vmatpush.msra.mxu0 0.0
  %3900 = vmatpush.msra.mxu0 0.0
  %3901 = vmatpush.msra.mxu0 0.0
  %3902 = vmatpush.msra.mxu0 0.0
  %3903 = vmatpush.msra.mxu0 0.0
  %3904 = vmatpush.msra.mxu0 0.0
  %3905 = vmatpush.msra.mxu0 0.0
  %3906 = vmatpush.msra.mxu0 0.0
  %3907 = vmatpush.msra.mxu0 0.0
  %3908 = vmatpush.msra.mxu0 0.0
  %v3909 = vand.u32 %v3811, 4294901760
  %v3910 = vsub.f32 %v3811, %v3909
  %v3911 = vand.u32 %v3910, 4294901760
  %v3912 = vsub.f32 %v3910, %v3911
  %v3913 = vand.u32 %v3912, 4294901760
  %3914 = vmatpush.msra.mxu0 %v3913
  %v3915 = vand.u32 %v3810, 4294901760
  %v3916 = vsub.f32 %v3810, %v3915
  %v3917 = vand.u32 %v3916, 4294901760
  %v3918 = vsub.f32 %v3916, %v3917
  %v3919 = vand.u32 %v3918, 4294901760
  %3920 = vmatpush.msra.mxu0 %v3919
  %v3921 = vand.u32 %v3809, 4294901760
  %v3922 = vsub.f32 %v3809, %v3921
  %v3923 = vand.u32 %v3922, 4294901760
  %v3924 = vsub.f32 %v3922, %v3923
  %v3925 = vand.u32 %v3924, 4294901760
  %3926 = vmatpush.msra.mxu0 %v3925
  %v3927 = vand.u32 %v3808, 4294901760
  %v3928 = vsub.f32 %v3808, %v3927
  %v3929 = vand.u32 %v3928, 4294901760
  %v3930 = vsub.f32 %v3928, %v3929
  %v3931 = vand.u32 %v3930, 4294901760
  %3932 = vmatpush.msra.mxu0 %v3931
  %v3933 = vand.u32 %v3833, 4294901760
  %3934 = vmatmul.f32.gmra.mxu0 %v3933
  %v3935 = vpop.f32.mrf.mxu0
  %v3936 = vadd.f32 %v3871, %v3935
  %v3937 = vand.u32 %v3836, 4294901760
  %3938 = vmatmul.f32.gmra.mxu0 %v3937
  %v3939 = vpop.f32.mrf.mxu0
  %v3940 = vadd.f32 %v3879, %v3939
  %v3941 = vand.u32 %v3839, 4294901760
  %3942 = vmatmul.f32.gmra.mxu0 %v3941
  %v3943 = vpop.f32.mrf.mxu0
  %v3944 = vadd.f32 %v3887, %v3943
  %v3945 = vand.u32 %v3842, 4294901760
  %3946 = vmatmul.f32.gmra.mxu0 %v3945
  %v3947 = vpop.f32.mrf.mxu0
  %v3948 = vadd.f32 %v3895, %v3947
  %3949 = vdwg.mxu0
  %3950 = vmatpush.msra.mxu0 0.0
  %3951 = vmatpush.msra.mxu0 0.0
  %3952 = vmatpush.msra.mxu0 0.0
  %3953 = vmatpush.msra.mxu0 0.0
  %3954 = vmatpush.msra.mxu0 0.0
  %3955 = vmatpush.msra.mxu0 0.0
  %3956 = vmatpush.msra.mxu0 0.0
  %3957 = vmatpush.msra.mxu0 0.0
  %3958 = vmatpush.msra.mxu0 0.0
  %3959 = vmatpush.msra.mxu0 0.0
  %3960 = vmatpush.msra.mxu0 0.0
  %3961 = vmatpush.msra.mxu0 0.0
  %v3962 = vand.u32 %v3811, 4294901760
  %v3963 = vsub.f32 %v3811, %v3962
  %3964 = vmatpush.msra.mxu0 %v3963
  %v3965 = vand.u32 %v3810, 4294901760
  %v3966 = vsub.f32 %v3810, %v3965
  %3967 = vmatpush.msra.mxu0 %v3966
  %v3968 = vand.u32 %v3809, 4294901760
  %v3969 = vsub.f32 %v3809, %v3968
  %3970 = vmatpush.msra.mxu0 %v3969
  %v3971 = vand.u32 %v3808, 4294901760
  %v3972 = vsub.f32 %v3808, %v3971
  %3973 = vmatpush.msra.mxu0 %v3972
  %v3974 = vand.u32 %v3833, 4294901760
  %v3975 = vsub.f32 %v3833, %v3974
  %3976 = vmatmul.f32.gmra.mxu0 %v3975
  %v3977 = vpop.f32.mrf.mxu0
  %v3978 = vadd.f32 %v3936, %v3977
  %v3979 = vand.u32 %v3836, 4294901760
  %v3980 = vsub.f32 %v3836, %v3979
  %3981 = vmatmul.f32.gmra.mxu0 %v3980
  %v3982 = vpop.f32.mrf.mxu0
  %v3983 = vadd.f32 %v3940, %v3982
  %v3984 = vand.u32 %v3839, 4294901760
  %v3985 = vsub.f32 %v3839, %v3984
  %3986 = vmatmul.f32.gmra.mxu0 %v3985
  %v3987 = vpop.f32.mrf.mxu0
  %v3988 = vadd.f32 %v3944, %v3987
  %v3989 = vand.u32 %v3842, 4294901760
  %v3990 = vsub.f32 %v3842, %v3989
  %3991 = vmatmul.f32.gmra.mxu0 %v3990
  %v3992 = vpop.f32.mrf.mxu0
  %v3993 = vadd.f32 %v3948, %v3992
  %3994 = vdwg.mxu0
  %3995 = vmatpush.msra.mxu0 0.0
  %3996 = vmatpush.msra.mxu0 0.0
  %3997 = vmatpush.msra.mxu0 0.0
  %3998 = vmatpush.msra.mxu0 0.0
  %3999 = vmatpush.msra.mxu0 0.0
  %4000 = vmatpush.msra.mxu0 0.0
  %4001 = vmatpush.msra.mxu0 0.0
  %4002 = vmatpush.msra.mxu0 0.0
  %4003 = vmatpush.msra.mxu0 0.0
  %4004 = vmatpush.msra.mxu0 0.0
  %4005 = vmatpush.msra.mxu0 0.0
  %4006 = vmatpush.msra.mxu0 0.0
  %v4007 = vand.u32 %v3811, 4294901760
  %4008 = vmatpush.msra.mxu0 %v4007
  %v4009 = vand.u32 %v3810, 4294901760
  %4010 = vmatpush.msra.mxu0 %v4009
  %v4011 = vand.u32 %v3809, 4294901760
  %4012 = vmatpush.msra.mxu0 %v4011
  %v4013 = vand.u32 %v3808, 4294901760
  %4014 = vmatpush.msra.mxu0 %v4013
  %v4015 = vand.u32 %v3833, 4294901760
  %v4016 = vsub.f32 %v3833, %v4015
  %v4017 = vand.u32 %v4016, 4294901760
  %4018 = vmatmul.f32.gmra.mxu0 %v4017
  %v4019 = vpop.f32.mrf.mxu0
  %v4020 = vadd.f32 %v3978, %v4019
  %v4021 = vand.u32 %v3836, 4294901760
  %v4022 = vsub.f32 %v3836, %v4021
  %v4023 = vand.u32 %v4022, 4294901760
  %4024 = vmatmul.f32.gmra.mxu0 %v4023
  %v4025 = vpop.f32.mrf.mxu0
  %v4026 = vadd.f32 %v3983, %v4025
  %v4027 = vand.u32 %v3839, 4294901760
  %v4028 = vsub.f32 %v3839, %v4027
  %v4029 = vand.u32 %v4028, 4294901760
  %4030 = vmatmul.f32.gmra.mxu0 %v4029
  %v4031 = vpop.f32.mrf.mxu0
  %v4032 = vadd.f32 %v3988, %v4031
  %v4033 = vand.u32 %v3842, 4294901760
  %v4034 = vsub.f32 %v3842, %v4033
  %v4035 = vand.u32 %v4034, 4294901760
  %4036 = vmatmul.f32.gmra.mxu0 %v4035
  %v4037 = vpop.f32.mrf.mxu0
  %v4038 = vadd.f32 %v3993, %v4037
  %4039 = vdwg.mxu0
  %4040 = vmatpush.msra.mxu0 0.0
  %4041 = vmatpush.msra.mxu0 0.0
  %4042 = vmatpush.msra.mxu0 0.0
  %4043 = vmatpush.msra.mxu0 0.0
  %4044 = vmatpush.msra.mxu0 0.0
  %4045 = vmatpush.msra.mxu0 0.0
  %4046 = vmatpush.msra.mxu0 0.0
  %4047 = vmatpush.msra.mxu0 0.0
  %4048 = vmatpush.msra.mxu0 0.0
  %4049 = vmatpush.msra.mxu0 0.0
  %4050 = vmatpush.msra.mxu0 0.0
  %4051 = vmatpush.msra.mxu0 0.0
  %v4052 = vand.u32 %v3811, 4294901760
  %v4053 = vsub.f32 %v3811, %v4052
  %v4054 = vand.u32 %v4053, 4294901760
  %4055 = vmatpush.msra.mxu0 %v4054
  %v4056 = vand.u32 %v3810, 4294901760
  %v4057 = vsub.f32 %v3810, %v4056
  %v4058 = vand.u32 %v4057, 4294901760
  %4059 = vmatpush.msra.mxu0 %v4058
  %v4060 = vand.u32 %v3809, 4294901760
  %v4061 = vsub.f32 %v3809, %v4060
  %v4062 = vand.u32 %v4061, 4294901760
  %4063 = vmatpush.msra.mxu0 %v4062
  %v4064 = vand.u32 %v3808, 4294901760
  %v4065 = vsub.f32 %v3808, %v4064
  %v4066 = vand.u32 %v4065, 4294901760
  %4067 = vmatpush.msra.mxu0 %v4066
  %v4068 = vand.u32 %v3833, 4294901760
  %4069 = vmatmul.f32.gmra.mxu0 %v4068
  %v4070 = vpop.f32.mrf.mxu0
  %v4071 = vadd.f32 %v4020, %v4070
  %v4072 = vand.u32 %v3836, 4294901760
  %4073 = vmatmul.f32.gmra.mxu0 %v4072
  %v4074 = vpop.f32.mrf.mxu0
  %v4075 = vadd.f32 %v4026, %v4074
  %v4076 = vand.u32 %v3839, 4294901760
  %4077 = vmatmul.f32.gmra.mxu0 %v4076
  %v4078 = vpop.f32.mrf.mxu0
  %v4079 = vadd.f32 %v4032, %v4078
  %v4080 = vand.u32 %v3842, 4294901760
  %4081 = vmatmul.f32.gmra.mxu0 %v4080
  %v4082 = vpop.f32.mrf.mxu0
  %v4083 = vadd.f32 %v4038, %v4082
  %4084 = vdwg.mxu0
  %4085 = vmatpush.msra.mxu0 0.0
  %4086 = vmatpush.msra.mxu0 0.0
  %4087 = vmatpush.msra.mxu0 0.0
  %4088 = vmatpush.msra.mxu0 0.0
  %4089 = vmatpush.msra.mxu0 0.0
  %4090 = vmatpush.msra.mxu0 0.0
  %4091 = vmatpush.msra.mxu0 0.0
  %4092 = vmatpush.msra.mxu0 0.0
  %4093 = vmatpush.msra.mxu0 0.0
  %4094 = vmatpush.msra.mxu0 0.0
  %4095 = vmatpush.msra.mxu0 0.0
  %4096 = vmatpush.msra.mxu0 0.0
  %v4097 = vand.u32 %v3811, 4294901760
  %4098 = vmatpush.msra.mxu0 %v4097
  %v4099 = vand.u32 %v3810, 4294901760
  %4100 = vmatpush.msra.mxu0 %v4099
  %v4101 = vand.u32 %v3809, 4294901760
  %4102 = vmatpush.msra.mxu0 %v4101
  %v4103 = vand.u32 %v3808, 4294901760
  %4104 = vmatpush.msra.mxu0 %v4103
  %v4105 = vand.u32 %v3833, 4294901760
  %4106 = vmatmul.f32.gmra.mxu0 %v4105
  %v4107 = vpop.f32.mrf.mxu0
  %v4108 = vadd.f32 %v4071, %v4107
  %v4109 = vand.u32 %v3836, 4294901760
  %4110 = vmatmul.f32.gmra.mxu0 %v4109
  %v4111 = vpop.f32.mrf.mxu0
  %v4112 = vadd.f32 %v4075, %v4111
  %v4113 = vand.u32 %v3839, 4294901760
  %4114 = vmatmul.f32.gmra.mxu0 %v4113
  %v4115 = vpop.f32.mrf.mxu0
  %v4116 = vadd.f32 %v4079, %v4115
  %v4117 = vand.u32 %v3842, 4294901760
  %4118 = vmatmul.f32.gmra.mxu0 %v4117
  %v4119 = vpop.f32.mrf.mxu0
  %v4120 = vadd.f32 %v4083, %v4119
  %4121 = vdwg.mxu0
  %4122 = vmatpush.msra.mxu0 0.0
  %4123 = vmatpush.msra.mxu0 0.0
  %4124 = vmatpush.msra.mxu0 0.0
  %4125 = vmatpush.msra.mxu0 0.0
  %4126 = vmatpush.msra.mxu0 0.0
  %4127 = vmatpush.msra.mxu0 0.0
  %4128 = vmatpush.msra.mxu0 0.0
  %4129 = vmatpush.msra.mxu0 0.0
  %4130 = vmatpush.msra.mxu0 0.0
  %4131 = vmatpush.msra.mxu0 0.0
  %4132 = vmatpush.msra.mxu0 0.0
  %4133 = vmatpush.msra.mxu0 0.0
  %v4134 = vand.u32 %v4120, 4294901760
  %4135 = vmatpush.msra.mxu0 %v4134
  %v4136 = vand.u32 %v4116, 4294901760
  %4137 = vmatpush.msra.mxu0 %v4136
  %v4138 = vand.u32 %v4112, 4294901760
  %4139 = vmatpush.msra.mxu0 %v4138
  %v4140 = vand.u32 %v4108, 4294901760
  %4141 = vmatpush.msra.mxu0 %v4140
  %v4142 = vand.u32 %v2618, 4294901760
  %v4143 = vsub.f32 %v2618, %v4142
  %v4144 = vand.u32 %v4143, 4294901760
  %v4145 = vsub.f32 %v4143, %v4144
  %v4146 = vand.u32 %v4145, 4294901760
  %4147 = vmatmul.f32.gmra.mxu0 %v4146
  %v4148 = vpop.f32.mrf.mxu0
  %v4149 = vadd.f32 0.0, %v4148
  %4150 = vdwg.mxu0
  %4151 = vmatpush.msra.mxu0 0.0
  %4152 = vmatpush.msra.mxu0 0.0
  %4153 = vmatpush.msra.mxu0 0.0
  %4154 = vmatpush.msra.mxu0 0.0
  %4155 = vmatpush.msra.mxu0 0.0
  %4156 = vmatpush.msra.mxu0 0.0
  %4157 = vmatpush.msra.mxu0 0.0
  %4158 = vmatpush.msra.mxu0 0.0
  %4159 = vmatpush.msra.mxu0 0.0
  %4160 = vmatpush.msra.mxu0 0.0
  %4161 = vmatpush.msra.mxu0 0.0
  %4162 = vmatpush.msra.mxu0 0.0
  %v4163 = vand.u32 %v4120, 4294901760
  %v4164 = vsub.f32 %v4120, %v4163
  %v4165 = vand.u32 %v4164, 4294901760
  %v4166 = vsub.f32 %v4164, %v4165
  %v4167 = vand.u32 %v4166, 4294901760
  %4168 = vmatpush.msra.mxu0 %v4167
  %v4169 = vand.u32 %v4116, 4294901760
  %v4170 = vsub.f32 %v4116, %v4169
  %v4171 = vand.u32 %v4170, 4294901760
  %v4172 = vsub.f32 %v4170, %v4171
  %v4173 = vand.u32 %v4172, 4294901760
  %4174 = vmatpush.msra.mxu0 %v4173
  %v4175 = vand.u32 %v4112, 4294901760
  %v4176 = vsub.f32 %v4112, %v4175
  %v4177 = vand.u32 %v4176, 4294901760
  %v4178 = vsub.f32 %v4176, %v4177
  %v4179 = vand.u32 %v4178, 4294901760
  %4180 = vmatpush.msra.mxu0 %v4179
  %v4181 = vand.u32 %v4108, 4294901760
  %v4182 = vsub.f32 %v4108, %v4181
  %v4183 = vand.u32 %v4182, 4294901760
  %v4184 = vsub.f32 %v4182, %v4183
  %v4185 = vand.u32 %v4184, 4294901760
  %4186 = vmatpush.msra.mxu0 %v4185
  %v4187 = vand.u32 %v2618, 4294901760
  %4188 = vmatmul.f32.gmra.mxu0 %v4187
  %v4189 = vpop.f32.mrf.mxu0
  %v4190 = vadd.f32 %v4149, %v4189
  %4191 = vdwg.mxu0
  %4192 = vmatpush.msra.mxu0 0.0
  %4193 = vmatpush.msra.mxu0 0.0
  %4194 = vmatpush.msra.mxu0 0.0
  %4195 = vmatpush.msra.mxu0 0.0
  %4196 = vmatpush.msra.mxu0 0.0
  %4197 = vmatpush.msra.mxu0 0.0
  %4198 = vmatpush.msra.mxu0 0.0
  %4199 = vmatpush.msra.mxu0 0.0
  %4200 = vmatpush.msra.mxu0 0.0
  %4201 = vmatpush.msra.mxu0 0.0
  %4202 = vmatpush.msra.mxu0 0.0
  %4203 = vmatpush.msra.mxu0 0.0
  %v4204 = vand.u32 %v4120, 4294901760
  %v4205 = vsub.f32 %v4120, %v4204
  %4206 = vmatpush.msra.mxu0 %v4205
  %v4207 = vand.u32 %v4116, 4294901760
  %v4208 = vsub.f32 %v4116, %v4207
  %4209 = vmatpush.msra.mxu0 %v4208
  %v4210 = vand.u32 %v4112, 4294901760
  %v4211 = vsub.f32 %v4112, %v4210
  %4212 = vmatpush.msra.mxu0 %v4211
  %v4213 = vand.u32 %v4108, 4294901760
  %v4214 = vsub.f32 %v4108, %v4213
  %4215 = vmatpush.msra.mxu0 %v4214
  %v4216 = vand.u32 %v2618, 4294901760
  %v4217 = vsub.f32 %v2618, %v4216
  %4218 = vmatmul.f32.gmra.mxu0 %v4217
  %v4219 = vpop.f32.mrf.mxu0
  %v4220 = vadd.f32 %v4190, %v4219
  %4221 = vdwg.mxu0
  %4222 = vmatpush.msra.mxu0 0.0
  %4223 = vmatpush.msra.mxu0 0.0
  %4224 = vmatpush.msra.mxu0 0.0
  %4225 = vmatpush.msra.mxu0 0.0
  %4226 = vmatpush.msra.mxu0 0.0
  %4227 = vmatpush.msra.mxu0 0.0
  %4228 = vmatpush.msra.mxu0 0.0
  %4229 = vmatpush.msra.mxu0 0.0
  %4230 = vmatpush.msra.mxu0 0.0
  %4231 = vmatpush.msra.mxu0 0.0
  %4232 = vmatpush.msra.mxu0 0.0
  %4233 = vmatpush.msra.mxu0 0.0
  %v4234 = vand.u32 %v4120, 4294901760
  %4235 = vmatpush.msra.mxu0 %v4234
  %v4236 = vand.u32 %v4116, 4294901760
  %4237 = vmatpush.msra.mxu0 %v4236
  %v4238 = vand.u32 %v4112, 4294901760
  %4239 = vmatpush.msra.mxu0 %v4238
  %v4240 = vand.u32 %v4108, 4294901760
  %4241 = vmatpush.msra.mxu0 %v4240
  %v4242 = vand.u32 %v2618, 4294901760
  %v4243 = vsub.f32 %v2618, %v4242
  %v4244 = vand.u32 %v4243, 4294901760
  %4245 = vmatmul.f32.gmra.mxu0 %v4244
  %v4246 = vpop.f32.mrf.mxu0
  %v4247 = vadd.f32 %v4220, %v4246
  %4248 = vdwg.mxu0
  %4249 = vmatpush.msra.mxu0 0.0
  %4250 = vmatpush.msra.mxu0 0.0
  %4251 = vmatpush.msra.mxu0 0.0
  %4252 = vmatpush.msra.mxu0 0.0
  %4253 = vmatpush.msra.mxu0 0.0
  %4254 = vmatpush.msra.mxu0 0.0
  %4255 = vmatpush.msra.mxu0 0.0
  %4256 = vmatpush.msra.mxu0 0.0
  %4257 = vmatpush.msra.mxu0 0.0
  %4258 = vmatpush.msra.mxu0 0.0
  %4259 = vmatpush.msra.mxu0 0.0
  %4260 = vmatpush.msra.mxu0 0.0
  %v4261 = vand.u32 %v4120, 4294901760
  %v4262 = vsub.f32 %v4120, %v4261
  %v4263 = vand.u32 %v4262, 4294901760
  %4264 = vmatpush.msra.mxu0 %v4263
  %v4265 = vand.u32 %v4116, 4294901760
  %v4266 = vsub.f32 %v4116, %v4265
  %v4267 = vand.u32 %v4266, 4294901760
  %4268 = vmatpush.msra.mxu0 %v4267
  %v4269 = vand.u32 %v4112, 4294901760
  %v4270 = vsub.f32 %v4112, %v4269
  %v4271 = vand.u32 %v4270, 4294901760
  %4272 = vmatpush.msra.mxu0 %v4271
  %v4273 = vand.u32 %v4108, 4294901760
  %v4274 = vsub.f32 %v4108, %v4273
  %v4275 = vand.u32 %v4274, 4294901760
  %4276 = vmatpush.msra.mxu0 %v4275
  %v4277 = vand.u32 %v2618, 4294901760
  %4278 = vmatmul.f32.gmra.mxu0 %v4277
  %v4279 = vpop.f32.mrf.mxu0
  %v4280 = vadd.f32 %v4247, %v4279
  %4281 = vdwg.mxu0
  %4282 = vmatpush.msra.mxu0 0.0
  %4283 = vmatpush.msra.mxu0 0.0
  %4284 = vmatpush.msra.mxu0 0.0
  %4285 = vmatpush.msra.mxu0 0.0
  %4286 = vmatpush.msra.mxu0 0.0
  %4287 = vmatpush.msra.mxu0 0.0
  %4288 = vmatpush.msra.mxu0 0.0
  %4289 = vmatpush.msra.mxu0 0.0
  %4290 = vmatpush.msra.mxu0 0.0
  %4291 = vmatpush.msra.mxu0 0.0
  %4292 = vmatpush.msra.mxu0 0.0
  %4293 = vmatpush.msra.mxu0 0.0
  %v4294 = vand.u32 %v4120, 4294901760
  %4295 = vmatpush.msra.mxu0 %v4294
  %v4296 = vand.u32 %v4116, 4294901760
  %4297 = vmatpush.msra.mxu0 %v4296
  %v4298 = vand.u32 %v4112, 4294901760
  %4299 = vmatpush.msra.mxu0 %v4298
  %v4300 = vand.u32 %v4108, 4294901760
  %4301 = vmatpush.msra.mxu0 %v4300
  %v4302 = vand.u32 %v2618, 4294901760
  %4303 = vmatmul.f32.gmra.mxu0 %v4302
  %v4304 = vpop.f32.mrf.mxu0
  %v4305 = vadd.f32 %v4280, %v4304
  %4306 = vdwg.mxu0
  %v4307 = vmul.f32 %v4305, 0.03125
  %v4308 = vperm.slane %v4307, 0
  %v4309 = vsub.f32 %v4108, %v4308
  %v4310 = vsub.f32 %v4112, %v4308
  %v4311 = vsub.f32 %v4116, %v4308
  %v4312 = vsub.f32 %v4120, %v4308
  %v4313 = vmul.f32 %v4309, %v4309
  %v4314 = vmul.f32 %v4310, %v4310
  %v4315 = vmul.f32 %v4311, %v4311
  %v4316 = vmul.f32 %v4312, %v4312
  %4317 = vmatpush.msra.mxu0 0.0
  %4318 = vmatpush.msra.mxu0 0.0
  %4319 = vmatpush.msra.mxu0 0.0
  %4320 = vmatpush.msra.mxu0 0.0
  %4321 = vmatpush.msra.mxu0 0.0
  %4322 = vmatpush.msra.mxu0 0.0
  %4323 = vmatpush.msra.mxu0 0.0
  %4324 = vmatpush.msra.mxu0 0.0
  %4325 = vmatpush.msra.mxu0 0.0
  %4326 = vmatpush.msra.mxu0 0.0
  %4327 = vmatpush.msra.mxu0 0.0
  %4328 = vmatpush.msra.mxu0 0.0
  %v4329 = vand.u32 %v4316, 4294901760
  %4330 = vmatpush.msra.mxu0 %v4329
  %v4331 = vand.u32 %v4315, 4294901760
  %4332 = vmatpush.msra.mxu0 %v4331
  %v4333 = vand.u32 %v4314, 4294901760
  %4334 = vmatpush.msra.mxu0 %v4333
  %v4335 = vand.u32 %v4313, 4294901760
  %4336 = vmatpush.msra.mxu0 %v4335
  %v4337 = vand.u32 %v2618, 4294901760
  %v4338 = vsub.f32 %v2618, %v4337
  %v4339 = vand.u32 %v4338, 4294901760
  %v4340 = vsub.f32 %v4338, %v4339
  %v4341 = vand.u32 %v4340, 4294901760
  %4342 = vmatmul.f32.gmra.mxu0 %v4341
  %v4343 = vpop.f32.mrf.mxu0
  %v4344 = vadd.f32 0.0, %v4343
  %4345 = vdwg.mxu0
  %4346 = vmatpush.msra.mxu0 0.0
  %4347 = vmatpush.msra.mxu0 0.0
  %4348 = vmatpush.msra.mxu0 0.0
  %4349 = vmatpush.msra.mxu0 0.0
  %4350 = vmatpush.msra.mxu0 0.0
  %4351 = vmatpush.msra.mxu0 0.0
  %4352 = vmatpush.msra.mxu0 0.0
  %4353 = vmatpush.msra.mxu0 0.0
  %4354 = vmatpush.msra.mxu0 0.0
  %4355 = vmatpush.msra.mxu0 0.0
  %4356 = vmatpush.msra.mxu0 0.0
  %4357 = vmatpush.msra.mxu0 0.0
  %v4358 = vand.u32 %v4316, 4294901760
  %v4359 = vsub.f32 %v4316, %v4358
  %v4360 = vand.u32 %v4359, 4294901760
  %v4361 = vsub.f32 %v4359, %v4360
  %v4362 = vand.u32 %v4361, 4294901760
  %4363 = vmatpush.msra.mxu0 %v4362
  %v4364 = vand.u32 %v4315, 4294901760
  %v4365 = vsub.f32 %v4315, %v4364
  %v4366 = vand.u32 %v4365, 4294901760
  %v4367 = vsub.f32 %v4365, %v4366
  %v4368 = vand.u32 %v4367, 4294901760
  %4369 = vmatpush.msra.mxu0 %v4368
  %v4370 = vand.u32 %v4314, 4294901760
  %v4371 = vsub.f32 %v4314, %v4370
  %v4372 = vand.u32 %v4371, 4294901760
  %v4373 = vsub.f32 %v4371, %v4372
  %v4374 = vand.u32 %v4373, 4294901760
  %4375 = vmatpush.msra.mxu0 %v4374
  %v4376 = vand.u32 %v4313, 4294901760
  %v4377 = vsub.f32 %v4313, %v4376
  %v4378 = vand.u32 %v4377, 4294901760
  %v4379 = vsub.f32 %v4377, %v4378
  %v4380 = vand.u32 %v4379, 4294901760
  %4381 = vmatpush.msra.mxu0 %v4380
  %v4382 = vand.u32 %v2618, 4294901760
  %4383 = vmatmul.f32.gmra.mxu0 %v4382
  %v4384 = vpop.f32.mrf.mxu0
  %v4385 = vadd.f32 %v4344, %v4384
  %4386 = vdwg.mxu0
  %4387 = vmatpush.msra.mxu0 0.0
  %4388 = vmatpush.msra.mxu0 0.0
  %4389 = vmatpush.msra.mxu0 0.0
  %4390 = vmatpush.msra.mxu0 0.0
  %4391 = vmatpush.msra.mxu0 0.0
  %4392 = vmatpush.msra.mxu0 0.0
  %4393 = vmatpush.msra.mxu0 0.0
  %4394 = vmatpush.msra.mxu0 0.0
  %4395 = vmatpush.msra.mxu0 0.0
  %4396 = vmatpush.msra.mxu0 0.0
  %4397 = vmatpush.msra.mxu0 0.0
  %4398 = vmatpush.msra.mxu0 0.0
  %v4399 = vand.u32 %v4316, 4294901760
  %v4400 = vsub.f32 %v4316, %v4399
  %4401 = vmatpush.msra.mxu0 %v4400
  %v4402 = vand.u32 %v4315, 4294901760
  %v4403 = vsub.f32 %v4315, %v4402
  %4404 = vmatpush.msra.mxu0 %v4403
  %v4405 = vand.u32 %v4314, 4294901760
  %v4406 = vsub.f32 %v4314, %v4405
  %4407 = vmatpush.msra.mxu0 %v4406
  %v4408 = vand.u32 %v4313, 4294901760
  %v4409 = vsub.f32 %v4313, %v4408
  %4410 = vmatpush.msra.mxu0 %v4409
  %v4411 = vand.u32 %v2618, 4294901760
  %v4412 = vsub.f32 %v2618, %v4411
  %4413 = vmatmul.f32.gmra.mxu0 %v4412
  %v4414 = vpop.f32.mrf.mxu0
  %v4415 = vadd.f32 %v4385, %v4414
  %4416 = vdwg.mxu0
  %4417 = vmatpush.msra.mxu0 0.0
  %4418 = vmatpush.msra.mxu0 0.0
  %4419 = vmatpush.msra.mxu0 0.0
  %4420 = vmatpush.msra.mxu0 0.0
  %4421 = vmatpush.msra.mxu0 0.0
  %4422 = vmatpush.msra.mxu0 0.0
  %4423 = vmatpush.msra.mxu0 0.0
  %4424 = vmatpush.msra.mxu0 0.0
  %4425 = vmatpush.msra.mxu0 0.0
  %4426 = vmatpush.msra.mxu0 0.0
  %4427 = vmatpush.msra.mxu0 0.0
  %4428 = vmatpush.msra.mxu0 0.0
  %v4429 = vand.u32 %v4316, 4294901760
  %4430 = vmatpush.msra.mxu0 %v4429
  %v4431 = vand.u32 %v4315, 4294901760
  %4432 = vmatpush.msra.mxu0 %v4431
  %v4433 = vand.u32 %v4314, 4294901760
  %4434 = vmatpush.msra.mxu0 %v4433
  %v4435 = vand.u32 %v4313, 4294901760
  %4436 = vmatpush.msra.mxu0 %v4435
  %v4437 = vand.u32 %v2618, 4294901760
  %v4438 = vsub.f32 %v2618, %v4437
  %v4439 = vand.u32 %v4438, 4294901760
  %4440 = vmatmul.f32.gmra.mxu0 %v4439
  %v4441 = vpop.f32.mrf.mxu0
  %v4442 = vadd.f32 %v4415, %v4441
  %4443 = vdwg.mxu0
  %4444 = vmatpush.msra.mxu0 0.0
  %4445 = vmatpush.msra.mxu0 0.0
  %4446 = vmatpush.msra.mxu0 0.0
  %4447 = vmatpush.msra.mxu0 0.0
  %4448 = vmatpush.msra.mxu0 0.0
  %4449 = vmatpush.msra.mxu0 0.0
  %4450 = vmatpush.msra.mxu0 0.0
  %4451 = vmatpush.msra.mxu0 0.0
  %4452 = vmatpush.msra.mxu0 0.0
  %4453 = vmatpush.msra.mxu0 0.0
  %4454 = vmatpush.msra.mxu0 0.0
  %4455 = vmatpush.msra.mxu0 0.0
  %v4456 = vand.u32 %v4316, 4294901760
  %v4457 = vsub.f32 %v4316, %v4456
  %v4458 = vand.u32 %v4457, 4294901760
  %4459 = vmatpush.msra.mxu0 %v4458
  %v4460 = vand.u32 %v4315, 4294901760
  %v4461 = vsub.f32 %v4315, %v4460
  %v4462 = vand.u32 %v4461, 4294901760
  %4463 = vmatpush.msra.mxu0 %v4462
  %v4464 = vand.u32 %v4314, 4294901760
  %v4465 = vsub.f32 %v4314, %v4464
  %v4466 = vand.u32 %v4465, 4294901760
  %4467 = vmatpush.msra.mxu0 %v4466
  %v4468 = vand.u32 %v4313, 4294901760
  %v4469 = vsub.f32 %v4313, %v4468
  %v4470 = vand.u32 %v4469, 4294901760
  %4471 = vmatpush.msra.mxu0 %v4470
  %v4472 = vand.u32 %v2618, 4294901760
  %4473 = vmatmul.f32.gmra.mxu0 %v4472
  %v4474 = vpop.f32.mrf.mxu0
  %v4475 = vadd.f32 %v4442, %v4474
  %4476 = vdwg.mxu0
  %4477 = vmatpush.msra.mxu0 0.0
  %4478 = vmatpush.msra.mxu0 0.0
  %4479 = vmatpush.msra.mxu0 0.0
  %4480 = vmatpush.msra.mxu0 0.0
  %4481 = vmatpush.msra.mxu0 0.0
  %4482 = vmatpush.msra.mxu0 0.0
  %4483 = vmatpush.msra.mxu0 0.0
  %4484 = vmatpush.msra.mxu0 0.0
  %4485 = vmatpush.msra.mxu0 0.0
  %4486 = vmatpush.msra.mxu0 0.0
  %4487 = vmatpush.msra.mxu0 0.0
  %4488 = vmatpush.msra.mxu0 0.0
  %v4489 = vand.u32 %v4316, 4294901760
  %4490 = vmatpush.msra.mxu0 %v4489
  %v4491 = vand.u32 %v4315, 4294901760
  %4492 = vmatpush.msra.mxu0 %v4491
  %v4493 = vand.u32 %v4314, 4294901760
  %4494 = vmatpush.msra.mxu0 %v4493
  %v4495 = vand.u32 %v4313, 4294901760
  %4496 = vmatpush.msra.mxu0 %v4495
  %v4497 = vand.u32 %v2618, 4294901760
  %4498 = vmatmul.f32.gmra.mxu0 %v4497
  %v4499 = vpop.f32.mrf.mxu0
  %v4500 = vadd.f32 %v4475, %v4499
  %4501 = vdwg.mxu0
  %v4502 = vmul.f32 %v4500, 0.03125
  %v4503 = vadd.f32 %v4502, 1e-05
  %v4504 = vrsqrt.pop %v4503
  %v4505 = vmul.f32 %v4504, %v4503
  %v4506 = vmul.f32 %v4505, %v4504
  %v4507 = vmul.f32 0.5, %v4506
  %v4508 = vsub.f32 1.5, %v4507
  %v4509 = vmul.f32 %v4504, %v4508
  %vm4510 = vweird.f32 %v4503
  %vm4511 = vweird.f32 %v4504
  %vm4512 = vmor %vm4510, %vm4511
  %v4513 = vsel %vm4512, %v4504, %v4509
  %v4514 = vperm.slane %v4513, 0
  %v4515 = vmul.f32 %v4309, %v4514
  %v4516 = vmul.f32 %v4310, %v4514
  %v4517 = vmul.f32 %v4311, %v4514
  %v4518 = vmul.f32 %v4312, %v4514
  %4519 = vset.pattern.permute.xlu0 11
  %4520 = vperm.xlu0 %4519, %v2559
  %v4521 = vpop.permute.xlu0 %4520
  %4523 = vset.pattern.permute.xlu0 11
  %4524 = vperm.xlu0 %4523, %v2560
  %v4525 = vpop.permute.xlu0 %4524
  %4527 = vset.pattern.permute.xlu0 11
  %4528 = vperm.xlu0 %4527, %v2561
  %v4529 = vpop.permute.xlu0 %4528
  %4531 = vset.pattern.permute.xlu0 11
  %4532 = vperm.xlu0 %4531, %v2562
  %v4533 = vpop.permute.xlu0 %4532
  %v4535 = vmul.f32 %v4515, %v4521
  %v4536 = vmul.f32 %v4516, %v4525
  %v4537 = vmul.f32 %v4517, %v4529
  %v4538 = vmul.f32 %v4518, %v4533
  %4539 = vset.pattern.permute.xlu0 12
  %4540 = vperm.xlu0 %4539, %v2559
  %v4541 = vpop.permute.xlu0 %4540
  %4543 = vset.pattern.permute.xlu0 12
  %4544 = vperm.xlu0 %4543, %v2560
  %v4545 = vpop.permute.xlu0 %4544
  %4547 = vset.pattern.permute.xlu0 12
  %4548 = vperm.xlu0 %4547, %v2561
  %v4549 = vpop.permute.xlu0 %4548
  %4551 = vset.pattern.permute.xlu0 12
  %4552 = vperm.xlu0 %4551, %v2562
  %v4553 = vpop.permute.xlu0 %4552
  %v4555 = vadd.f32 %v4535, %v4541
  %v4556 = vadd.f32 %v4536, %v4545
  %v4557 = vadd.f32 %v4537, %v4549
  %v4558 = vadd.f32 %v4538, %v4553
  %v4559 = vmax.f32 %v4555, 0.0
  %v4560 = vmax.f32 %v4556, 0.0
  %v4561 = vmax.f32 %v4557, 0.0
  %v4562 = vmax.f32 %v4558, 0.0
  %v4563 = vld [vmem:[%s0 + $0x80] sm:$0xff]
  %v4564 = vld [vmem:[%s0 + $0x88] sm:$0xff]
  %v4565 = vld [vmem:[%s1] sm:$0xff]
  %v4566 = vld [vmem:[%s1 + $0x8] sm:$0xff]
  %4568 = vset.pattern.permute.xlu0 3
  %4569 = vperm.xlu0 %4568, %v4565
  %v4570 = vpop.permute.xlu0 %4569
  %4573 = vset.pattern.permute.xlu0 3
  %4574 = vperm.xlu0 %4573, %v4566
  %v4575 = vpop.permute.xlu0 %4574
  %v4578 = vsel %vm2617, %v4563, 0
  %v4581 = vsel %vm2617, %v4564, 0
  %4583 = vmatpush.msra.mxu0 0.0
  %4584 = vmatpush.msra.mxu0 0.0
  %4585 = vmatpush.msra.mxu0 0.0
  %4586 = vmatpush.msra.mxu0 0.0
  %4587 = vmatpush.msra.mxu0 0.0
  %4588 = vmatpush.msra.mxu0 0.0
  %4589 = vmatpush.msra.mxu0 0.0
  %4590 = vmatpush.msra.mxu0 0.0
  %4591 = vmatpush.msra.mxu0 0.0
  %4592 = vmatpush.msra.mxu0 0.0
  %4593 = vmatpush.msra.mxu0 0.0
  %4594 = vmatpush.msra.mxu0 0.0
  %v4595 = vand.u32 %v4562, 4294901760
  %4596 = vmatpush.msra.mxu0 %v4595
  %v4597 = vand.u32 %v4561, 4294901760
  %4598 = vmatpush.msra.mxu0 %v4597
  %v4599 = vand.u32 %v4560, 4294901760
  %4600 = vmatpush.msra.mxu0 %v4599
  %v4601 = vand.u32 %v4559, 4294901760
  %4602 = vmatpush.msra.mxu0 %v4601
  %v4603 = vand.u32 %v4578, 4294901760
  %v4604 = vsub.f32 %v4578, %v4603
  %v4605 = vand.u32 %v4604, 4294901760
  %v4606 = vsub.f32 %v4604, %v4605
  %v4607 = vand.u32 %v4606, 4294901760
  %4608 = vmatmul.f32.gmra.mxu0 %v4607
  %v4609 = vpop.f32.mrf.mxu0
  %v4610 = vadd.f32 %v4570, %v4609
  %v4611 = vand.u32 %v4581, 4294901760
  %v4612 = vsub.f32 %v4581, %v4611
  %v4613 = vand.u32 %v4612, 4294901760
  %v4614 = vsub.f32 %v4612, %v4613
  %v4615 = vand.u32 %v4614, 4294901760
  %4616 = vmatmul.f32.gmra.mxu0 %v4615
  %v4617 = vpop.f32.mrf.mxu0
  %v4618 = vadd.f32 %v4575, %v4617
  %4619 = vdwg.mxu0
  %4620 = vmatpush.msra.mxu0 0.0
  %4621 = vmatpush.msra.mxu0 0.0
  %4622 = vmatpush.msra.mxu0 0.0
  %4623 = vmatpush.msra.mxu0 0.0
  %4624 = vmatpush.msra.mxu0 0.0
  %4625 = vmatpush.msra.mxu0 0.0
  %4626 = vmatpush.msra.mxu0 0.0
  %4627 = vmatpush.msra.mxu0 0.0
  %4628 = vmatpush.msra.mxu0 0.0
  %4629 = vmatpush.msra.mxu0 0.0
  %4630 = vmatpush.msra.mxu0 0.0
  %4631 = vmatpush.msra.mxu0 0.0
  %v4632 = vand.u32 %v4562, 4294901760
  %v4633 = vsub.f32 %v4562, %v4632
  %v4634 = vand.u32 %v4633, 4294901760
  %v4635 = vsub.f32 %v4633, %v4634
  %v4636 = vand.u32 %v4635, 4294901760
  %4637 = vmatpush.msra.mxu0 %v4636
  %v4638 = vand.u32 %v4561, 4294901760
  %v4639 = vsub.f32 %v4561, %v4638
  %v4640 = vand.u32 %v4639, 4294901760
  %v4641 = vsub.f32 %v4639, %v4640
  %v4642 = vand.u32 %v4641, 4294901760
  %4643 = vmatpush.msra.mxu0 %v4642
  %v4644 = vand.u32 %v4560, 4294901760
  %v4645 = vsub.f32 %v4560, %v4644
  %v4646 = vand.u32 %v4645, 4294901760
  %v4647 = vsub.f32 %v4645, %v4646
  %v4648 = vand.u32 %v4647, 4294901760
  %4649 = vmatpush.msra.mxu0 %v4648
  %v4650 = vand.u32 %v4559, 4294901760
  %v4651 = vsub.f32 %v4559, %v4650
  %v4652 = vand.u32 %v4651, 4294901760
  %v4653 = vsub.f32 %v4651, %v4652
  %v4654 = vand.u32 %v4653, 4294901760
  %4655 = vmatpush.msra.mxu0 %v4654
  %v4656 = vand.u32 %v4578, 4294901760
  %4657 = vmatmul.f32.gmra.mxu0 %v4656
  %v4658 = vpop.f32.mrf.mxu0
  %v4659 = vadd.f32 %v4610, %v4658
  %v4660 = vand.u32 %v4581, 4294901760
  %4661 = vmatmul.f32.gmra.mxu0 %v4660
  %v4662 = vpop.f32.mrf.mxu0
  %v4663 = vadd.f32 %v4618, %v4662
  %4664 = vdwg.mxu0
  %4665 = vmatpush.msra.mxu0 0.0
  %4666 = vmatpush.msra.mxu0 0.0
  %4667 = vmatpush.msra.mxu0 0.0
  %4668 = vmatpush.msra.mxu0 0.0
  %4669 = vmatpush.msra.mxu0 0.0
  %4670 = vmatpush.msra.mxu0 0.0
  %4671 = vmatpush.msra.mxu0 0.0
  %4672 = vmatpush.msra.mxu0 0.0
  %4673 = vmatpush.msra.mxu0 0.0
  %4674 = vmatpush.msra.mxu0 0.0
  %4675 = vmatpush.msra.mxu0 0.0
  %4676 = vmatpush.msra.mxu0 0.0
  %v4677 = vand.u32 %v4562, 4294901760
  %v4678 = vsub.f32 %v4562, %v4677
  %4679 = vmatpush.msra.mxu0 %v4678
  %v4680 = vand.u32 %v4561, 4294901760
  %v4681 = vsub.f32 %v4561, %v4680
  %4682 = vmatpush.msra.mxu0 %v4681
  %v4683 = vand.u32 %v4560, 4294901760
  %v4684 = vsub.f32 %v4560, %v4683
  %4685 = vmatpush.msra.mxu0 %v4684
  %v4686 = vand.u32 %v4559, 4294901760
  %v4687 = vsub.f32 %v4559, %v4686
  %4688 = vmatpush.msra.mxu0 %v4687
  %v4689 = vand.u32 %v4578, 4294901760
  %v4690 = vsub.f32 %v4578, %v4689
  %4691 = vmatmul.f32.gmra.mxu0 %v4690
  %v4692 = vpop.f32.mrf.mxu0
  %v4693 = vadd.f32 %v4659, %v4692
  %v4694 = vand.u32 %v4581, 4294901760
  %v4695 = vsub.f32 %v4581, %v4694
  %4696 = vmatmul.f32.gmra.mxu0 %v4695
  %v4697 = vpop.f32.mrf.mxu0
  %v4698 = vadd.f32 %v4663, %v4697
  %4699 = vdwg.mxu0
  %4700 = vmatpush.msra.mxu0 0.0
  %4701 = vmatpush.msra.mxu0 0.0
  %4702 = vmatpush.msra.mxu0 0.0
  %4703 = vmatpush.msra.mxu0 0.0
  %4704 = vmatpush.msra.mxu0 0.0
  %4705 = vmatpush.msra.mxu0 0.0
  %4706 = vmatpush.msra.mxu0 0.0
  %4707 = vmatpush.msra.mxu0 0.0
  %4708 = vmatpush.msra.mxu0 0.0
  %4709 = vmatpush.msra.mxu0 0.0
  %4710 = vmatpush.msra.mxu0 0.0
  %4711 = vmatpush.msra.mxu0 0.0
  %v4712 = vand.u32 %v4562, 4294901760
  %4713 = vmatpush.msra.mxu0 %v4712
  %v4714 = vand.u32 %v4561, 4294901760
  %4715 = vmatpush.msra.mxu0 %v4714
  %v4716 = vand.u32 %v4560, 4294901760
  %4717 = vmatpush.msra.mxu0 %v4716
  %v4718 = vand.u32 %v4559, 4294901760
  %4719 = vmatpush.msra.mxu0 %v4718
  %v4720 = vand.u32 %v4578, 4294901760
  %v4721 = vsub.f32 %v4578, %v4720
  %v4722 = vand.u32 %v4721, 4294901760
  %4723 = vmatmul.f32.gmra.mxu0 %v4722
  %v4724 = vpop.f32.mrf.mxu0
  %v4725 = vadd.f32 %v4693, %v4724
  %v4726 = vand.u32 %v4581, 4294901760
  %v4727 = vsub.f32 %v4581, %v4726
  %v4728 = vand.u32 %v4727, 4294901760
  %4729 = vmatmul.f32.gmra.mxu0 %v4728
  %v4730 = vpop.f32.mrf.mxu0
  %v4731 = vadd.f32 %v4698, %v4730
  %4732 = vdwg.mxu0
  %4733 = vmatpush.msra.mxu0 0.0
  %4734 = vmatpush.msra.mxu0 0.0
  %4735 = vmatpush.msra.mxu0 0.0
  %4736 = vmatpush.msra.mxu0 0.0
  %4737 = vmatpush.msra.mxu0 0.0
  %4738 = vmatpush.msra.mxu0 0.0
  %4739 = vmatpush.msra.mxu0 0.0
  %4740 = vmatpush.msra.mxu0 0.0
  %4741 = vmatpush.msra.mxu0 0.0
  %4742 = vmatpush.msra.mxu0 0.0
  %4743 = vmatpush.msra.mxu0 0.0
  %4744 = vmatpush.msra.mxu0 0.0
  %v4745 = vand.u32 %v4562, 4294901760
  %v4746 = vsub.f32 %v4562, %v4745
  %v4747 = vand.u32 %v4746, 4294901760
  %4748 = vmatpush.msra.mxu0 %v4747
  %v4749 = vand.u32 %v4561, 4294901760
  %v4750 = vsub.f32 %v4561, %v4749
  %v4751 = vand.u32 %v4750, 4294901760
  %4752 = vmatpush.msra.mxu0 %v4751
  %v4753 = vand.u32 %v4560, 4294901760
  %v4754 = vsub.f32 %v4560, %v4753
  %v4755 = vand.u32 %v4754, 4294901760
  %4756 = vmatpush.msra.mxu0 %v4755
  %v4757 = vand.u32 %v4559, 4294901760
  %v4758 = vsub.f32 %v4559, %v4757
  %v4759 = vand.u32 %v4758, 4294901760
  %4760 = vmatpush.msra.mxu0 %v4759
  %v4761 = vand.u32 %v4578, 4294901760
  %4762 = vmatmul.f32.gmra.mxu0 %v4761
  %v4763 = vpop.f32.mrf.mxu0
  %v4764 = vadd.f32 %v4725, %v4763
  %v4765 = vand.u32 %v4581, 4294901760
  %4766 = vmatmul.f32.gmra.mxu0 %v4765
  %v4767 = vpop.f32.mrf.mxu0
  %v4768 = vadd.f32 %v4731, %v4767
  %4769 = vdwg.mxu0
  %4770 = vmatpush.msra.mxu0 0.0
  %4771 = vmatpush.msra.mxu0 0.0
  %4772 = vmatpush.msra.mxu0 0.0
  %4773 = vmatpush.msra.mxu0 0.0
  %4774 = vmatpush.msra.mxu0 0.0
  %4775 = vmatpush.msra.mxu0 0.0
  %4776 = vmatpush.msra.mxu0 0.0
  %4777 = vmatpush.msra.mxu0 0.0
  %4778 = vmatpush.msra.mxu0 0.0
  %4779 = vmatpush.msra.mxu0 0.0
  %4780 = vmatpush.msra.mxu0 0.0
  %4781 = vmatpush.msra.mxu0 0.0
  %v4782 = vand.u32 %v4562, 4294901760
  %4783 = vmatpush.msra.mxu0 %v4782
  %v4784 = vand.u32 %v4561, 4294901760
  %4785 = vmatpush.msra.mxu0 %v4784
  %v4786 = vand.u32 %v4560, 4294901760
  %4787 = vmatpush.msra.mxu0 %v4786
  %v4788 = vand.u32 %v4559, 4294901760
  %4789 = vmatpush.msra.mxu0 %v4788
  %v4790 = vand.u32 %v4578, 4294901760
  %4791 = vmatmul.f32.gmra.mxu0 %v4790
  %v4792 = vpop.f32.mrf.mxu0
  %v4793 = vadd.f32 %v4764, %v4792
  %v4794 = vand.u32 %v4581, 4294901760
  %4795 = vmatmul.f32.gmra.mxu0 %v4794
  %v4796 = vpop.f32.mrf.mxu0
  %v4797 = vadd.f32 %v4768, %v4796
  %4798 = vdwg.mxu0
  %vm4799 = vcmask 130048
  %v4800 = vsel %vm4799, 1.0, 0
  %4802 = vmatpush.msra.mxu0 0.0
  %4803 = vmatpush.msra.mxu0 0.0
  %4804 = vmatpush.msra.mxu0 0.0
  %4805 = vmatpush.msra.mxu0 0.0
  %4806 = vmatpush.msra.mxu0 0.0
  %4807 = vmatpush.msra.mxu0 0.0
  %4808 = vmatpush.msra.mxu0 0.0
  %4809 = vmatpush.msra.mxu0 0.0
  %4810 = vmatpush.msra.mxu0 0.0
  %4811 = vmatpush.msra.mxu0 0.0
  %4812 = vmatpush.msra.mxu0 0.0
  %4813 = vmatpush.msra.mxu0 0.0
  %4814 = vmatpush.msra.mxu0 0.0
  %4815 = vmatpush.msra.mxu0 0.0
  %v4816 = vand.u32 %v4797, 4294901760
  %4817 = vmatpush.msra.mxu0 %v4816
  %v4818 = vand.u32 %v4793, 4294901760
  %4819 = vmatpush.msra.mxu0 %v4818
  %v4820 = vand.u32 %v4800, 4294901760
  %v4821 = vsub.f32 %v4800, %v4820
  %v4822 = vand.u32 %v4821, 4294901760
  %v4823 = vsub.f32 %v4821, %v4822
  %v4824 = vand.u32 %v4823, 4294901760
  %4825 = vmatmul.f32.gmra.mxu0 %v4824
  %v4826 = vpop.f32.mrf.mxu0
  %v4827 = vadd.f32 0.0, %v4826
  %4828 = vdwg.mxu0
  %4829 = vmatpush.msra.mxu0 0.0
  %4830 = vmatpush.msra.mxu0 0.0
  %4831 = vmatpush.msra.mxu0 0.0
  %4832 = vmatpush.msra.mxu0 0.0
  %4833 = vmatpush.msra.mxu0 0.0
  %4834 = vmatpush.msra.mxu0 0.0
  %4835 = vmatpush.msra.mxu0 0.0
  %4836 = vmatpush.msra.mxu0 0.0
  %4837 = vmatpush.msra.mxu0 0.0
  %4838 = vmatpush.msra.mxu0 0.0
  %4839 = vmatpush.msra.mxu0 0.0
  %4840 = vmatpush.msra.mxu0 0.0
  %4841 = vmatpush.msra.mxu0 0.0
  %4842 = vmatpush.msra.mxu0 0.0
  %v4843 = vand.u32 %v4797, 4294901760
  %v4844 = vsub.f32 %v4797, %v4843
  %v4845 = vand.u32 %v4844, 4294901760
  %v4846 = vsub.f32 %v4844, %v4845
  %v4847 = vand.u32 %v4846, 4294901760
  %4848 = vmatpush.msra.mxu0 %v4847
  %v4849 = vand.u32 %v4793, 4294901760
  %v4850 = vsub.f32 %v4793, %v4849
  %v4851 = vand.u32 %v4850, 4294901760
  %v4852 = vsub.f32 %v4850, %v4851
  %v4853 = vand.u32 %v4852, 4294901760
  %4854 = vmatpush.msra.mxu0 %v4853
  %v4855 = vand.u32 %v4800, 4294901760
  %4856 = vmatmul.f32.gmra.mxu0 %v4855
  %v4857 = vpop.f32.mrf.mxu0
  %v4858 = vadd.f32 %v4827, %v4857
  %4859 = vdwg.mxu0
  %4860 = vmatpush.msra.mxu0 0.0
  %4861 = vmatpush.msra.mxu0 0.0
  %4862 = vmatpush.msra.mxu0 0.0
  %4863 = vmatpush.msra.mxu0 0.0
  %4864 = vmatpush.msra.mxu0 0.0
  %4865 = vmatpush.msra.mxu0 0.0
  %4866 = vmatpush.msra.mxu0 0.0
  %4867 = vmatpush.msra.mxu0 0.0
  %4868 = vmatpush.msra.mxu0 0.0
  %4869 = vmatpush.msra.mxu0 0.0
  %4870 = vmatpush.msra.mxu0 0.0
  %4871 = vmatpush.msra.mxu0 0.0
  %4872 = vmatpush.msra.mxu0 0.0
  %4873 = vmatpush.msra.mxu0 0.0
  %v4874 = vand.u32 %v4797, 4294901760
  %v4875 = vsub.f32 %v4797, %v4874
  %4876 = vmatpush.msra.mxu0 %v4875
  %v4877 = vand.u32 %v4793, 4294901760
  %v4878 = vsub.f32 %v4793, %v4877
  %4879 = vmatpush.msra.mxu0 %v4878
  %v4880 = vand.u32 %v4800, 4294901760
  %v4881 = vsub.f32 %v4800, %v4880
  %4882 = vmatmul.f32.gmra.mxu0 %v4881
  %v4883 = vpop.f32.mrf.mxu0
  %v4884 = vadd.f32 %v4858, %v4883
  %4885 = vdwg.mxu0
  %4886 = vmatpush.msra.mxu0 0.0
  %4887 = vmatpush.msra.mxu0 0.0
  %4888 = vmatpush.msra.mxu0 0.0
  %4889 = vmatpush.msra.mxu0 0.0
  %4890 = vmatpush.msra.mxu0 0.0
  %4891 = vmatpush.msra.mxu0 0.0
  %4892 = vmatpush.msra.mxu0 0.0
  %4893 = vmatpush.msra.mxu0 0.0
  %4894 = vmatpush.msra.mxu0 0.0
  %4895 = vmatpush.msra.mxu0 0.0
  %4896 = vmatpush.msra.mxu0 0.0
  %4897 = vmatpush.msra.mxu0 0.0
  %4898 = vmatpush.msra.mxu0 0.0
  %4899 = vmatpush.msra.mxu0 0.0
  %v4900 = vand.u32 %v4797, 4294901760
  %4901 = vmatpush.msra.mxu0 %v4900
  %v4902 = vand.u32 %v4793, 4294901760
  %4903 = vmatpush.msra.mxu0 %v4902
  %v4904 = vand.u32 %v4800, 4294901760
  %v4905 = vsub.f32 %v4800, %v4904
  %v4906 = vand.u32 %v4905, 4294901760
  %4907 = vmatmul.f32.gmra.mxu0 %v4906
  %v4908 = vpop.f32.mrf.mxu0
  %v4909 = vadd.f32 %v4884, %v4908
  %4910 = vdwg.mxu0
  %4911 = vmatpush.msra.mxu0 0.0
  %4912 = vmatpush.msra.mxu0 0.0
  %4913 = vmatpush.msra.mxu0 0.0
  %4914 = vmatpush.msra.mxu0 0.0
  %4915 = vmatpush.msra.mxu0 0.0
  %4916 = vmatpush.msra.mxu0 0.0
  %4917 = vmatpush.msra.mxu0 0.0
  %4918 = vmatpush.msra.mxu0 0.0
  %4919 = vmatpush.msra.mxu0 0.0
  %4920 = vmatpush.msra.mxu0 0.0
  %4921 = vmatpush.msra.mxu0 0.0
  %4922 = vmatpush.msra.mxu0 0.0
  %4923 = vmatpush.msra.mxu0 0.0
  %4924 = vmatpush.msra.mxu0 0.0
  %v4925 = vand.u32 %v4797, 4294901760
  %v4926 = vsub.f32 %v4797, %v4925
  %v4927 = vand.u32 %v4926, 4294901760
  %4928 = vmatpush.msra.mxu0 %v4927
  %v4929 = vand.u32 %v4793, 4294901760
  %v4930 = vsub.f32 %v4793, %v4929
  %v4931 = vand.u32 %v4930, 4294901760
  %4932 = vmatpush.msra.mxu0 %v4931
  %v4933 = vand.u32 %v4800, 4294901760
  %4934 = vmatmul.f32.gmra.mxu0 %v4933
  %v4935 = vpop.f32.mrf.mxu0
  %v4936 = vadd.f32 %v4909, %v4935
  %4937 = vdwg.mxu0
  %4938 = vmatpush.msra.mxu0 0.0
  %4939 = vmatpush.msra.mxu0 0.0
  %4940 = vmatpush.msra.mxu0 0.0
  %4941 = vmatpush.msra.mxu0 0.0
  %4942 = vmatpush.msra.mxu0 0.0
  %4943 = vmatpush.msra.mxu0 0.0
  %4944 = vmatpush.msra.mxu0 0.0
  %4945 = vmatpush.msra.mxu0 0.0
  %4946 = vmatpush.msra.mxu0 0.0
  %4947 = vmatpush.msra.mxu0 0.0
  %4948 = vmatpush.msra.mxu0 0.0
  %4949 = vmatpush.msra.mxu0 0.0
  %4950 = vmatpush.msra.mxu0 0.0
  %4951 = vmatpush.msra.mxu0 0.0
  %v4952 = vand.u32 %v4797, 4294901760
  %4953 = vmatpush.msra.mxu0 %v4952
  %v4954 = vand.u32 %v4793, 4294901760
  %4955 = vmatpush.msra.mxu0 %v4954
  %v4956 = vand.u32 %v4800, 4294901760
  %4957 = vmatmul.f32.gmra.mxu0 %v4956
  %v4958 = vpop.f32.mrf.mxu0
  %v4959 = vadd.f32 %v4936, %v4958
  %4960 = vdwg.mxu0
  %v4961 = vmul.f32 %v4959, 0.0625
  %v4962 = vperm.slane %v4961, 0
  %v4963 = vsub.f32 %v4793, %v4962
  %v4964 = vsub.f32 %v4797, %v4962
  %v4965 = vmul.f32 %v4963, %v4963
  %v4966 = vmul.f32 %v4964, %v4964
  %4967 = vmatpush.msra.mxu0 0.0
  %4968 = vmatpush.msra.mxu0 0.0
  %4969 = vmatpush.msra.mxu0 0.0
  %4970 = vmatpush.msra.mxu0 0.0
  %4971 = vmatpush.msra.mxu0 0.0
  %4972 = vmatpush.msra.mxu0 0.0
  %4973 = vmatpush.msra.mxu0 0.0
  %4974 = vmatpush.msra.mxu0 0.0
  %4975 = vmatpush.msra.mxu0 0.0
  %4976 = vmatpush.msra.mxu0 0.0
  %4977 = vmatpush.msra.mxu0 0.0
  %4978 = vmatpush.msra.mxu0 0.0
  %4979 = vmatpush.msra.mxu0 0.0
  %4980 = vmatpush.msra.mxu0 0.0
  %v4981 = vand.u32 %v4966, 4294901760
  %4982 = vmatpush.msra.mxu0 %v4981
  %v4983 = vand.u32 %v4965, 4294901760
  %4984 = vmatpush.msra.mxu0 %v4983
  %v4985 = vand.u32 %v4800, 4294901760
  %v4986 = vsub.f32 %v4800, %v4985
  %v4987 = vand.u32 %v4986, 4294901760
  %v4988 = vsub.f32 %v4986, %v4987
  %v4989 = vand.u32 %v4988, 4294901760
  %4990 = vmatmul.f32.gmra.mxu0 %v4989
  %v4991 = vpop.f32.mrf.mxu0
  %v4992 = vadd.f32 0.0, %v4991
  %4993 = vdwg.mxu0
  %4994 = vmatpush.msra.mxu0 0.0
  %4995 = vmatpush.msra.mxu0 0.0
  %4996 = vmatpush.msra.mxu0 0.0
  %4997 = vmatpush.msra.mxu0 0.0
  %4998 = vmatpush.msra.mxu0 0.0
  %4999 = vmatpush.msra.mxu0 0.0
  %5000 = vmatpush.msra.mxu0 0.0
  %5001 = vmatpush.msra.mxu0 0.0
  %5002 = vmatpush.msra.mxu0 0.0
  %5003 = vmatpush.msra.mxu0 0.0
  %5004 = vmatpush.msra.mxu0 0.0
  %5005 = vmatpush.msra.mxu0 0.0
  %5006 = vmatpush.msra.mxu0 0.0
  %5007 = vmatpush.msra.mxu0 0.0
  %v5008 = vand.u32 %v4966, 4294901760
  %v5009 = vsub.f32 %v4966, %v5008
  %v5010 = vand.u32 %v5009, 4294901760
  %v5011 = vsub.f32 %v5009, %v5010
  %v5012 = vand.u32 %v5011, 4294901760
  %5013 = vmatpush.msra.mxu0 %v5012
  %v5014 = vand.u32 %v4965, 4294901760
  %v5015 = vsub.f32 %v4965, %v5014
  %v5016 = vand.u32 %v5015, 4294901760
  %v5017 = vsub.f32 %v5015, %v5016
  %v5018 = vand.u32 %v5017, 4294901760
  %5019 = vmatpush.msra.mxu0 %v5018
  %v5020 = vand.u32 %v4800, 4294901760
  %5021 = vmatmul.f32.gmra.mxu0 %v5020
  %v5022 = vpop.f32.mrf.mxu0
  %v5023 = vadd.f32 %v4992, %v5022
  %5024 = vdwg.mxu0
  %5025 = vmatpush.msra.mxu0 0.0
  %5026 = vmatpush.msra.mxu0 0.0
  %5027 = vmatpush.msra.mxu0 0.0
  %5028 = vmatpush.msra.mxu0 0.0
  %5029 = vmatpush.msra.mxu0 0.0
  %5030 = vmatpush.msra.mxu0 0.0
  %5031 = vmatpush.msra.mxu0 0.0
  %5032 = vmatpush.msra.mxu0 0.0
  %5033 = vmatpush.msra.mxu0 0.0
  %5034 = vmatpush.msra.mxu0 0.0
  %5035 = vmatpush.msra.mxu0 0.0
  %5036 = vmatpush.msra.mxu0 0.0
  %5037 = vmatpush.msra.mxu0 0.0
  %5038 = vmatpush.msra.mxu0 0.0
  %v5039 = vand.u32 %v4966, 4294901760
  %v5040 = vsub.f32 %v4966, %v5039
  %5041 = vmatpush.msra.mxu0 %v5040
  %v5042 = vand.u32 %v4965, 4294901760
  %v5043 = vsub.f32 %v4965, %v5042
  %5044 = vmatpush.msra.mxu0 %v5043
  %v5045 = vand.u32 %v4800, 4294901760
  %v5046 = vsub.f32 %v4800, %v5045
  %5047 = vmatmul.f32.gmra.mxu0 %v5046
  %v5048 = vpop.f32.mrf.mxu0
  %v5049 = vadd.f32 %v5023, %v5048
  %5050 = vdwg.mxu0
  %5051 = vmatpush.msra.mxu0 0.0
  %5052 = vmatpush.msra.mxu0 0.0
  %5053 = vmatpush.msra.mxu0 0.0
  %5054 = vmatpush.msra.mxu0 0.0
  %5055 = vmatpush.msra.mxu0 0.0
  %5056 = vmatpush.msra.mxu0 0.0
  %5057 = vmatpush.msra.mxu0 0.0
  %5058 = vmatpush.msra.mxu0 0.0
  %5059 = vmatpush.msra.mxu0 0.0
  %5060 = vmatpush.msra.mxu0 0.0
  %5061 = vmatpush.msra.mxu0 0.0
  %5062 = vmatpush.msra.mxu0 0.0
  %5063 = vmatpush.msra.mxu0 0.0
  %5064 = vmatpush.msra.mxu0 0.0
  %v5065 = vand.u32 %v4966, 4294901760
  %5066 = vmatpush.msra.mxu0 %v5065
  %v5067 = vand.u32 %v4965, 4294901760
  %5068 = vmatpush.msra.mxu0 %v5067
  %v5069 = vand.u32 %v4800, 4294901760
  %v5070 = vsub.f32 %v4800, %v5069
  %v5071 = vand.u32 %v5070, 4294901760
  %5072 = vmatmul.f32.gmra.mxu0 %v5071
  %v5073 = vpop.f32.mrf.mxu0
  %v5074 = vadd.f32 %v5049, %v5073
  %5075 = vdwg.mxu0
  %5076 = vmatpush.msra.mxu0 0.0
  %5077 = vmatpush.msra.mxu0 0.0
  %5078 = vmatpush.msra.mxu0 0.0
  %5079 = vmatpush.msra.mxu0 0.0
  %5080 = vmatpush.msra.mxu0 0.0
  %5081 = vmatpush.msra.mxu0 0.0
  %5082 = vmatpush.msra.mxu0 0.0
  %5083 = vmatpush.msra.mxu0 0.0
  %5084 = vmatpush.msra.mxu0 0.0
  %5085 = vmatpush.msra.mxu0 0.0
  %5086 = vmatpush.msra.mxu0 0.0
  %5087 = vmatpush.msra.mxu0 0.0
  %5088 = vmatpush.msra.mxu0 0.0
  %5089 = vmatpush.msra.mxu0 0.0
  %v5090 = vand.u32 %v4966, 4294901760
  %v5091 = vsub.f32 %v4966, %v5090
  %v5092 = vand.u32 %v5091, 4294901760
  %5093 = vmatpush.msra.mxu0 %v5092
  %v5094 = vand.u32 %v4965, 4294901760
  %v5095 = vsub.f32 %v4965, %v5094
  %v5096 = vand.u32 %v5095, 4294901760
  %5097 = vmatpush.msra.mxu0 %v5096
  %v5098 = vand.u32 %v4800, 4294901760
  %5099 = vmatmul.f32.gmra.mxu0 %v5098
  %v5100 = vpop.f32.mrf.mxu0
  %v5101 = vadd.f32 %v5074, %v5100
  %5102 = vdwg.mxu0
  %5103 = vmatpush.msra.mxu0 0.0
  %5104 = vmatpush.msra.mxu0 0.0
  %5105 = vmatpush.msra.mxu0 0.0
  %5106 = vmatpush.msra.mxu0 0.0
  %5107 = vmatpush.msra.mxu0 0.0
  %5108 = vmatpush.msra.mxu0 0.0
  %5109 = vmatpush.msra.mxu0 0.0
  %5110 = vmatpush.msra.mxu0 0.0
  %5111 = vmatpush.msra.mxu0 0.0
  %5112 = vmatpush.msra.mxu0 0.0
  %5113 = vmatpush.msra.mxu0 0.0
  %5114 = vmatpush.msra.mxu0 0.0
  %5115 = vmatpush.msra.mxu0 0.0
  %5116 = vmatpush.msra.mxu0 0.0
  %v5117 = vand.u32 %v4966, 4294901760
  %5118 = vmatpush.msra.mxu0 %v5117
  %v5119 = vand.u32 %v4965, 4294901760
  %5120 = vmatpush.msra.mxu0 %v5119
  %v5121 = vand.u32 %v4800, 4294901760
  %5122 = vmatmul.f32.gmra.mxu0 %v5121
  %v5123 = vpop.f32.mrf.mxu0
  %v5124 = vadd.f32 %v5101, %v5123
  %5125 = vdwg.mxu0
  %v5126 = vmul.f32 %v5124, 0.0625
  %v5127 = vadd.f32 %v5126, 1e-05
  %v5128 = vrsqrt.pop %v5127
  %v5129 = vmul.f32 %v5128, %v5127
  %v5130 = vmul.f32 %v5129, %v5128
  %v5131 = vmul.f32 0.5, %v5130
  %v5132 = vsub.f32 1.5, %v5131
  %v5133 = vmul.f32 %v5128, %v5132
  %vm5134 = vweird.f32 %v5127
  %vm5135 = vweird.f32 %v5128
  %vm5136 = vmor %vm5134, %vm5135
  %v5137 = vsel %vm5136, %v5128, %v5133
  %v5138 = vperm.slane %v5137, 0
  %v5139 = vmul.f32 %v4963, %v5138
  %v5140 = vmul.f32 %v4964, %v5138
  %5141 = vset.pattern.permute.xlu0 13
  %5142 = vperm.xlu0 %5141, %v4565
  %v5143 = vpop.permute.xlu0 %5142
  %5145 = vset.pattern.permute.xlu0 13
  %5146 = vperm.xlu0 %5145, %v4566
  %v5147 = vpop.permute.xlu0 %5146
  %v5149 = vmul.f32 %v5139, %v5143
  %v5150 = vmul.f32 %v5140, %v5147
  %5151 = vset.pattern.permute.xlu0 14
  %5152 = vperm.xlu0 %5151, %v4565
  %v5153 = vpop.permute.xlu0 %5152
  %5155 = vset.pattern.permute.xlu0 14
  %5156 = vperm.xlu0 %5155, %v4566
  %v5157 = vpop.permute.xlu0 %5156
  %v5159 = vadd.f32 %v5149, %v5153
  %v5160 = vadd.f32 %v5150, %v5157
  %v5161 = vmax.f32 %v5159, 0.0
  %v5162 = vmax.f32 %v5160, 0.0
  %v5163 = vld [vmem:[%s0 + $0x90] sm:$0xff]
  %v5164 = vld [vmem:[%s1] sm:$0xff]
  %5166 = vset.pattern.permute.xlu0 4
  %5167 = vperm.xlu0 %5166, %v5164
  %v5168 = vpop.permute.xlu0 %5167
  %v5171 = vsel %vm4799, %v5163, 0
  %5173 = vmatpush.msra.mxu0 0.0
  %5174 = vmatpush.msra.mxu0 0.0
  %5175 = vmatpush.msra.mxu0 0.0
  %5176 = vmatpush.msra.mxu0 0.0
  %5177 = vmatpush.msra.mxu0 0.0
  %5178 = vmatpush.msra.mxu0 0.0
  %5179 = vmatpush.msra.mxu0 0.0
  %5180 = vmatpush.msra.mxu0 0.0
  %5181 = vmatpush.msra.mxu0 0.0
  %5182 = vmatpush.msra.mxu0 0.0
  %5183 = vmatpush.msra.mxu0 0.0
  %5184 = vmatpush.msra.mxu0 0.0
  %5185 = vmatpush.msra.mxu0 0.0
  %5186 = vmatpush.msra.mxu0 0.0
  %v5187 = vand.u32 %v5162, 4294901760
  %5188 = vmatpush.msra.mxu0 %v5187
  %v5189 = vand.u32 %v5161, 4294901760
  %5190 = vmatpush.msra.mxu0 %v5189
  %v5191 = vand.u32 %v5171, 4294901760
  %v5192 = vsub.f32 %v5171, %v5191
  %v5193 = vand.u32 %v5192, 4294901760
  %v5194 = vsub.f32 %v5192, %v5193
  %v5195 = vand.u32 %v5194, 4294901760
  %5196 = vmatmul.f32.gmra.mxu0 %v5195
  %v5197 = vpop.f32.mrf.mxu0
  %v5198 = vadd.f32 %v5168, %v5197
  %5199 = vdwg.mxu0
  %5200 = vmatpush.msra.mxu0 0.0
  %5201 = vmatpush.msra.mxu0 0.0
  %5202 = vmatpush.msra.mxu0 0.0
  %5203 = vmatpush.msra.mxu0 0.0
  %5204 = vmatpush.msra.mxu0 0.0
  %5205 = vmatpush.msra.mxu0 0.0
  %5206 = vmatpush.msra.mxu0 0.0
  %5207 = vmatpush.msra.mxu0 0.0
  %5208 = vmatpush.msra.mxu0 0.0
  %5209 = vmatpush.msra.mxu0 0.0
  %5210 = vmatpush.msra.mxu0 0.0
  %5211 = vmatpush.msra.mxu0 0.0
  %5212 = vmatpush.msra.mxu0 0.0
  %5213 = vmatpush.msra.mxu0 0.0
  %v5214 = vand.u32 %v5162, 4294901760
  %v5215 = vsub.f32 %v5162, %v5214
  %v5216 = vand.u32 %v5215, 4294901760
  %v5217 = vsub.f32 %v5215, %v5216
  %v5218 = vand.u32 %v5217, 4294901760
  %5219 = vmatpush.msra.mxu0 %v5218
  %v5220 = vand.u32 %v5161, 4294901760
  %v5221 = vsub.f32 %v5161, %v5220
  %v5222 = vand.u32 %v5221, 4294901760
  %v5223 = vsub.f32 %v5221, %v5222
  %v5224 = vand.u32 %v5223, 4294901760
  %5225 = vmatpush.msra.mxu0 %v5224
  %v5226 = vand.u32 %v5171, 4294901760
  %5227 = vmatmul.f32.gmra.mxu0 %v5226
  %v5228 = vpop.f32.mrf.mxu0
  %v5229 = vadd.f32 %v5198, %v5228
  %5230 = vdwg.mxu0
  %5231 = vmatpush.msra.mxu0 0.0
  %5232 = vmatpush.msra.mxu0 0.0
  %5233 = vmatpush.msra.mxu0 0.0
  %5234 = vmatpush.msra.mxu0 0.0
  %5235 = vmatpush.msra.mxu0 0.0
  %5236 = vmatpush.msra.mxu0 0.0
  %5237 = vmatpush.msra.mxu0 0.0
  %5238 = vmatpush.msra.mxu0 0.0
  %5239 = vmatpush.msra.mxu0 0.0
  %5240 = vmatpush.msra.mxu0 0.0
  %5241 = vmatpush.msra.mxu0 0.0
  %5242 = vmatpush.msra.mxu0 0.0
  %5243 = vmatpush.msra.mxu0 0.0
  %5244 = vmatpush.msra.mxu0 0.0
  %v5245 = vand.u32 %v5162, 4294901760
  %v5246 = vsub.f32 %v5162, %v5245
  %5247 = vmatpush.msra.mxu0 %v5246
  %v5248 = vand.u32 %v5161, 4294901760
  %v5249 = vsub.f32 %v5161, %v5248
  %5250 = vmatpush.msra.mxu0 %v5249
  %v5251 = vand.u32 %v5171, 4294901760
  %v5252 = vsub.f32 %v5171, %v5251
  %5253 = vmatmul.f32.gmra.mxu0 %v5252
  %v5254 = vpop.f32.mrf.mxu0
  %v5255 = vadd.f32 %v5229, %v5254
  %5256 = vdwg.mxu0
  %5257 = vmatpush.msra.mxu0 0.0
  %5258 = vmatpush.msra.mxu0 0.0
  %5259 = vmatpush.msra.mxu0 0.0
  %5260 = vmatpush.msra.mxu0 0.0
  %5261 = vmatpush.msra.mxu0 0.0
  %5262 = vmatpush.msra.mxu0 0.0
  %5263 = vmatpush.msra.mxu0 0.0
  %5264 = vmatpush.msra.mxu0 0.0
  %5265 = vmatpush.msra.mxu0 0.0
  %5266 = vmatpush.msra.mxu0 0.0
  %5267 = vmatpush.msra.mxu0 0.0
  %5268 = vmatpush.msra.mxu0 0.0
  %5269 = vmatpush.msra.mxu0 0.0
  %5270 = vmatpush.msra.mxu0 0.0
  %v5271 = vand.u32 %v5162, 4294901760
  %5272 = vmatpush.msra.mxu0 %v5271
  %v5273 = vand.u32 %v5161, 4294901760
  %5274 = vmatpush.msra.mxu0 %v5273
  %v5275 = vand.u32 %v5171, 4294901760
  %v5276 = vsub.f32 %v5171, %v5275
  %v5277 = vand.u32 %v5276, 4294901760
  %5278 = vmatmul.f32.gmra.mxu0 %v5277
  %v5279 = vpop.f32.mrf.mxu0
  %v5280 = vadd.f32 %v5255, %v5279
  %5281 = vdwg.mxu0
  %5282 = vmatpush.msra.mxu0 0.0
  %5283 = vmatpush.msra.mxu0 0.0
  %5284 = vmatpush.msra.mxu0 0.0
  %5285 = vmatpush.msra.mxu0 0.0
  %5286 = vmatpush.msra.mxu0 0.0
  %5287 = vmatpush.msra.mxu0 0.0
  %5288 = vmatpush.msra.mxu0 0.0
  %5289 = vmatpush.msra.mxu0 0.0
  %5290 = vmatpush.msra.mxu0 0.0
  %5291 = vmatpush.msra.mxu0 0.0
  %5292 = vmatpush.msra.mxu0 0.0
  %5293 = vmatpush.msra.mxu0 0.0
  %5294 = vmatpush.msra.mxu0 0.0
  %5295 = vmatpush.msra.mxu0 0.0
  %v5296 = vand.u32 %v5162, 4294901760
  %v5297 = vsub.f32 %v5162, %v5296
  %v5298 = vand.u32 %v5297, 4294901760
  %5299 = vmatpush.msra.mxu0 %v5298
  %v5300 = vand.u32 %v5161, 4294901760
  %v5301 = vsub.f32 %v5161, %v5300
  %v5302 = vand.u32 %v5301, 4294901760
  %5303 = vmatpush.msra.mxu0 %v5302
  %v5304 = vand.u32 %v5171, 4294901760
  %5305 = vmatmul.f32.gmra.mxu0 %v5304
  %v5306 = vpop.f32.mrf.mxu0
  %v5307 = vadd.f32 %v5280, %v5306
  %5308 = vdwg.mxu0
  %5309 = vmatpush.msra.mxu0 0.0
  %5310 = vmatpush.msra.mxu0 0.0
  %5311 = vmatpush.msra.mxu0 0.0
  %5312 = vmatpush.msra.mxu0 0.0
  %5313 = vmatpush.msra.mxu0 0.0
  %5314 = vmatpush.msra.mxu0 0.0
  %5315 = vmatpush.msra.mxu0 0.0
  %5316 = vmatpush.msra.mxu0 0.0
  %5317 = vmatpush.msra.mxu0 0.0
  %5318 = vmatpush.msra.mxu0 0.0
  %5319 = vmatpush.msra.mxu0 0.0
  %5320 = vmatpush.msra.mxu0 0.0
  %5321 = vmatpush.msra.mxu0 0.0
  %5322 = vmatpush.msra.mxu0 0.0
  %v5323 = vand.u32 %v5162, 4294901760
  %5324 = vmatpush.msra.mxu0 %v5323
  %v5325 = vand.u32 %v5161, 4294901760
  %5326 = vmatpush.msra.mxu0 %v5325
  %v5327 = vand.u32 %v5171, 4294901760
  %5328 = vmatmul.f32.gmra.mxu0 %v5327
  %v5329 = vpop.f32.mrf.mxu0
  %v5330 = vadd.f32 %v5307, %v5329
  %5331 = vdwg.mxu0
  %vm5332 = vcmask 64512
  %v5333 = vsel %vm5332, 1.0, 0
  %5335 = vmatpush.msra.mxu0 0.0
  %5336 = vmatpush.msra.mxu0 0.0
  %5337 = vmatpush.msra.mxu0 0.0
  %5338 = vmatpush.msra.mxu0 0.0
  %5339 = vmatpush.msra.mxu0 0.0
  %5340 = vmatpush.msra.mxu0 0.0
  %5341 = vmatpush.msra.mxu0 0.0
  %5342 = vmatpush.msra.mxu0 0.0
  %5343 = vmatpush.msra.mxu0 0.0
  %5344 = vmatpush.msra.mxu0 0.0
  %5345 = vmatpush.msra.mxu0 0.0
  %5346 = vmatpush.msra.mxu0 0.0
  %5347 = vmatpush.msra.mxu0 0.0
  %5348 = vmatpush.msra.mxu0 0.0
  %5349 = vmatpush.msra.mxu0 0.0
  %v5350 = vand.u32 %v5330, 4294901760
  %5351 = vmatpush.msra.mxu0 %v5350
  %v5352 = vand.u32 %v5333, 4294901760
  %v5353 = vsub.f32 %v5333, %v5352
  %v5354 = vand.u32 %v5353, 4294901760
  %v5355 = vsub.f32 %v5353, %v5354
  %v5356 = vand.u32 %v5355, 4294901760
  %5357 = vmatmul.f32.gmra.mxu0 %v5356
  %v5358 = vpop.f32.mrf.mxu0
  %v5359 = vadd.f32 0.0, %v5358
  %5360 = vdwg.mxu0
  %5361 = vmatpush.msra.mxu0 0.0
  %5362 = vmatpush.msra.mxu0 0.0
  %5363 = vmatpush.msra.mxu0 0.0
  %5364 = vmatpush.msra.mxu0 0.0
  %5365 = vmatpush.msra.mxu0 0.0
  %5366 = vmatpush.msra.mxu0 0.0
  %5367 = vmatpush.msra.mxu0 0.0
  %5368 = vmatpush.msra.mxu0 0.0
  %5369 = vmatpush.msra.mxu0 0.0
  %5370 = vmatpush.msra.mxu0 0.0
  %5371 = vmatpush.msra.mxu0 0.0
  %5372 = vmatpush.msra.mxu0 0.0
  %5373 = vmatpush.msra.mxu0 0.0
  %5374 = vmatpush.msra.mxu0 0.0
  %5375 = vmatpush.msra.mxu0 0.0
  %v5376 = vand.u32 %v5330, 4294901760
  %v5377 = vsub.f32 %v5330, %v5376
  %v5378 = vand.u32 %v5377, 4294901760
  %v5379 = vsub.f32 %v5377, %v5378
  %v5380 = vand.u32 %v5379, 4294901760
  %5381 = vmatpush.msra.mxu0 %v5380
  %v5382 = vand.u32 %v5333, 4294901760
  %5383 = vmatmul.f32.gmra.mxu0 %v5382
  %v5384 = vpop.f32.mrf.mxu0
  %v5385 = vadd.f32 %v5359, %v5384
  %5386 = vdwg.mxu0
  %5387 = vmatpush.msra.mxu0 0.0
  %5388 = vmatpush.msra.mxu0 0.0
  %5389 = vmatpush.msra.mxu0 0.0
  %5390 = vmatpush.msra.mxu0 0.0
  %5391 = vmatpush.msra.mxu0 0.0
  %5392 = vmatpush.msra.mxu0 0.0
  %5393 = vmatpush.msra.mxu0 0.0
  %5394 = vmatpush.msra.mxu0 0.0
  %5395 = vmatpush.msra.mxu0 0.0
  %5396 = vmatpush.msra.mxu0 0.0
  %5397 = vmatpush.msra.mxu0 0.0
  %5398 = vmatpush.msra.mxu0 0.0
  %5399 = vmatpush.msra.mxu0 0.0
  %5400 = vmatpush.msra.mxu0 0.0
  %5401 = vmatpush.msra.mxu0 0.0
  %v5402 = vand.u32 %v5330, 4294901760
  %v5403 = vsub.f32 %v5330, %v5402
  %5404 = vmatpush.msra.mxu0 %v5403
  %v5405 = vand.u32 %v5333, 4294901760
  %v5406 = vsub.f32 %v5333, %v5405
  %5407 = vmatmul.f32.gmra.mxu0 %v5406
  %v5408 = vpop.f32.mrf.mxu0
  %v5409 = vadd.f32 %v5385, %v5408
  %5410 = vdwg.mxu0
  %5411 = vmatpush.msra.mxu0 0.0
  %5412 = vmatpush.msra.mxu0 0.0
  %5413 = vmatpush.msra.mxu0 0.0
  %5414 = vmatpush.msra.mxu0 0.0
  %5415 = vmatpush.msra.mxu0 0.0
  %5416 = vmatpush.msra.mxu0 0.0
  %5417 = vmatpush.msra.mxu0 0.0
  %5418 = vmatpush.msra.mxu0 0.0
  %5419 = vmatpush.msra.mxu0 0.0
  %5420 = vmatpush.msra.mxu0 0.0
  %5421 = vmatpush.msra.mxu0 0.0
  %5422 = vmatpush.msra.mxu0 0.0
  %5423 = vmatpush.msra.mxu0 0.0
  %5424 = vmatpush.msra.mxu0 0.0
  %5425 = vmatpush.msra.mxu0 0.0
  %v5426 = vand.u32 %v5330, 4294901760
  %5427 = vmatpush.msra.mxu0 %v5426
  %v5428 = vand.u32 %v5333, 4294901760
  %v5429 = vsub.f32 %v5333, %v5428
  %v5430 = vand.u32 %v5429, 4294901760
  %5431 = vmatmul.f32.gmra.mxu0 %v5430
  %v5432 = vpop.f32.mrf.mxu0
  %v5433 = vadd.f32 %v5409, %v5432
  %5434 = vdwg.mxu0
  %5435 = vmatpush.msra.mxu0 0.0
  %5436 = vmatpush.msra.mxu0 0.0
  %5437 = vmatpush.msra.mxu0 0.0
  %5438 = vmatpush.msra.mxu0 0.0
  %5439 = vmatpush.msra.mxu0 0.0
  %5440 = vmatpush.msra.mxu0 0.0
  %5441 = vmatpush.msra.mxu0 0.0
  %5442 = vmatpush.msra.mxu0 0.0
  %5443 = vmatpush.msra.mxu0 0.0
  %5444 = vmatpush.msra.mxu0 0.0
  %5445 = vmatpush.msra.mxu0 0.0
  %5446 = vmatpush.msra.mxu0 0.0
  %5447 = vmatpush.msra.mxu0 0.0
  %5448 = vmatpush.msra.mxu0 0.0
  %5449 = vmatpush.msra.mxu0 0.0
  %v5450 = vand.u32 %v5330, 4294901760
  %v5451 = vsub.f32 %v5330, %v5450
  %v5452 = vand.u32 %v5451, 4294901760
  %5453 = vmatpush.msra.mxu0 %v5452
  %v5454 = vand.u32 %v5333, 4294901760
  %5455 = vmatmul.f32.gmra.mxu0 %v5454
  %v5456 = vpop.f32.mrf.mxu0
  %v5457 = vadd.f32 %v5433, %v5456
  %5458 = vdwg.mxu0
  %5459 = vmatpush.msra.mxu0 0.0
  %5460 = vmatpush.msra.mxu0 0.0
  %5461 = vmatpush.msra.mxu0 0.0
  %5462 = vmatpush.msra.mxu0 0.0
  %5463 = vmatpush.msra.mxu0 0.0
  %5464 = vmatpush.msra.mxu0 0.0
  %5465 = vmatpush.msra.mxu0 0.0
  %5466 = vmatpush.msra.mxu0 0.0
  %5467 = vmatpush.msra.mxu0 0.0
  %5468 = vmatpush.msra.mxu0 0.0
  %5469 = vmatpush.msra.mxu0 0.0
  %5470 = vmatpush.msra.mxu0 0.0
  %5471 = vmatpush.msra.mxu0 0.0
  %5472 = vmatpush.msra.mxu0 0.0
  %5473 = vmatpush.msra.mxu0 0.0
  %v5474 = vand.u32 %v5330, 4294901760
  %5475 = vmatpush.msra.mxu0 %v5474
  %v5476 = vand.u32 %v5333, 4294901760
  %5477 = vmatmul.f32.gmra.mxu0 %v5476
  %v5478 = vpop.f32.mrf.mxu0
  %v5479 = vadd.f32 %v5457, %v5478
  %5480 = vdwg.mxu0
  %v5481 = vmul.f32 %v5479, 0.125
  %v5482 = vperm.slane %v5481, 0
  %v5483 = vsub.f32 %v5330, %v5482
  %v5484 = vmul.f32 %v5483, %v5483
  %5485 = vmatpush.msra.mxu0 0.0
  %5486 = vmatpush.msra.mxu0 0.0
  %5487 = vmatpush.msra.mxu0 0.0
  %5488 = vmatpush.msra.mxu0 0.0
  %5489 = vmatpush.msra.mxu0 0.0
  %5490 = vmatpush.msra.mxu0 0.0
  %5491 = vmatpush.msra.mxu0 0.0
  %5492 = vmatpush.msra.mxu0 0.0
  %5493 = vmatpush.msra.mxu0 0.0
  %5494 = vmatpush.msra.mxu0 0.0
  %5495 = vmatpush.msra.mxu0 0.0
  %5496 = vmatpush.msra.mxu0 0.0
  %5497 = vmatpush.msra.mxu0 0.0
  %5498 = vmatpush.msra.mxu0 0.0
  %5499 = vmatpush.msra.mxu0 0.0
  %v5500 = vand.u32 %v5484, 4294901760
  %5501 = vmatpush.msra.mxu0 %v5500
  %v5502 = vand.u32 %v5333, 4294901760
  %v5503 = vsub.f32 %v5333, %v5502
  %v5504 = vand.u32 %v5503, 4294901760
  %v5505 = vsub.f32 %v5503, %v5504
  %v5506 = vand.u32 %v5505, 4294901760
  %5507 = vmatmul.f32.gmra.mxu0 %v5506
  %v5508 = vpop.f32.mrf.mxu0
  %v5509 = vadd.f32 0.0, %v5508
  %5510 = vdwg.mxu0
  %5511 = vmatpush.msra.mxu0 0.0
  %5512 = vmatpush.msra.mxu0 0.0
  %5513 = vmatpush.msra.mxu0 0.0
  %5514 = vmatpush.msra.mxu0 0.0
  %5515 = vmatpush.msra.mxu0 0.0
  %5516 = vmatpush.msra.mxu0 0.0
  %5517 = vmatpush.msra.mxu0 0.0
  %5518 = vmatpush.msra.mxu0 0.0
  %5519 = vmatpush.msra.mxu0 0.0
  %5520 = vmatpush.msra.mxu0 0.0
  %5521 = vmatpush.msra.mxu0 0.0
  %5522 = vmatpush.msra.mxu0 0.0
  %5523 = vmatpush.msra.mxu0 0.0
  %5524 = vmatpush.msra.mxu0 0.0
  %5525 = vmatpush.msra.mxu0 0.0
  %v5526 = vand.u32 %v5484, 4294901760
  %v5527 = vsub.f32 %v5484, %v5526
  %v5528 = vand.u32 %v5527, 4294901760
  %v5529 = vsub.f32 %v5527, %v5528
  %v5530 = vand.u32 %v5529, 4294901760
  %5531 = vmatpush.msra.mxu0 %v5530
  %v5532 = vand.u32 %v5333, 4294901760
  %5533 = vmatmul.f32.gmra.mxu0 %v5532
  %v5534 = vpop.f32.mrf.mxu0
  %v5535 = vadd.f32 %v5509, %v5534
  %5536 = vdwg.mxu0
  %5537 = vmatpush.msra.mxu0 0.0
  %5538 = vmatpush.msra.mxu0 0.0
  %5539 = vmatpush.msra.mxu0 0.0
  %5540 = vmatpush.msra.mxu0 0.0
  %5541 = vmatpush.msra.mxu0 0.0
  %5542 = vmatpush.msra.mxu0 0.0
  %5543 = vmatpush.msra.mxu0 0.0
  %5544 = vmatpush.msra.mxu0 0.0
  %5545 = vmatpush.msra.mxu0 0.0
  %5546 = vmatpush.msra.mxu0 0.0
  %5547 = vmatpush.msra.mxu0 0.0
  %5548 = vmatpush.msra.mxu0 0.0
  %5549 = vmatpush.msra.mxu0 0.0
  %5550 = vmatpush.msra.mxu0 0.0
  %5551 = vmatpush.msra.mxu0 0.0
  %v5552 = vand.u32 %v5484, 4294901760
  %v5553 = vsub.f32 %v5484, %v5552
  %5554 = vmatpush.msra.mxu0 %v5553
  %v5555 = vand.u32 %v5333, 4294901760
  %v5556 = vsub.f32 %v5333, %v5555
  %5557 = vmatmul.f32.gmra.mxu0 %v5556
  %v5558 = vpop.f32.mrf.mxu0
  %v5559 = vadd.f32 %v5535, %v5558
  %5560 = vdwg.mxu0
  %5561 = vmatpush.msra.mxu0 0.0
  %5562 = vmatpush.msra.mxu0 0.0
  %5563 = vmatpush.msra.mxu0 0.0
  %5564 = vmatpush.msra.mxu0 0.0
  %5565 = vmatpush.msra.mxu0 0.0
  %5566 = vmatpush.msra.mxu0 0.0
  %5567 = vmatpush.msra.mxu0 0.0
  %5568 = vmatpush.msra.mxu0 0.0
  %5569 = vmatpush.msra.mxu0 0.0
  %5570 = vmatpush.msra.mxu0 0.0
  %5571 = vmatpush.msra.mxu0 0.0
  %5572 = vmatpush.msra.mxu0 0.0
  %5573 = vmatpush.msra.mxu0 0.0
  %5574 = vmatpush.msra.mxu0 0.0
  %5575 = vmatpush.msra.mxu0 0.0
  %v5576 = vand.u32 %v5484, 4294901760
  %5577 = vmatpush.msra.mxu0 %v5576
  %v5578 = vand.u32 %v5333, 4294901760
  %v5579 = vsub.f32 %v5333, %v5578
  %v5580 = vand.u32 %v5579, 4294901760
  %5581 = vmatmul.f32.gmra.mxu0 %v5580
  %v5582 = vpop.f32.mrf.mxu0
  %v5583 = vadd.f32 %v5559, %v5582
  %5584 = vdwg.mxu0
  %5585 = vmatpush.msra.mxu0 0.0
  %5586 = vmatpush.msra.mxu0 0.0
  %5587 = vmatpush.msra.mxu0 0.0
  %5588 = vmatpush.msra.mxu0 0.0
  %5589 = vmatpush.msra.mxu0 0.0
  %5590 = vmatpush.msra.mxu0 0.0
  %5591 = vmatpush.msra.mxu0 0.0
  %5592 = vmatpush.msra.mxu0 0.0
  %5593 = vmatpush.msra.mxu0 0.0
  %5594 = vmatpush.msra.mxu0 0.0
  %5595 = vmatpush.msra.mxu0 0.0
  %5596 = vmatpush.msra.mxu0 0.0
  %5597 = vmatpush.msra.mxu0 0.0
  %5598 = vmatpush.msra.mxu0 0.0
  %5599 = vmatpush.msra.mxu0 0.0
  %v5600 = vand.u32 %v5484, 4294901760
  %v5601 = vsub.f32 %v5484, %v5600
  %v5602 = vand.u32 %v5601, 4294901760
  %5603 = vmatpush.msra.mxu0 %v5602
  %v5604 = vand.u32 %v5333, 4294901760
  %5605 = vmatmul.f32.gmra.mxu0 %v5604
  %v5606 = vpop.f32.mrf.mxu0
  %v5607 = vadd.f32 %v5583, %v5606
  %5608 = vdwg.mxu0
  %5609 = vmatpush.msra.mxu0 0.0
  %5610 = vmatpush.msra.mxu0 0.0
  %5611 = vmatpush.msra.mxu0 0.0
  %5612 = vmatpush.msra.mxu0 0.0
  %5613 = vmatpush.msra.mxu0 0.0
  %5614 = vmatpush.msra.mxu0 0.0
  %5615 = vmatpush.msra.mxu0 0.0
  %5616 = vmatpush.msra.mxu0 0.0
  %5617 = vmatpush.msra.mxu0 0.0
  %5618 = vmatpush.msra.mxu0 0.0
  %5619 = vmatpush.msra.mxu0 0.0
  %5620 = vmatpush.msra.mxu0 0.0
  %5621 = vmatpush.msra.mxu0 0.0
  %5622 = vmatpush.msra.mxu0 0.0
  %5623 = vmatpush.msra.mxu0 0.0
  %v5624 = vand.u32 %v5484, 4294901760
  %5625 = vmatpush.msra.mxu0 %v5624
  %v5626 = vand.u32 %v5333, 4294901760
  %5627 = vmatmul.f32.gmra.mxu0 %v5626
  %v5628 = vpop.f32.mrf.mxu0
  %v5629 = vadd.f32 %v5607, %v5628
  %5630 = vdwg.mxu0
  %v5631 = vmul.f32 %v5629, 0.125
  %v5632 = vadd.f32 %v5631, 1e-05
  %v5633 = vrsqrt.pop %v5632
  %v5634 = vmul.f32 %v5633, %v5632
  %v5635 = vmul.f32 %v5634, %v5633
  %v5636 = vmul.f32 0.5, %v5635
  %v5637 = vsub.f32 1.5, %v5636
  %v5638 = vmul.f32 %v5633, %v5637
  %vm5639 = vweird.f32 %v5632
  %vm5640 = vweird.f32 %v5633
  %vm5641 = vmor %vm5639, %vm5640
  %v5642 = vsel %vm5641, %v5633, %v5638
  %v5643 = vperm.slane %v5642, 0
  %v5644 = vmul.f32 %v5483, %v5643
  %5645 = vset.pattern.permute.xlu0 15
  %5646 = vperm.xlu0 %5645, %v5164
  %v5647 = vpop.permute.xlu0 %5646
  %v5649 = vmul.f32 %v5644, %v5647
  %5650 = vset.pattern.permute.xlu0 16
  %5651 = vperm.xlu0 %5650, %v5164
  %v5652 = vpop.permute.xlu0 %5651
  %v5654 = vadd.f32 %v5649, %v5652
  %v5655 = vmax.f32 %v5654, 0.0
  %v5656 = vld [vmem:[%s0 + $0x98] sm:$0x1]
  %v5657 = vld [vmem:[%s1] sm:$0x1]
  %5659 = vset.pattern.permute.xlu0 5
  %5660 = vperm.xlu0 %5659, %v5657
  %v5661 = vpop.permute.xlu0 %5660
  %v5664 = vsel %vm5332, %v5656, 0
  %5666 = vmatpush.msra.mxu0 0.0
  %5667 = vmatpush.msra.mxu0 0.0
  %5668 = vmatpush.msra.mxu0 0.0
  %5669 = vmatpush.msra.mxu0 0.0
  %5670 = vmatpush.msra.mxu0 0.0
  %5671 = vmatpush.msra.mxu0 0.0
  %5672 = vmatpush.msra.mxu0 0.0
  %5673 = vmatpush.msra.mxu0 0.0
  %5674 = vmatpush.msra.mxu0 0.0
  %5675 = vmatpush.msra.mxu0 0.0
  %5676 = vmatpush.msra.mxu0 0.0
  %5677 = vmatpush.msra.mxu0 0.0
  %5678 = vmatpush.msra.mxu0 0.0
  %5679 = vmatpush.msra.mxu0 0.0
  %5680 = vmatpush.msra.mxu0 0.0
  %v5681 = vand.u32 %v5655, 4294901760
  %5682 = vmatpush.msra.mxu0 %v5681
  %v5683 = vand.u32 %v5664, 4294901760
  %v5684 = vsub.f32 %v5664, %v5683
  %v5685 = vand.u32 %v5684, 4294901760
  %v5686 = vsub.f32 %v5684, %v5685
  %v5687 = vand.u32 %v5686, 4294901760
  %5688 = vmatmul.f32.gmra.mxu0 %v5687
  %v5689 = vpop.f32.mrf.mxu0
  %v5690 = vadd.f32 %v5661, %v5689
  %5691 = vdwg.mxu0
  %5692 = vmatpush.msra.mxu0 0.0
  %5693 = vmatpush.msra.mxu0 0.0
  %5694 = vmatpush.msra.mxu0 0.0
  %5695 = vmatpush.msra.mxu0 0.0
  %5696 = vmatpush.msra.mxu0 0.0
  %5697 = vmatpush.msra.mxu0 0.0
  %5698 = vmatpush.msra.mxu0 0.0
  %5699 = vmatpush.msra.mxu0 0.0
  %5700 = vmatpush.msra.mxu0 0.0
  %5701 = vmatpush.msra.mxu0 0.0
  %5702 = vmatpush.msra.mxu0 0.0
  %5703 = vmatpush.msra.mxu0 0.0
  %5704 = vmatpush.msra.mxu0 0.0
  %5705 = vmatpush.msra.mxu0 0.0
  %5706 = vmatpush.msra.mxu0 0.0
  %v5707 = vand.u32 %v5655, 4294901760
  %v5708 = vsub.f32 %v5655, %v5707
  %v5709 = vand.u32 %v5708, 4294901760
  %v5710 = vsub.f32 %v5708, %v5709
  %v5711 = vand.u32 %v5710, 4294901760
  %5712 = vmatpush.msra.mxu0 %v5711
  %v5713 = vand.u32 %v5664, 4294901760
  %5714 = vmatmul.f32.gmra.mxu0 %v5713
  %v5715 = vpop.f32.mrf.mxu0
  %v5716 = vadd.f32 %v5690, %v5715
  %5717 = vdwg.mxu0
  %5718 = vmatpush.msra.mxu0 0.0
  %5719 = vmatpush.msra.mxu0 0.0
  %5720 = vmatpush.msra.mxu0 0.0
  %5721 = vmatpush.msra.mxu0 0.0
  %5722 = vmatpush.msra.mxu0 0.0
  %5723 = vmatpush.msra.mxu0 0.0
  %5724 = vmatpush.msra.mxu0 0.0
  %5725 = vmatpush.msra.mxu0 0.0
  %5726 = vmatpush.msra.mxu0 0.0
  %5727 = vmatpush.msra.mxu0 0.0
  %5728 = vmatpush.msra.mxu0 0.0
  %5729 = vmatpush.msra.mxu0 0.0
  %5730 = vmatpush.msra.mxu0 0.0
  %5731 = vmatpush.msra.mxu0 0.0
  %5732 = vmatpush.msra.mxu0 0.0
  %v5733 = vand.u32 %v5655, 4294901760
  %v5734 = vsub.f32 %v5655, %v5733
  %5735 = vmatpush.msra.mxu0 %v5734
  %v5736 = vand.u32 %v5664, 4294901760
  %v5737 = vsub.f32 %v5664, %v5736
  %5738 = vmatmul.f32.gmra.mxu0 %v5737
  %v5739 = vpop.f32.mrf.mxu0
  %v5740 = vadd.f32 %v5716, %v5739
  %5741 = vdwg.mxu0
  %5742 = vmatpush.msra.mxu0 0.0
  %5743 = vmatpush.msra.mxu0 0.0
  %5744 = vmatpush.msra.mxu0 0.0
  %5745 = vmatpush.msra.mxu0 0.0
  %5746 = vmatpush.msra.mxu0 0.0
  %5747 = vmatpush.msra.mxu0 0.0
  %5748 = vmatpush.msra.mxu0 0.0
  %5749 = vmatpush.msra.mxu0 0.0
  %5750 = vmatpush.msra.mxu0 0.0
  %5751 = vmatpush.msra.mxu0 0.0
  %5752 = vmatpush.msra.mxu0 0.0
  %5753 = vmatpush.msra.mxu0 0.0
  %5754 = vmatpush.msra.mxu0 0.0
  %5755 = vmatpush.msra.mxu0 0.0
  %5756 = vmatpush.msra.mxu0 0.0
  %v5757 = vand.u32 %v5655, 4294901760
  %5758 = vmatpush.msra.mxu0 %v5757
  %v5759 = vand.u32 %v5664, 4294901760
  %v5760 = vsub.f32 %v5664, %v5759
  %v5761 = vand.u32 %v5760, 4294901760
  %5762 = vmatmul.f32.gmra.mxu0 %v5761
  %v5763 = vpop.f32.mrf.mxu0
  %v5764 = vadd.f32 %v5740, %v5763
  %5765 = vdwg.mxu0
  %5766 = vmatpush.msra.mxu0 0.0
  %5767 = vmatpush.msra.mxu0 0.0
  %5768 = vmatpush.msra.mxu0 0.0
  %5769 = vmatpush.msra.mxu0 0.0
  %5770 = vmatpush.msra.mxu0 0.0
  %5771 = vmatpush.msra.mxu0 0.0
  %5772 = vmatpush.msra.mxu0 0.0
  %5773 = vmatpush.msra.mxu0 0.0
  %5774 = vmatpush.msra.mxu0 0.0
  %5775 = vmatpush.msra.mxu0 0.0
  %5776 = vmatpush.msra.mxu0 0.0
  %5777 = vmatpush.msra.mxu0 0.0
  %5778 = vmatpush.msra.mxu0 0.0
  %5779 = vmatpush.msra.mxu0 0.0
  %5780 = vmatpush.msra.mxu0 0.0
  %v5781 = vand.u32 %v5655, 4294901760
  %v5782 = vsub.f32 %v5655, %v5781
  %v5783 = vand.u32 %v5782, 4294901760
  %5784 = vmatpush.msra.mxu0 %v5783
  %v5785 = vand.u32 %v5664, 4294901760
  %5786 = vmatmul.f32.gmra.mxu0 %v5785
  %v5787 = vpop.f32.mrf.mxu0
  %v5788 = vadd.f32 %v5764, %v5787
  %5789 = vdwg.mxu0
  %5790 = vmatpush.msra.mxu0 0.0
  %5791 = vmatpush.msra.mxu0 0.0
  %5792 = vmatpush.msra.mxu0 0.0
  %5793 = vmatpush.msra.mxu0 0.0
  %5794 = vmatpush.msra.mxu0 0.0
  %5795 = vmatpush.msra.mxu0 0.0
  %5796 = vmatpush.msra.mxu0 0.0
  %5797 = vmatpush.msra.mxu0 0.0
  %5798 = vmatpush.msra.mxu0 0.0
  %5799 = vmatpush.msra.mxu0 0.0
  %5800 = vmatpush.msra.mxu0 0.0
  %5801 = vmatpush.msra.mxu0 0.0
  %5802 = vmatpush.msra.mxu0 0.0
  %5803 = vmatpush.msra.mxu0 0.0
  %5804 = vmatpush.msra.mxu0 0.0
  %v5805 = vand.u32 %v5655, 4294901760
  %5806 = vmatpush.msra.mxu0 %v5805
  %v5807 = vand.u32 %v5664, 4294901760
  %5808 = vmatmul.f32.gmra.mxu0 %v5807
  %v5809 = vpop.f32.mrf.mxu0
  %v5810 = vadd.f32 %v5788, %v5809
  %5811 = vdwg.mxu0
  %5812 = vst [vmem:[%s4] sm:$0x1] %v5810
  // Predicated region
  $region18: #{_forward.1} parent=0 // pred_check
    _
  $region19: #{_forward.1} parent=0 // pred_check_branch
    %5814 = sbr.rel (0) target = $region21
  $region20: #{_forward.1} parent=0 // pred_region
    _
  $region21: #{_forward.1} parent=0 // pred_fallthru
    _
  // Predicated region
  $region22: #{_forward.1} parent=0 // pred_check
    _
  $region23: #{_forward.1} parent=0 // pred_check_branch
    %5816 = sbr.rel (0) target = $region25
  $region24: #{_forward.1} parent=0 // pred_region
    _
  $region25: #{_forward.1} parent=0 // pred_fallthru
    _

</llo_original>
